<compile_context>
chip_gen: v7x
topology: tpu7x:2x2x1
jax: 0.10.0
libtpu: 0.0.40
codegen_flags: <defaults>
</compile_context>

<pallas_src>
import math
import functools

import jax
import jax.numpy as jnp
from jax import lax
from jax.experimental import pallas as pl
from jax.experimental.pallas import tpu as pltpu

PAD = 0


def _round_up(x, m):
    return (x + m - 1) // m * m


def _vmem_limit_bytes():
    """Generation-aware scoped-VMEM limit (~96 MiB on v5e/v6e, ~48 MiB on v7x)."""
    cap = 64 * 1024 * 1024
    try:
        info = pltpu.get_tpu_info()
        cap = int(getattr(info, "vmem_capacity_bytes", cap) or cap)
    except Exception:
        pass
    return min(cap * 3 // 4, 112 * 1024 * 1024)


# --------------------------------------------------------------------------
# LSTM kernel: fused xgates + recurrence, chunked over time
# --------------------------------------------------------------------------

def _lstm_chunk_kernel(x_ref, wih_ref, whh_ref, b_ref, h0_ref, c0_ref, y_ref,
                       h_scr, c_scr):
    """One time chunk of one LSTM layer for one batch shard.

    grid = (batch shards ["parallel"], time chunks ["arbitrary"]).
    x_ref:   (Tc, Bb, H) bf16   layer input chunk
    wih/whh: (H, 4H)     bf16   W_ih^T / W_hh^T
    b_ref:   (1, 4H)     f32    b_ih + b_hh
    h0/c0:   (Bb, H)     f32    initial state for this batch shard
    y_ref:   (Tc, Bb, H) bf16   hidden-state outputs
    h_scr/c_scr: f32 VMEM state carried across time chunks.
    """
    Tc, Bb, H = x_ref.shape
    ic = pl.program_id(1)

    @pl.when(ic == 0)
    def _():
        h_scr[...] = h0_ref[...]
        c_scr[...] = c0_ref[...]

    wih = wih_ref[...]                       # loop-invariant weight loads, hoisted
    whh = whh_ref[...]
    bb = jnp.broadcast_to(b_ref[...], (Bb, 4 * H))   # broadcast hoisted out of loop

    # TODO(synk): hold W_ih^T/W_hh^T in MXU weight registers across steps via
    # pltpu.matmul_push_rhs/matmul_acc_lhs/matmul_pop instead of relying on
    # Mosaic to hoist the per-step weight push.
    for t in range(Tc):   # short static unroll; live ranges bounded by the chunk grid axis
        gates = (jnp.dot(x_ref[t], wih, preferred_element_type=jnp.float32)
                 + jnp.dot(h_scr[...].astype(jnp.bfloat16), whh,
                           preferred_element_type=jnp.float32)
                 + bb)                                           # (Bb, 4H) f32
        i = jax.nn.sigmoid(gates[:, 0 * H:1 * H])                # torch gate order i,f,g,o
        f = jax.nn.sigmoid(gates[:, 1 * H:2 * H])
        g = jnp.tanh(gates[:, 2 * H:3 * H])
        o = jax.nn.sigmoid(gates[:, 3 * H:4 * H])
        c_new = f * c_scr[...] + i * g
        h_new = o * jnp.tanh(c_new)
        c_scr[...] = c_new
        h_scr[...] = h_new
        y_ref[t] = h_new.astype(y_ref.dtype)                     # bf16 inter-layer activations


def lstm_layer(x, wih_t, whh_t, bias, h0, c0, *, tc, vmem_limit):
    """One LSTM layer over the (time-padded) sequence, chunked over time."""
    T_pad, B, H = x.shape
    n_chunks = T_pad // tc
    n_bsplit = 2 if (B % 16 == 0) else 1   # v7x: shard the batch across both TensorCores
    Bb = B // n_bsplit
    return pl.pallas_call(
        _lstm_chunk_kernel,
        out_shape=jax.ShapeDtypeStruct((T_pad, B, H), jnp.bfloat16),
        grid=(n_bsplit, n_chunks),
        in_specs=[pl.BlockSpec((tc, Bb, H), lambda ib, ic: (ic, ib, 0)),
                  pl.BlockSpec((H, 4 * H), lambda ib, ic: (0, 0)),
                  pl.BlockSpec((H, 4 * H), lambda ib, ic: (0, 0)),
                  pl.BlockSpec((1, 4 * H), lambda ib, ic: (0, 0)),
                  pl.BlockSpec((Bb, H), lambda ib, ic: (ib, 0)),
                  pl.BlockSpec((Bb, H), lambda ib, ic: (ib, 0))],
        out_specs=pl.BlockSpec((tc, Bb, H), lambda ib, ic: (ic, ib, 0)),
        scratch_shapes=[pltpu.VMEM((Bb, H), jnp.float32),
                        pltpu.VMEM((Bb, H), jnp.float32)],
        compiler_params=pltpu.CompilerParams(
            dimension_semantics=("parallel", "arbitrary"),
            vmem_limit_bytes=vmem_limit),
    )(x, wih_t, whh_t, bias, h0, c0)


# --------------------------------------------------------------------------
# Projection + log_softmax + argmax: two HBM-lean passes (no logits buffer)
# --------------------------------------------------------------------------

def _proj_stats_kernel(x_ref, w_ref, lse_ref, amax_ref, m_scr, l_scr, a_scr):
    """Pass 1: per (row block, vocab block), online max / log-sum-exp / argmax only."""
    j = pl.program_id(1)
    nvb = pl.num_programs(1)
    tv = w_ref.shape[-1]

    @pl.when(j == 0)
    def _():
        m_scr[...] = jnp.full(m_scr.shape, -jnp.inf, jnp.float32)
        l_scr[...] = jnp.zeros(l_scr.shape, jnp.float32)
        a_scr[...] = jnp.zeros(a_scr.shape, jnp.int32)

    logits = jnp.dot(x_ref[...], w_ref[...], preferred_element_type=jnp.float32)  # (tn, tv)

    blk_max = jnp.max(logits, axis=-1, keepdims=True)
    idx = lax.broadcasted_iota(jnp.int32, logits.shape, 1)
    blk_arg = (jnp.min(jnp.where(logits >= blk_max, idx, tv), axis=-1, keepdims=True)
               .astype(jnp.int32) + j * tv)

    m_prev = m_scr[...]
    m_new = jnp.maximum(m_prev, blk_max)
    l_scr[...] = (l_scr[...] * jnp.exp(m_prev - m_new)
                  + jnp.sum(jnp.exp(logits - m_new), axis=-1, keepdims=True))
    # strict '>' keeps the earlier (smaller) index on ties -> torch first-max convention
    a_scr[...] = jnp.where(blk_max > m_prev, blk_arg, a_scr[...])
    m_scr[...] = m_new

    @pl.when(j == nvb - 1)
    def _():
        lse_ref[...] = m_scr[...] + jnp.log(l_scr[...])
        amax_ref[...] = a_scr[...]


def _proj_write_kernel(x_ref, w_ref, lse_ref, logp_ref):
    """Pass 2: recompute the logits tile and write logp = logits - lse directly."""
    logp_ref[...] = (jnp.dot(x_ref[...], w_ref[...], preferred_element_type=jnp.float32)
                     - lse_ref[...])


def _pick_proj_tiles(N, H, V, vmem_limit, tn_max, tv_max):
    """Pick (tn, tv, N_pad): lane-aligned vocab tile, row tile dividing N if possible."""
    tv = V
    cand = min((tv_max // 128) * 128, (V // 128) * 128)
    while cand >= 128:
        if V % cand == 0:
            tv = cand
            break
        cand -= 128

    def fits(tn):
        need = (2 * tn * H * 2          # x blocks (bf16, double-buffered)
                + 2 * H * tv * 2        # weight blocks (bf16)
                + 2 * tn * tv * 4       # logp blocks (pass 2)
                + 4 * tn * 128 * 4      # lse / argmax blocks + scratch (lane-padded)
                + (2 << 20))            # slack
        return need <= vmem_limit

    if N % 8 == 0:
        t = min(tn_max, N) // 8 * 8
        while t >= 8:                    # prefer a divisor of N -> no pad / trailing slice
            if N % t == 0 and fits(t):
                return t, tv, N
            t -= 8
    if N <= tn_max and fits(N):
        return N, tv, N                  # single row block (block == full rows)
    t = max(8, min(tn_max, N) // 8 * 8)
    while t > 8 and not fits(t):
        t -= 8
    return t, tv, _round_up(N, t)


def project_logsoftmax(x_flat, w_proj, *, tn_max=512, tv_max=2048, vmem_limit):
    """logp = log_softmax(x @ W_proj), words = argmax; (N, V) written once, never re-read."""
    N, H = x_flat.shape
    V = w_proj.shape[1]
    tn, tv, N_pad = _pick_proj_tiles(N, H, V, vmem_limit, tn_max, tv_max)
    if N_pad != N:
        x_flat = jnp.pad(x_flat, ((0, N_pad - N), (0, 0)))
    NB, VB = N_pad // tn, V // tv

    lse, words = pl.pallas_call(
        _proj_stats_kernel,
        out_shape=(jax.ShapeDtypeStruct((N_pad, 1), jnp.float32),
                   jax.ShapeDtypeStruct((N_pad, 1), jnp.int32)),
        grid=(NB, VB),
        in_specs=[pl.BlockSpec((tn, H), lambda i, j: (i, 0)),
                  pl.BlockSpec((H, tv), lambda i, j: (0, j))],
        out_specs=(pl.BlockSpec((tn, 1), lambda i, j: (i, 0)),
                   pl.BlockSpec((tn, 1), lambda i, j: (i, 0))),
        scratch_shapes=[pltpu.VMEM((tn, 1), jnp.float32),
                        pltpu.VMEM((tn, 1), jnp.float32),
                        pltpu.VMEM((tn, 1), jnp.int32)],
        compiler_params=pltpu.CompilerParams(
            dimension_semantics=("parallel", "arbitrary"),
            vmem_limit_bytes=vmem_limit),
    )(x_flat, w_proj)

    logp = pl.pallas_call(
        _proj_write_kernel,
        out_shape=jax.ShapeDtypeStruct((N_pad, V), jnp.float32),
        grid=(NB, VB),
        in_specs=[pl.BlockSpec((tn, H), lambda i, j: (i, 0)),
                  pl.BlockSpec((H, tv), lambda i, j: (0, j)),
                  pl.BlockSpec((tn, 1), lambda i, j: (i, 0))],
        out_specs=pl.BlockSpec((tn, tv), lambda i, j: (i, j)),
        compiler_params=pltpu.CompilerParams(
            dimension_semantics=("parallel", "parallel"),
            vmem_limit_bytes=vmem_limit),
    )(x_flat, w_proj, lse)

    if N_pad != N:
        logp = logp[:N]
        words = words[:N]
    return logp, words[:, 0]


# --------------------------------------------------------------------------
# Critic module (parameters + forward), mirroring the PyTorch module
# --------------------------------------------------------------------------

def init_critic_params(key, vocab_size, dec_hsz, rnn_layers):
    stdv = 1.0 / math.sqrt(vocab_size)        # _reset_parameters
    lstm_stdv = 1.0 / math.sqrt(dec_hsz)      # PyTorch LSTM default init
    H = dec_hsz
    keys = jax.random.split(key, 4 + 4 * rnn_layers)

    emb = jax.random.uniform(keys[0], (vocab_size, H), jnp.float32, -stdv, stdv)
    emb = emb.at[PAD].set(0.0)                # padding_idx=PAD

    params = {
        "enc_out_w": jax.random.uniform(keys[1], (H, 1000), jnp.float32, -stdv, stdv),
        "enc_out_b": jax.random.uniform(keys[2], (H,), jnp.float32, -stdv, stdv),
        "emb": emb,
        "out_w": jax.random.uniform(keys[3], (H, H), jnp.float32, -stdv, stdv),
        "lstm": [],
    }
    for l in range(rnn_layers):
        k = keys[4 + 4 * l: 8 + 4 * l]
        params["lstm"].append({
            "w_ih": jax.random.uniform(k[0], (4 * H, H), jnp.float32, -lstm_stdv, lstm_stdv),
            "w_hh": jax.random.uniform(k[1], (4 * H, H), jnp.float32, -lstm_stdv, lstm_stdv),
            "b_ih": jax.random.uniform(k[2], (4 * H,), jnp.float32, -lstm_stdv, lstm_stdv),
            "b_hh": jax.random.uniform(k[3], (4 * H,), jnp.float32, -lstm_stdv, lstm_stdv),
        })
    return params


def prepare_weights(params):
    """One-time weight prep: transposes, bias fusion, W_out^T @ W_emb^T fusion, bf16 casts."""
    w_proj = jnp.dot(params["out_w"].T, params["emb"].T,
                     precision=lax.Precision.HIGHEST)            # (H, V) f32, exact fusion
    prep = {
        "emb": params["emb"].astype(jnp.bfloat16),               # bf16 table -> bf16 matmul LHS
        "w_proj": w_proj.astype(jnp.bfloat16),
        "lstm": [],
    }
    for lp in params["lstm"]:
        prep["lstm"].append({
            "wih_t": lp["w_ih"].T.astype(jnp.bfloat16),          # (H, 4H)
            "whh_t": lp["w_hh"].T.astype(jnp.bfloat16),          # (H, 4H)
            "bias": (lp["b_ih"] + lp["b_hh"]).reshape(1, -1).astype(jnp.float32),
        })
    return prep


def feed_enc(params, enc, rnn_layers):
    """Mirrors Critic.feed_enc: h = enc_out(enc) broadcast over layers, c = 0. (glue)"""
    h = enc @ params["enc_out_w"].T + params["enc_out_b"]        # (B, H)
    h = jnp.broadcast_to(h[None], (rnn_layers,) + h.shape)       # (L, B, H)
    c = jnp.zeros_like(h)
    return (h, c)


def critic_forward(prep, inputs, hidden, *, tc_max=16, proj_tn_max=512, proj_tv_max=2048):
    """Mirrors Critic.forward. inputs: (B, max_len) int32; hidden: ((L,B,H),(L,B,H))."""
    tokens = inputs[:, :-1]                                      # (B, T)
    B, T = tokens.shape
    H, V = prep["w_proj"].shape
    vmem_limit = _vmem_limit_bytes()

    # Embedding gather directly time-major in bf16. (plain-JAX glue: gather)
    # TODO(synk): fuse the gather into the first LSTM chunk via scalar-prefetched
    # token ids instead of materializing x; worthwhile at large T*B*H.
    x = prep["emb"][tokens.T]                                    # (T, B, H) bf16

    tc = min(tc_max, T)
    T_pad = _round_up(T, tc)
    if T_pad != T:                                               # trailing pad steps are causal-safe
        x = jnp.pad(x, ((0, T_pad - T), (0, 0), (0, 0)))

    h0s, c0s = hidden
    # TODO(synk): nn.LSTM inter-layer dropout (training-mode only) is not applied.
    for l, lp in enumerate(prep["lstm"]):
        x = lstm_layer(x, lp["wih_t"], lp["whh_t"], lp["bias"],
                       h0s[l].astype(jnp.float32), c0s[l].astype(jnp.float32),
                       tc=tc, vmem_limit=vmem_limit)

    rnn_out = jnp.transpose(x[:T], (1, 0, 2)).reshape(B * T, H)  # bf16, one small transpose
    logp, words = project_logsoftmax(rnn_out, prep["w_proj"],
                                     tn_max=proj_tn_max, tv_max=proj_tv_max,
                                     vmem_limit=vmem_limit)
    return logp.reshape(B, T, V), words.reshape(B, T)


# --------------------------------------------------------------------------
# Pure-JAX reference (same bf16 weight prep) for validation
# --------------------------------------------------------------------------

def reference_forward(prep, inputs, hidden):
    tokens = inputs[:, :-1]
    B, T = tokens.shape
    H, V = prep["w_proj"].shape
    x = prep["emb"][tokens.T]                                    # (T, B, H) bf16
    h0s, c0s = hidden
    for l, lp in enumerate(prep["lstm"]):
        h = h0s[l].astype(jnp.float32)
        c = c0s[l].astype(jnp.float32)
        ys = []
        for t in range(T):
            gates = (jnp.dot(x[t], lp["wih_t"], preferred_element_type=jnp.float32)
                     + jnp.dot(h.astype(jnp.bfloat16), lp["whh_t"],
                               preferred_element_type=jnp.float32)
                     + lp["bias"])
            i = jax.nn.sigmoid(gates[:, :H])
            f = jax.nn.sigmoid(gates[:, H:2 * H])
            g = jnp.tanh(gates[:, 2 * H:3 * H])
            o = jax.nn.sigmoid(gates[:, 3 * H:])
            c = f * c + i * g
            h = o * jnp.tanh(c)
            ys.append(h.astype(jnp.bfloat16))
        x = jnp.stack(ys, 0)
    rnn = jnp.transpose(x, (1, 0, 2)).reshape(B * T, H)
    logits = jnp.dot(rnn, prep["w_proj"], preferred_element_type=jnp.float32)
    logp = jax.nn.log_softmax(logits, axis=-1)
    return logp.reshape(B, T, V), jnp.argmax(logits, axis=-1).reshape(B, T)


# --------------------------------------------------------------------------

if __name__ == "__main__":
    vocab_size, dec_hsz, rnn_layers = 1024, 128, 2
    bsz, max_len = 2, 9

    key = jax.random.PRNGKey(0)
    k_params, k_tok, k_enc = jax.random.split(key, 3)

    params = init_critic_params(k_params, vocab_size, dec_hsz, rnn_layers)
    prep = prepare_weights(params)

    inputs = jax.random.randint(k_tok, (bsz, max_len), 0, vocab_size, jnp.int32)
    enc = jax.random.normal(k_enc, (bsz, 1000), jnp.float32)     # fake encoder features
    hidden = feed_enc(params, enc, rnn_layers)

    # Small tiles / chunk so the demo exercises multiple time chunks (with time
    # padding), multiple row blocks and the online-LSE vocab sweep; defaults
    # (tc_max=16, tn=512, tv=2048) are for realistic shapes.
    fwd = jax.jit(functools.partial(critic_forward,
                                    tc_max=3, proj_tn_max=8, proj_tv_max=256))
    log_props, words = fwd(prep, inputs, hidden)
    jax.block_until_ready((log_props, words))

    T = max_len - 1
    assert log_props.shape == (bsz, T, vocab_size)
    assert words.shape == (bsz, T)
    assert bool(jnp.all(jnp.isfinite(log_props)))
    # log_softmax rows must (log-)sum to ~0
    row_lse = jax.nn.logsumexp(log_props, axis=-1)
    assert bool(jnp.all(jnp.abs(row_lse) < 5e-3))
    # online argmax must agree with argmax of the returned log-probs
    assert bool(jnp.all(words == jnp.argmax(log_props, axis=-1)))
    # pure-JAX reference with the same bf16 weight prep
    ref_logp, _ = reference_forward(prep, inputs, hidden)
    assert bool(jnp.max(jnp.abs(log_props - ref_logp)) < 5e-3)
    print("KERNEL_OK")
</pallas_src>

<mosaic_0001>
module attributes {stable_mosaic.version = 11 : i64} {
  func.func @_lstm_chunk_kernel(%arg0: i32, %arg1: i32, %arg2: memref<3x2x128xbf16, #tpu.memory_space<vmem>>, %arg3: memref<128x512xbf16, #tpu.memory_space<vmem>>, %arg4: memref<128x512xbf16, #tpu.memory_space<vmem>>, %arg5: memref<1x512xf32, #tpu.memory_space<vmem>>, %arg6: memref<2x128xf32, #tpu.memory_space<vmem>>, %arg7: memref<2x128xf32, #tpu.memory_space<vmem>>, %arg8: memref<3x2x128xbf16, #tpu.memory_space<vmem>>, %arg9: memref<2x128xf32, #tpu.memory_space<vmem>>, %arg10: memref<2x128xf32, #tpu.memory_space<vmem>>) attributes {dimension_semantics = [#tpu.dimension_semantics<parallel>, #tpu.dimension_semantics<arbitrary>], iteration_bounds = array<i64: 1, 3>, scalar_prefetch = 0 : i64, scratch_operands = 2 : i64, tpu.core_type = #tpu.core_type<tc>, window_params = [{transform_indices = @transform_0, window_bounds = array<i64: 3, 2, 128>}, {pipeline_mode = #tpu.pipeline_mode<synchronous>, transform_indices = @transform_1, window_bounds = array<i64: 128, 512>}, {pipeline_mode = #tpu.pipeline_mode<synchronous>, transform_indices = @transform_2, window_bounds = array<i64: 128, 512>}, {pipeline_mode = #tpu.pipeline_mode<synchronous>, transform_indices = @transform_3, window_bounds = array<i64: 1, 512>}, {transform_indices = @transform_4, window_bounds = array<i64: 2, 128>}, {transform_indices = @transform_5, window_bounds = array<i64: 2, 128>}, {transform_indices = @transform_6, window_bounds = array<i64: 3, 2, 128>}]} {
    %c0_i32 = arith.constant 0 : i32
    %0 = arith.cmpi eq, %arg1, %c0_i32 : i32
    %1 = arith.extui %0 : i1 to i32
    %c0_i32_0 = arith.constant 0 : i32
    %2 = arith.cmpi ne, %1, %c0_i32_0 : i32
    scf.if %2 {
      %c0_60 = arith.constant 0 : index
      %c0_61 = arith.constant 0 : index
      %128 = vector.load %arg6[%c0_60, %c0_61] : memref<2x128xf32, #tpu.memory_space<vmem>>, vector<2x128xf32>
      %c0_62 = arith.constant 0 : index
      %c0_63 = arith.constant 0 : index
      %129 = vector.load %arg9[%c0_62, %c0_63] : memref<2x128xf32, #tpu.memory_space<vmem>>, vector<2x128xf32>
      tpu.vector_store %arg9[%c0_62, %c0_63], %128 {strides = array<i32>} : memref<2x128xf32, #tpu.memory_space<vmem>>, vector<2x128xf32>,
      %c0_64 = arith.constant 0 : index
      %c0_65 = arith.constant 0 : index
      %130 = vector.load %arg7[%c0_64, %c0_65] : memref<2x128xf32, #tpu.memory_space<vmem>>, vector<2x128xf32>
      %c0_66 = arith.constant 0 : index
      %c0_67 = arith.constant 0 : index
      %131 = vector.load %arg10[%c0_66, %c0_67] : memref<2x128xf32, #tpu.memory_space<vmem>>, vector<2x128xf32>
      tpu.vector_store %arg10[%c0_66, %c0_67], %130 {strides = array<i32>} : memref<2x128xf32, #tpu.memory_space<vmem>>, vector<2x128xf32>,
    } else {
    }
    %c0 = arith.constant 0 : index
    %c0_1 = arith.constant 0 : index
    %3 = vector.load %arg3[%c0, %c0_1] : memref<128x512xbf16, #tpu.memory_space<vmem>>, vector<128x512xbf16>
    %c0_2 = arith.constant 0 : index
    %c0_3 = arith.constant 0 : index
    %4 = vector.load %arg4[%c0_2, %c0_3] : memref<128x512xbf16, #tpu.memory_space<vmem>>, vector<128x512xbf16>
    %c0_4 = arith.constant 0 : index
    %c0_5 = arith.constant 0 : index
    %5 = vector.load %arg5[%c0_4, %c0_5] : memref<1x512xf32, #tpu.memory_space<vmem>>, vector<1x512xf32>
    %6 = vector.shape_cast %5 : vector<1x512xf32> to vector<1x512xf32>
    %7 = vector.broadcast %6 : vector<1x512xf32> to vector<2x512xf32>
    %c0_6 = arith.constant 0 : index
    %c0_7 = arith.constant 0 : index
    %c0_8 = arith.constant 0 : index
    %8 = vector.load %arg2[%c0_6, %c0_7, %c0_8] : memref<3x2x128xbf16, #tpu.memory_space<vmem>>, vector<1x2x128xbf16>
    %9 = vector.shape_cast %8 : vector<1x2x128xbf16> to vector<2x128xbf16>
    %cst = arith.constant dense<0.000000e+00> : vector<2x512xf32>
    %10 = tpu.matmul %9, %3, %cst {dimension_numbers = #tpu.dot_dimension_numbers<[1], [0], [0], [1], [0, 0, 1, 1], [], []>} : vector<2x128xbf16>, vector<128x512xbf16>, vector<2x512xf32> -> vector<2x512xf32>
    %c0_9 = arith.constant 0 : index
    %c0_10 = arith.constant 0 : index
    %11 = vector.load %arg9[%c0_9, %c0_10] : memref<2x128xf32, #tpu.memory_space<vmem>>, vector<2x128xf32>
    %12 = arith.truncf %11 : vector<2x128xf32> to vector<2x128xbf16>
    %cst_11 = arith.constant dense<0.000000e+00> : vector<2x512xf32>
    %13 = tpu.matmul %12, %4, %cst_11 {dimension_numbers = #tpu.dot_dimension_numbers<[1], [0], [0], [1], [0, 0, 1, 1], [], []>} : vector<2x128xbf16>, vector<128x512xbf16>, vector<2x512xf32> -> vector<2x512xf32>
    %14 = arith.addf %10, %13 : vector<2x512xf32>
    %15 = arith.addf %14, %7 : vector<2x512xf32>
    %16 = vector.extract_strided_slice %15 {offsets = [0, 0], sizes = [2, 128], strides = [1, 1]} : vector<2x512xf32> to vector<2x128xf32>
    %17 = arith.negf %16 : vector<2x128xf32>
    %18 = math.exp %17 : vector<2x128xf32>
    %cst_12 = arith.constant 1.000000e+00 : f32
    %19 = vector.broadcast %cst_12 : f32 to vector<2x128xf32>
    %20 = arith.addf %19, %18 : vector<2x128xf32>
    %21 = arith.divf %19, %20 : vector<2x128xf32>
    %22 = vector.extract_strided_slice %15 {offsets = [0, 128], sizes = [2, 128], strides = [1, 1]} : vector<2x512xf32> to vector<2x128xf32>
    %23 = arith.negf %22 : vector<2x128xf32>
    %24 = math.exp %23 : vector<2x128xf32>
    %cst_13 = arith.constant 1.000000e+00 : f32
    %25 = vector.broadcast %cst_13 : f32 to vector<2x128xf32>
    %26 = arith.addf %25, %24 : vector<2x128xf32>
    %27 = arith.divf %25, %26 : vector<2x128xf32>
    %28 = vector.extract_strided_slice %15 {offsets = [0, 256], sizes = [2, 128], strides = [1, 1]} : vector<2x512xf32> to vector<2x128xf32>
    %29 = math.tanh %28 : vector<2x128xf32>
    %30 = vector.extract_strided_slice %15 {offsets = [0, 384], sizes = [2, 128], strides = [1, 1]} : vector<2x512xf32> to vector<2x128xf32>
    %31 = arith.negf %30 : vector<2x128xf32>
    %32 = math.exp %31 : vector<2x128xf32>
    %cst_14 = arith.constant 1.000000e+00 : f32
    %33 = vector.broadcast %cst_14 : f32 to vector<2x128xf32>
    %34 = arith.addf %33, %32 : vector<2x128xf32>
    %35 = arith.divf %33, %34 : vector<2x128xf32>
    %c0_15 = arith.constant 0 : index
    %c0_16 = arith.constant 0 : index
    %36 = vector.load %arg10[%c0_15, %c0_16] : memref<2x128xf32, #tpu.memory_space<vmem>>, vector<2x128xf32>
    %37 = arith.mulf %27, %36 : vector<2x128xf32>
    %38 = arith.mulf %21, %29 : vector<2x128xf32>
    %39 = arith.addf %37, %38 : vector<2x128xf32>
    %40 = math.tanh %39 : vector<2x128xf32>
    %41 = arith.mulf %35, %40 : vector<2x128xf32>
    %c0_17 = arith.constant 0 : index
    %c0_18 = arith.constant 0 : index
    %42 = vector.load %arg10[%c0_17, %c0_18] : memref<2x128xf32, #tpu.memory_space<vmem>>, vector<2x128xf32>
    tpu.vector_store %arg10[%c0_17, %c0_18], %39 {strides = array<i32>} : memref<2x128xf32, #tpu.memory_space<vmem>>, vector<2x128xf32>,
    %c0_19 = arith.constant 0 : index
    %c0_20 = arith.constant 0 : index
    %43 = vector.load %arg9[%c0_19, %c0_20] : memref<2x128xf32, #tpu.memory_space<vmem>>, vector<2x128xf32>
    tpu.vector_store %arg9[%c0_19, %c0_20], %41 {strides = array<i32>} : memref<2x128xf32, #tpu.memory_space<vmem>>, vector<2x128xf32>,
    %44 = arith.truncf %41 : vector<2x128xf32> to vector<2x128xbf16>
    %c0_21 = arith.constant 0 : index
    %c0_22 = arith.constant 0 : index
    %c0_23 = arith.constant 0 : index
    %45 = vector.load %arg8[%c0_21, %c0_22, %c0_23] : memref<3x2x128xbf16, #tpu.memory_space<vmem>>, vector<1x2x128xbf16>
    %46 = vector.shape_cast %45 : vector<1x2x128xbf16> to vector<2x128xbf16>
    %47 = vector.shape_cast %44 : vector<2x128xbf16> to vector<1x2x128xbf16>
    tpu.vector_store %arg8[%c0_21, %c0_22, %c0_23], %47 {strides = array<i32>} : memref<3x2x128xbf16, #tpu.memory_space<vmem>>, vector<1x2x128xbf16>,
    %c1 = arith.constant 1 : index
    %c0_24 = arith.constant 0 : index
    %c0_25 = arith.constant 0 : index
    %48 = vector.load %arg2[%c1, %c0_24, %c0_25] : memref<3x2x128xbf16, #tpu.memory_space<vmem>>, vector<1x2x128xbf16>
    %49 = vector.shape_cast %48 : vector<1x2x128xbf16> to vector<2x128xbf16>
    %cst_26 = arith.constant dense<0.000000e+00> : vector<2x512xf32>
    %50 = tpu.matmul %49, %3, %cst_26 {dimension_numbers = #tpu.dot_dimension_numbers<[1], [0], [0], [1], [0, 0, 1, 1], [], []>} : vector<2x128xbf16>, vector<128x512xbf16>, vector<2x512xf32> -> vector<2x512xf32>
    %c0_27 = arith.constant 0 : index
    %c0_28 = arith.constant 0 : index
    %51 = vector.load %arg9[%c0_27, %c0_28] : memref<2x128xf32, #tpu.memory_space<vmem>>, vector<2x128xf32>
    %52 = arith.truncf %51 : vector<2x128xf32> to vector<2x128xbf16>
    %cst_29 = arith.constant dense<0.000000e+00> : vector<2x512xf32>
    %53 = tpu.matmul %52, %4, %cst_29 {dimension_numbers = #tpu.dot_dimension_numbers<[1], [0], [0], [1], [0, 0, 1, 1], [], []>} : vector<2x128xbf16>, vector<128x512xbf16>, vector<2x512xf32> -> vector<2x512xf32>
    %54 = arith.addf %50, %53 : vector<2x512xf32>
    %55 = arith.addf %54, %7 : vector<2x512xf32>
    %56 = vector.extract_strided_slice %55 {offsets = [0, 0], sizes = [2, 128], strides = [1, 1]} : vector<2x512xf32> to vector<2x128xf32>
    %57 = arith.negf %56 : vector<2x128xf32>
    %58 = math.exp %57 : vector<2x128xf32>
    %cst_30 = arith.constant 1.000000e+00 : f32
    %59 = vector.broadcast %cst_30 : f32 to vector<2x128xf32>
    %60 = arith.addf %59, %58 : vector<2x128xf32>
    %61 = arith.divf %59, %60 : vector<2x128xf32>
    %62 = vector.extract_strided_slice %55 {offsets = [0, 128], sizes = [2, 128], strides = [1, 1]} : vector<2x512xf32> to vector<2x128xf32>
    %63 = arith.negf %62 : vector<2x128xf32>
    %64 = math.exp %63 : vector<2x128xf32>
    %cst_31 = arith.constant 1.000000e+00 : f32
    %65 = vector.broadcast %cst_31 : f32 to vector<2x128xf32>
    %66 = arith.addf %65, %64 : vector<2x128xf32>
    %67 = arith.divf %65, %66 : vector<2x128xf32>
    %68 = vector.extract_strided_slice %55 {offsets = [0, 256], sizes = [2, 128], strides = [1, 1]} : vector<2x512xf32> to vector<2x128xf32>
    %69 = math.tanh %68 : vector<2x128xf32>
    %70 = vector.extract_strided_slice %55 {offsets = [0, 384], sizes = [2, 128], strides = [1, 1]} : vector<2x512xf32> to vector<2x128xf32>
    %71 = arith.negf %70 : vector<2x128xf32>
    %72 = math.exp %71 : vector<2x128xf32>
    %cst_32 = arith.constant 1.000000e+00 : f32
    %73 = vector.broadcast %cst_32 : f32 to vector<2x128xf32>
    %74 = arith.addf %73, %72 : vector<2x128xf32>
    %75 = arith.divf %73, %74 : vector<2x128xf32>
    %c0_33 = arith.constant 0 : index
    %c0_34 = arith.constant 0 : index
    %76 = vector.load %arg10[%c0_33, %c0_34] : memref<2x128xf32, #tpu.memory_space<vmem>>, vector<2x128xf32>
    %77 = arith.mulf %67, %76 : vector<2x128xf32>
    %78 = arith.mulf %61, %69 : vector<2x128xf32>
    %79 = arith.addf %77, %78 : vector<2x128xf32>
    %80 = math.tanh %79 : vector<2x128xf32>
    %81 = arith.mulf %75, %80 : vector<2x128xf32>
    %c0_35 = arith.constant 0 : index
    %c0_36 = arith.constant 0 : index
    %82 = vector.load %arg10[%c0_35, %c0_36] : memref<2x128xf32, #tpu.memory_space<vmem>>, vector<2x128xf32>
    tpu.vector_store %arg10[%c0_35, %c0_36], %79 {strides = array<i32>} : memref<2x128xf32, #tpu.memory_space<vmem>>, vector<2x128xf32>,
    %c0_37 = arith.constant 0 : index
    %c0_38 = arith.constant 0 : index
    %83 = vector.load %arg9[%c0_37, %c0_38] : memref<2x128xf32, #tpu.memory_space<vmem>>, vector<2x128xf32>
    tpu.vector_store %arg9[%c0_37, %c0_38], %81 {strides = array<i32>} : memref<2x128xf32, #tpu.memory_space<vmem>>, vector<2x128xf32>,
    %84 = arith.truncf %81 : vector<2x128xf32> to vector<2x128xbf16>
    %c1_39 = arith.constant 1 : index
    %c0_40 = arith.constant 0 : index
    %c0_41 = arith.constant 0 : index
    %85 = vector.load %arg8[%c1_39, %c0_40, %c0_41] : memref<3x2x128xbf16, #tpu.memory_space<vmem>>, vector<1x2x128xbf16>
    %86 = vector.shape_cast %85 : vector<1x2x128xbf16> to vector<2x128xbf16>
    %87 = vector.shape_cast %84 : vector<2x128xbf16> to vector<1x2x128xbf16>
    tpu.vector_store %arg8[%c1_39, %c0_40, %c0_41], %87 {strides = array<i32>} : memref<3x2x128xbf16, #tpu.memory_space<vmem>>, vector<1x2x128xbf16>,
    %c2 = arith.constant 2 : index
    %c0_42 = arith.constant 0 : index
    %c0_43 = arith.constant 0 : index
    %88 = vector.load %arg2[%c2, %c0_42, %c0_43] : memref<3x2x128xbf16, #tpu.memory_space<vmem>>, vector<1x2x128xbf16>
    %89 = vector.shape_cast %88 : vector<1x2x128xbf16> to vector<2x128xbf16>
    %cst_44 = arith.constant dense<0.000000e+00> : vector<2x512xf32>
    %90 = tpu.matmul %89, %3, %cst_44 {dimension_numbers = #tpu.dot_dimension_numbers<[1], [0], [0], [1], [0, 0, 1, 1], [], []>} : vector<2x128xbf16>, vector<128x512xbf16>, vector<2x512xf32> -> vector<2x512xf32>
    %c0_45 = arith.constant 0 : index
    %c0_46 = arith.constant 0 : index
    %91 = vector.load %arg9[%c0_45, %c0_46] : memref<2x128xf32, #tpu.memory_space<vmem>>, vector<2x128xf32>
    %92 = arith.truncf %91 : vector<2x128xf32> to vector<2x128xbf16>
    %cst_47 = arith.constant dense<0.000000e+00> : vector<2x512xf32>
    %93 = tpu.matmul %92, %4, %cst_47 {dimension_numbers = #tpu.dot_dimension_numbers<[1], [0], [0], [1], [0, 0, 1, 1], [], []>} : vector<2x128xbf16>, vector<128x512xbf16>, vector<2x512xf32> -> vector<2x512xf32>
    %94 = arith.addf %90, %93 : vector<2x512xf32>
    %95 = arith.addf %94, %7 : vector<2x512xf32>
    %96 = vector.extract_strided_slice %95 {offsets = [0, 0], sizes = [2, 128], strides = [1, 1]} : vector<2x512xf32> to vector<2x128xf32>
    %97 = arith.negf %96 : vector<2x128xf32>
    %98 = math.exp %97 : vector<2x128xf32>
    %cst_48 = arith.constant 1.000000e+00 : f32
    %99 = vector.broadcast %cst_48 : f32 to vector<2x128xf32>
    %100 = arith.addf %99, %98 : vector<2x128xf32>
    %101 = arith.divf %99, %100 : vector<2x128xf32>
    %102 = vector.extract_strided_slice %95 {offsets = [0, 128], sizes = [2, 128], strides = [1, 1]} : vector<2x512xf32> to vector<2x128xf32>
    %103 = arith.negf %102 : vector<2x128xf32>
    %104 = math.exp %103 : vector<2x128xf32>
    %cst_49 = arith.constant 1.000000e+00 : f32
    %105 = vector.broadcast %cst_49 : f32 to vector<2x128xf32>
    %106 = arith.addf %105, %104 : vector<2x128xf32>
    %107 = arith.divf %105, %106 : vector<2x128xf32>
    %108 = vector.extract_strided_slice %95 {offsets = [0, 256], sizes = [2, 128], strides = [1, 1]} : vector<2x512xf32> to vector<2x128xf32>
    %109 = math.tanh %108 : vector<2x128xf32>
    %110 = vector.extract_strided_slice %95 {offsets = [0, 384], sizes = [2, 128], strides = [1, 1]} : vector<2x512xf32> to vector<2x128xf32>
    %111 = arith.negf %110 : vector<2x128xf32>
    %112 = math.exp %111 : vector<2x128xf32>
    %cst_50 = arith.constant 1.000000e+00 : f32
    %113 = vector.broadcast %cst_50 : f32 to vector<2x128xf32>
    %114 = arith.addf %113, %112 : vector<2x128xf32>
    %115 = arith.divf %113, %114 : vector<2x128xf32>
    %c0_51 = arith.constant 0 : index
    %c0_52 = arith.constant 0 : index
    %116 = vector.load %arg10[%c0_51, %c0_52] : memref<2x128xf32, #tpu.memory_space<vmem>>, vector<2x128xf32>
    %117 = arith.mulf %107, %116 : vector<2x128xf32>
    %118 = arith.mulf %101, %109 : vector<2x128xf32>
    %119 = arith.addf %117, %118 : vector<2x128xf32>
    %120 = math.tanh %119 : vector<2x128xf32>
    %121 = arith.mulf %115, %120 : vector<2x128xf32>
    %c0_53 = arith.constant 0 : index
    %c0_54 = arith.constant 0 : index
    %122 = vector.load %arg10[%c0_53, %c0_54] : memref<2x128xf32, #tpu.memory_space<vmem>>, vector<2x128xf32>
    tpu.vector_store %arg10[%c0_53, %c0_54], %119 {strides = array<i32>} : memref<2x128xf32, #tpu.memory_space<vmem>>, vector<2x128xf32>,
    %c0_55 = arith.constant 0 : index
    %c0_56 = arith.constant 0 : index
    %123 = vector.load %arg9[%c0_55, %c0_56] : memref<2x128xf32, #tpu.memory_space<vmem>>, vector<2x128xf32>
    tpu.vector_store %arg9[%c0_55, %c0_56], %121 {strides = array<i32>} : memref<2x128xf32, #tpu.memory_space<vmem>>, vector<2x128xf32>,
    %124 = arith.truncf %121 : vector<2x128xf32> to vector<2x128xbf16>
    %c2_57 = arith.constant 2 : index
    %c0_58 = arith.constant 0 : index
    %c0_59 = arith.constant 0 : index
    %125 = vector.load %arg8[%c2_57, %c0_58, %c0_59] : memref<3x2x128xbf16, #tpu.memory_space<vmem>>, vector<1x2x128xbf16>
    %126 = vector.shape_cast %125 : vector<1x2x128xbf16> to vector<2x128xbf16>
    %127 = vector.shape_cast %124 : vector<2x128xbf16> to vector<1x2x128xbf16>
    tpu.vector_store %arg8[%c2_57, %c0_58, %c0_59], %127 {strides = array<i32>} : memref<3x2x128xbf16, #tpu.memory_space<vmem>>, vector<1x2x128xbf16>,
    return
  }
  func.func @transform_0(%arg0: i32, %arg1: i32) -> (i32, i32, i32) {
    %c0_i32 = arith.constant 0 : i32
    %c0_i32_0 = arith.constant 0 : i32
    return %arg1, %arg0, %c0_i32 : i32, i32, i32
  }
  func.func @transform_1(%arg0: i32, %arg1: i32) -> (i32, i32) {
    %c0_i32 = arith.constant 0 : i32
    %c0_i32_0 = arith.constant 0 : i32
    %c0_i32_1 = arith.constant 0 : i32
    return %c0_i32, %c0_i32_0 : i32, i32
  }
  func.func @transform_2(%arg0: i32, %arg1: i32) -> (i32, i32) {
    %c0_i32 = arith.constant 0 : i32
    %c0_i32_0 = arith.constant 0 : i32
    %c0_i32_1 = arith.constant 0 : i32
    return %c0_i32, %c0_i32_0 : i32, i32
  }
  func.func @transform_3(%arg0: i32, %arg1: i32) -> (i32, i32) {
    %c0_i32 = arith.constant 0 : i32
    %c0_i32_0 = arith.constant 0 : i32
    %c0_i32_1 = arith.constant 0 : i32
    return %c0_i32, %c0_i32_0 : i32, i32
  }
  func.func @transform_4(%arg0: i32, %arg1: i32) -> (i32, i32) {
    %c0_i32 = arith.constant 0 : i32
    %c0_i32_0 = arith.constant 0 : i32
    return %arg0, %c0_i32 : i32, i32
  }
  func.func @transform_5(%arg0: i32, %arg1: i32) -> (i32, i32) {
    %c0_i32 = arith.constant 0 : i32
    %c0_i32_0 = arith.constant 0 : i32
    return %arg0, %c0_i32 : i32, i32
  }
  func.func @transform_6(%arg0: i32, %arg1: i32) -> (i32, i32, i32) {
    %c0_i32 = arith.constant 0 : i32
    %c0_i32_0 = arith.constant 0 : i32
    return %arg1, %arg0, %c0_i32 : i32, i32, i32
  }
}

module attributes {stable_mosaic.version = 11 : i64} {
  func.func @_lstm_chunk_kernel(%arg0: i32, %arg1: i32, %arg2: memref<3x2x128xbf16, #tpu.memory_space<vmem>>, %arg3: memref<128x512xbf16, #tpu.memory_space<vmem>>, %arg4: memref<128x512xbf16, #tpu.memory_space<vmem>>, %arg5: memref<1x512xf32, #tpu.memory_space<vmem>>, %arg6: memref<2x128xf32, #tpu.memory_space<vmem>>, %arg7: memref<2x128xf32, #tpu.memory_space<vmem>>, %arg8: memref<3x2x128xbf16, #tpu.memory_space<vmem>>, %arg9: memref<2x128xf32, #tpu.memory_space<vmem>>, %arg10: memref<2x128xf32, #tpu.memory_space<vmem>>) attributes {dimension_semantics = [#tpu.dimension_semantics<parallel>, #tpu.dimension_semantics<arbitrary>], iteration_bounds = array<i64: 1, 3>, scalar_prefetch = 0 : i64, scratch_operands = 2 : i64, tpu.core_type = #tpu.core_type<tc>, window_params = [{transform_indices = @transform_0, window_bounds = array<i64: 3, 2, 128>}, {pipeline_mode = #tpu.pipeline_mode<synchronous>, transform_indices = @transform_1, window_bounds = array<i64: 128, 512>}, {pipeline_mode = #tpu.pipeline_mode<synchronous>, transform_indices = @transform_2, window_bounds = array<i64: 128, 512>}, {pipeline_mode = #tpu.pipeline_mode<synchronous>, transform_indices = @transform_3, window_bounds = array<i64: 1, 512>}, {transform_indices = @transform_4, window_bounds = array<i64: 2, 128>}, {transform_indices = @transform_5, window_bounds = array<i64: 2, 128>}, {transform_indices = @transform_6, window_bounds = array<i64: 3, 2, 128>}]} {
    %c0_i32 = arith.constant 0 : i32
    %0 = arith.cmpi eq, %arg1, %c0_i32 : i32
    %1 = arith.extui %0 : i1 to i32
    %c0_i32_0 = arith.constant 0 : i32
    %2 = arith.cmpi ne, %1, %c0_i32_0 : i32
    scf.if %2 {
      %c0_60 = arith.constant 0 : index
      %c0_61 = arith.constant 0 : index
      %128 = vector.load %arg6[%c0_60, %c0_61] : memref<2x128xf32, #tpu.memory_space<vmem>>, vector<2x128xf32>
      %c0_62 = arith.constant 0 : index
      %c0_63 = arith.constant 0 : index
      %129 = vector.load %arg9[%c0_62, %c0_63] : memref<2x128xf32, #tpu.memory_space<vmem>>, vector<2x128xf32>
      tpu.vector_store %arg9[%c0_62, %c0_63], %128 {strides = array<i32>} : memref<2x128xf32, #tpu.memory_space<vmem>>, vector<2x128xf32>,
      %c0_64 = arith.constant 0 : index
      %c0_65 = arith.constant 0 : index
      %130 = vector.load %arg7[%c0_64, %c0_65] : memref<2x128xf32, #tpu.memory_space<vmem>>, vector<2x128xf32>
      %c0_66 = arith.constant 0 : index
      %c0_67 = arith.constant 0 : index
      %131 = vector.load %arg10[%c0_66, %c0_67] : memref<2x128xf32, #tpu.memory_space<vmem>>, vector<2x128xf32>
      tpu.vector_store %arg10[%c0_66, %c0_67], %130 {strides = array<i32>} : memref<2x128xf32, #tpu.memory_space<vmem>>, vector<2x128xf32>,
    } else {
    }
    %c0 = arith.constant 0 : index
    %c0_1 = arith.constant 0 : index
    %3 = vector.load %arg3[%c0, %c0_1] : memref<128x512xbf16, #tpu.memory_space<vmem>>, vector<128x512xbf16>
    %c0_2 = arith.constant 0 : index
    %c0_3 = arith.constant 0 : index
    %4 = vector.load %arg4[%c0_2, %c0_3] : memref<128x512xbf16, #tpu.memory_space<vmem>>, vector<128x512xbf16>
    %c0_4 = arith.constant 0 : index
    %c0_5 = arith.constant 0 : index
    %5 = vector.load %arg5[%c0_4, %c0_5] : memref<1x512xf32, #tpu.memory_space<vmem>>, vector<1x512xf32>
    %6 = vector.shape_cast %5 : vector<1x512xf32> to vector<1x512xf32>
    %7 = vector.broadcast %6 : vector<1x512xf32> to vector<2x512xf32>
    %c0_6 = arith.constant 0 : index
    %c0_7 = arith.constant 0 : index
    %c0_8 = arith.constant 0 : index
    %8 = vector.load %arg2[%c0_6, %c0_7, %c0_8] : memref<3x2x128xbf16, #tpu.memory_space<vmem>>, vector<1x2x128xbf16>
    %9 = vector.shape_cast %8 : vector<1x2x128xbf16> to vector<2x128xbf16>
    %cst = arith.constant dense<0.000000e+00> : vector<2x512xf32>
    %10 = tpu.matmul %9, %3, %cst {dimension_numbers = #tpu.dot_dimension_numbers<[1], [0], [0], [1], [0, 0, 1, 1], [], []>} : vector<2x128xbf16>, vector<128x512xbf16>, vector<2x512xf32> -> vector<2x512xf32>
    %c0_9 = arith.constant 0 : index
    %c0_10 = arith.constant 0 : index
    %11 = vector.load %arg9[%c0_9, %c0_10] : memref<2x128xf32, #tpu.memory_space<vmem>>, vector<2x128xf32>
    %12 = arith.truncf %11 : vector<2x128xf32> to vector<2x128xbf16>
    %cst_11 = arith.constant dense<0.000000e+00> : vector<2x512xf32>
    %13 = tpu.matmul %12, %4, %cst_11 {dimension_numbers = #tpu.dot_dimension_numbers<[1], [0], [0], [1], [0, 0, 1, 1], [], []>} : vector<2x128xbf16>, vector<128x512xbf16>, vector<2x512xf32> -> vector<2x512xf32>
    %14 = arith.addf %10, %13 : vector<2x512xf32>
    %15 = arith.addf %14, %7 : vector<2x512xf32>
    %16 = vector.extract_strided_slice %15 {offsets = [0, 0], sizes = [2, 128], strides = [1, 1]} : vector<2x512xf32> to vector<2x128xf32>
    %17 = arith.negf %16 : vector<2x128xf32>
    %18 = math.exp %17 : vector<2x128xf32>
    %cst_12 = arith.constant 1.000000e+00 : f32
    %19 = vector.broadcast %cst_12 : f32 to vector<2x128xf32>
    %20 = arith.addf %19, %18 : vector<2x128xf32>
    %21 = arith.divf %19, %20 : vector<2x128xf32>
    %22 = vector.extract_strided_slice %15 {offsets = [0, 128], sizes = [2, 128], strides = [1, 1]} : vector<2x512xf32> to vector<2x128xf32>
    %23 = arith.negf %22 : vector<2x128xf32>
    %24 = math.exp %23 : vector<2x128xf32>
    %cst_13 = arith.constant 1.000000e+00 : f32
    %25 = vector.broadcast %cst_13 : f32 to vector<2x128xf32>
    %26 = arith.addf %25, %24 : vector<2x128xf32>
    %27 = arith.divf %25, %26 : vector<2x128xf32>
    %28 = vector.extract_strided_slice %15 {offsets = [0, 256], sizes = [2, 128], strides = [1, 1]} : vector<2x512xf32> to vector<2x128xf32>
    %29 = math.tanh %28 : vector<2x128xf32>
    %30 = vector.extract_strided_slice %15 {offsets = [0, 384], sizes = [2, 128], strides = [1, 1]} : vector<2x512xf32> to vector<2x128xf32>
    %31 = arith.negf %30 : vector<2x128xf32>
    %32 = math.exp %31 : vector<2x128xf32>
    %cst_14 = arith.constant 1.000000e+00 : f32
    %33 = vector.broadcast %cst_14 : f32 to vector<2x128xf32>
    %34 = arith.addf %33, %32 : vector<2x128xf32>
    %35 = arith.divf %33, %34 : vector<2x128xf32>
    %c0_15 = arith.constant 0 : index
    %c0_16 = arith.constant 0 : index
    %36 = vector.load %arg10[%c0_15, %c0_16] : memref<2x128xf32, #tpu.memory_space<vmem>>, vector<2x128xf32>
    %37 = arith.mulf %27, %36 : vector<2x128xf32>
    %38 = arith.mulf %21, %29 : vector<2x128xf32>
    %39 = arith.addf %37, %38 : vector<2x128xf32>
    %40 = math.tanh %39 : vector<2x128xf32>
    %41 = arith.mulf %35, %40 : vector<2x128xf32>
    %c0_17 = arith.constant 0 : index
    %c0_18 = arith.constant 0 : index
    %42 = vector.load %arg10[%c0_17, %c0_18] : memref<2x128xf32, #tpu.memory_space<vmem>>, vector<2x128xf32>
    tpu.vector_store %arg10[%c0_17, %c0_18], %39 {strides = array<i32>} : memref<2x128xf32, #tpu.memory_space<vmem>>, vector<2x128xf32>,
    %c0_19 = arith.constant 0 : index
    %c0_20 = arith.constant 0 : index
    %43 = vector.load %arg9[%c0_19, %c0_20] : memref<2x128xf32, #tpu.memory_space<vmem>>, vector<2x128xf32>
    tpu.vector_store %arg9[%c0_19, %c0_20], %41 {strides = array<i32>} : memref<2x128xf32, #tpu.memory_space<vmem>>, vector<2x128xf32>,
    %44 = arith.truncf %41 : vector<2x128xf32> to vector<2x128xbf16>
    %c0_21 = arith.constant 0 : index
    %c0_22 = arith.constant 0 : index
    %c0_23 = arith.constant 0 : index
    %45 = vector.load %arg8[%c0_21, %c0_22, %c0_23] : memref<3x2x128xbf16, #tpu.memory_space<vmem>>, vector<1x2x128xbf16>
    %46 = vector.shape_cast %45 : vector<1x2x128xbf16> to vector<2x128xbf16>
    %47 = vector.shape_cast %44 : vector<2x128xbf16> to vector<1x2x128xbf16>
    tpu.vector_store %arg8[%c0_21, %c0_22, %c0_23], %47 {strides = array<i32>} : memref<3x2x128xbf16, #tpu.memory_space<vmem>>, vector<1x2x128xbf16>,
    %c1 = arith.constant 1 : index
    %c0_24 = arith.constant 0 : index
    %c0_25 = arith.constant 0 : index
    %48 = vector.load %arg2[%c1, %c0_24, %c0_25] : memref<3x2x128xbf16, #tpu.memory_space<vmem>>, vector<1x2x128xbf16>
    %49 = vector.shape_cast %48 : vector<1x2x128xbf16> to vector<2x128xbf16>
    %cst_26 = arith.constant dense<0.000000e+00> : vector<2x512xf32>
    %50 = tpu.matmul %49, %3, %cst_26 {dimension_numbers = #tpu.dot_dimension_numbers<[1], [0], [0], [1], [0, 0, 1, 1], [], []>} : vector<2x128xbf16>, vector<128x512xbf16>, vector<2x512xf32> -> vector<2x512xf32>
    %c0_27 = arith.constant 0 : index
    %c0_28 = arith.constant 0 : index
    %51 = vector.load %arg9[%c0_27, %c0_28] : memref<2x128xf32, #tpu.memory_space<vmem>>, vector<2x128xf32>
    %52 = arith.truncf %51 : vector<2x128xf32> to vector<2x128xbf16>
    %cst_29 = arith.constant dense<0.000000e+00> : vector<2x512xf32>
    %53 = tpu.matmul %52, %4, %cst_29 {dimension_numbers = #tpu.dot_dimension_numbers<[1], [0], [0], [1], [0, 0, 1, 1], [], []>} : vector<2x128xbf16>, vector<128x512xbf16>, vector<2x512xf32> -> vector<2x512xf32>
    %54 = arith.addf %50, %53 : vector<2x512xf32>
    %55 = arith.addf %54, %7 : vector<2x512xf32>
    %56 = vector.extract_strided_slice %55 {offsets = [0, 0], sizes = [2, 128], strides = [1, 1]} : vector<2x512xf32> to vector<2x128xf32>
    %57 = arith.negf %56 : vector<2x128xf32>
    %58 = math.exp %57 : vector<2x128xf32>
    %cst_30 = arith.constant 1.000000e+00 : f32
    %59 = vector.broadcast %cst_30 : f32 to vector<2x128xf32>
    %60 = arith.addf %59, %58 : vector<2x128xf32>
    %61 = arith.divf %59, %60 : vector<2x128xf32>
    %62 = vector.extract_strided_slice %55 {offsets = [0, 128], sizes = [2, 128], strides = [1, 1]} : vector<2x512xf32> to vector<2x128xf32>
    %63 = arith.negf %62 : vector<2x128xf32>
    %64 = math.exp %63 : vector<2x128xf32>
    %cst_31 = arith.constant 1.000000e+00 : f32
    %65 = vector.broadcast %cst_31 : f32 to vector<2x128xf32>
    %66 = arith.addf %65, %64 : vector<2x128xf32>
    %67 = arith.divf %65, %66 : vector<2x128xf32>
    %68 = vector.extract_strided_slice %55 {offsets = [0, 256], sizes = [2, 128], strides = [1, 1]} : vector<2x512xf32> to vector<2x128xf32>
    %69 = math.tanh %68 : vector<2x128xf32>
    %70 = vector.extract_strided_slice %55 {offsets = [0, 384], sizes = [2, 128], strides = [1, 1]} : vector<2x512xf32> to vector<2x128xf32>
    %71 = arith.negf %70 : vector<2x128xf32>
    %72 = math.exp %71 : vector<2x128xf32>
    %cst_32 = arith.constant 1.000000e+00 : f32
    %73 = vector.broadcast %cst_32 : f32 to vector<2x128xf32>
    %74 = arith.addf %73, %72 : vector<2x128xf32>
    %75 = arith.divf %73, %74 : vector<2x128xf32>
    %c0_33 = arith.constant 0 : index
    %c0_34 = arith.constant 0 : index
    %76 = vector.load %arg10[%c0_33, %c0_34] : memref<2x128xf32, #tpu.memory_space<vmem>>, vector<2x128xf32>
    %77 = arith.mulf %67, %76 : vector<2x128xf32>
    %78 = arith.mulf %61, %69 : vector<2x128xf32>
    %79 = arith.addf %77, %78 : vector<2x128xf32>
    %80 = math.tanh %79 : vector<2x128xf32>
    %81 = arith.mulf %75, %80 : vector<2x128xf32>
    %c0_35 = arith.constant 0 : index
    %c0_36 = arith.constant 0 : index
    %82 = vector.load %arg10[%c0_35, %c0_36] : memref<2x128xf32, #tpu.memory_space<vmem>>, vector<2x128xf32>
    tpu.vector_store %arg10[%c0_35, %c0_36], %79 {strides = array<i32>} : memref<2x128xf32, #tpu.memory_space<vmem>>, vector<2x128xf32>,
    %c0_37 = arith.constant 0 : index
    %c0_38 = arith.constant 0 : index
    %83 = vector.load %arg9[%c0_37, %c0_38] : memref<2x128xf32, #tpu.memory_space<vmem>>, vector<2x128xf32>
    tpu.vector_store %arg9[%c0_37, %c0_38], %81 {strides = array<i32>} : memref<2x128xf32, #tpu.memory_space<vmem>>, vector<2x128xf32>,
    %84 = arith.truncf %81 : vector<2x128xf32> to vector<2x128xbf16>
    %c1_39 = arith.constant 1 : index
    %c0_40 = arith.constant 0 : index
    %c0_41 = arith.constant 0 : index
    %85 = vector.load %arg8[%c1_39, %c0_40, %c0_41] : memref<3x2x128xbf16, #tpu.memory_space<vmem>>, vector<1x2x128xbf16>
    %86 = vector.shape_cast %85 : vector<1x2x128xbf16> to vector<2x128xbf16>
    %87 = vector.shape_cast %84 : vector<2x128xbf16> to vector<1x2x128xbf16>
    tpu.vector_store %arg8[%c1_39, %c0_40, %c0_41], %87 {strides = array<i32>} : memref<3x2x128xbf16, #tpu.memory_space<vmem>>, vector<1x2x128xbf16>,
    %c2 = arith.constant 2 : index
    %c0_42 = arith.constant 0 : index
    %c0_43 = arith.constant 0 : index
    %88 = vector.load %arg2[%c2, %c0_42, %c0_43] : memref<3x2x128xbf16, #tpu.memory_space<vmem>>, vector<1x2x128xbf16>
    %89 = vector.shape_cast %88 : vector<1x2x128xbf16> to vector<2x128xbf16>
    %cst_44 = arith.constant dense<0.000000e+00> : vector<2x512xf32>
    %90 = tpu.matmul %89, %3, %cst_44 {dimension_numbers = #tpu.dot_dimension_numbers<[1], [0], [0], [1], [0, 0, 1, 1], [], []>} : vector<2x128xbf16>, vector<128x512xbf16>, vector<2x512xf32> -> vector<2x512xf32>
    %c0_45 = arith.constant 0 : index
    %c0_46 = arith.constant 0 : index
    %91 = vector.load %arg9[%c0_45, %c0_46] : memref<2x128xf32, #tpu.memory_space<vmem>>, vector<2x128xf32>
    %92 = arith.truncf %91 : vector<2x128xf32> to vector<2x128xbf16>
    %cst_47 = arith.constant dense<0.000000e+00> : vector<2x512xf32>
    %93 = tpu.matmul %92, %4, %cst_47 {dimension_numbers = #tpu.dot_dimension_numbers<[1], [0], [0], [1], [0, 0, 1, 1], [], []>} : vector<2x128xbf16>, vector<128x512xbf16>, vector<2x512xf32> -> vector<2x512xf32>
    %94 = arith.addf %90, %93 : vector<2x512xf32>
    %95 = arith.addf %94, %7 : vector<2x512xf32>
    %96 = vector.extract_strided_slice %95 {offsets = [0, 0], sizes = [2, 128], strides = [1, 1]} : vector<2x512xf32> to vector<2x128xf32>
    %97 = arith.negf %96 : vector<2x128xf32>
    %98 = math.exp %97 : vector<2x128xf32>
    %cst_48 = arith.constant 1.000000e+00 : f32
    %99 = vector.broadcast %cst_48 : f32 to vector<2x128xf32>
    %100 = arith.addf %99, %98 : vector<2x128xf32>
    %101 = arith.divf %99, %100 : vector<2x128xf32>
    %102 = vector.extract_strided_slice %95 {offsets = [0, 128], sizes = [2, 128], strides = [1, 1]} : vector<2x512xf32> to vector<2x128xf32>
    %103 = arith.negf %102 : vector<2x128xf32>
    %104 = math.exp %103 : vector<2x128xf32>
    %cst_49 = arith.constant 1.000000e+00 : f32
    %105 = vector.broadcast %cst_49 : f32 to vector<2x128xf32>
    %106 = arith.addf %105, %104 : vector<2x128xf32>
    %107 = arith.divf %105, %106 : vector<2x128xf32>
    %108 = vector.extract_strided_slice %95 {offsets = [0, 256], sizes = [2, 128], strides = [1, 1]} : vector<2x512xf32> to vector<2x128xf32>
    %109 = math.tanh %108 : vector<2x128xf32>
    %110 = vector.extract_strided_slice %95 {offsets = [0, 384], sizes = [2, 128], strides = [1, 1]} : vector<2x512xf32> to vector<2x128xf32>
    %111 = arith.negf %110 : vector<2x128xf32>
    %112 = math.exp %111 : vector<2x128xf32>
    %cst_50 = arith.constant 1.000000e+00 : f32
    %113 = vector.broadcast %cst_50 : f32 to vector<2x128xf32>
    %114 = arith.addf %113, %112 : vector<2x128xf32>
    %115 = arith.divf %113, %114 : vector<2x128xf32>
    %c0_51 = arith.constant 0 : index
    %c0_52 = arith.constant 0 : index
    %116 = vector.load %arg10[%c0_51, %c0_52] : memref<2x128xf32, #tpu.memory_space<vmem>>, vector<2x128xf32>
    %117 = arith.mulf %107, %116 : vector<2x128xf32>
    %118 = arith.mulf %101, %109 : vector<2x128xf32>
    %119 = arith.addf %117, %118 : vector<2x128xf32>
    %120 = math.tanh %119 : vector<2x128xf32>
    %121 = arith.mulf %115, %120 : vector<2x128xf32>
    %c0_53 = arith.constant 0 : index
    %c0_54 = arith.constant 0 : index
    %122 = vector.load %arg10[%c0_53, %c0_54] : memref<2x128xf32, #tpu.memory_space<vmem>>, vector<2x128xf32>
    tpu.vector_store %arg10[%c0_53, %c0_54], %119 {strides = array<i32>} : memref<2x128xf32, #tpu.memory_space<vmem>>, vector<2x128xf32>,
    %c0_55 = arith.constant 0 : index
    %c0_56 = arith.constant 0 : index
    %123 = vector.load %arg9[%c0_55, %c0_56] : memref<2x128xf32, #tpu.memory_space<vmem>>, vector<2x128xf32>
    tpu.vector_store %arg9[%c0_55, %c0_56], %121 {strides = array<i32>} : memref<2x128xf32, #tpu.memory_space<vmem>>, vector<2x128xf32>,
    %124 = arith.truncf %121 : vector<2x128xf32> to vector<2x128xbf16>
    %c2_57 = arith.constant 2 : index
    %c0_58 = arith.constant 0 : index
    %c0_59 = arith.constant 0 : index
    %125 = vector.load %arg8[%c2_57, %c0_58, %c0_59] : memref<3x2x128xbf16, #tpu.memory_space<vmem>>, vector<1x2x128xbf16>
    %126 = vector.shape_cast %125 : vector<1x2x128xbf16> to vector<2x128xbf16>
    %127 = vector.shape_cast %124 : vector<2x128xbf16> to vector<1x2x128xbf16>
    tpu.vector_store %arg8[%c2_57, %c0_58, %c0_59], %127 {strides = array<i32>} : memref<3x2x128xbf16, #tpu.memory_space<vmem>>, vector<1x2x128xbf16>,
    return
  }
  func.func @transform_0(%arg0: i32, %arg1: i32) -> (i32, i32, i32) {
    %c0_i32 = arith.constant 0 : i32
    %c0_i32_0 = arith.constant 0 : i32
    return %arg1, %arg0, %c0_i32 : i32, i32, i32
  }
  func.func @transform_1(%arg0: i32, %arg1: i32) -> (i32, i32) {
    %c0_i32 = arith.constant 0 : i32
    %c0_i32_0 = arith.constant 0 : i32
    %c0_i32_1 = arith.constant 0 : i32
    return %c0_i32, %c0_i32_0 : i32, i32
  }
  func.func @transform_2(%arg0: i32, %arg1: i32) -> (i32, i32) {
    %c0_i32 = arith.constant 0 : i32
    %c0_i32_0 = arith.constant 0 : i32
    %c0_i32_1 = arith.constant 0 : i32
    return %c0_i32, %c0_i32_0 : i32, i32
  }
  func.func @transform_3(%arg0: i32, %arg1: i32) -> (i32, i32) {
    %c0_i32 = arith.constant 0 : i32
    %c0_i32_0 = arith.constant 0 : i32
    %c0_i32_1 = arith.constant 0 : i32
    return %c0_i32, %c0_i32_0 : i32, i32
  }
  func.func @transform_4(%arg0: i32, %arg1: i32) -> (i32, i32) {
    %c0_i32 = arith.constant 0 : i32
    %c0_i32_0 = arith.constant 0 : i32
    return %arg0, %c0_i32 : i32, i32
  }
  func.func @transform_5(%arg0: i32, %arg1: i32) -> (i32, i32) {
    %c0_i32 = arith.constant 0 : i32
    %c0_i32_0 = arith.constant 0 : i32
    return %arg0, %c0_i32 : i32, i32
  }
  func.func @transform_6(%arg0: i32, %arg1: i32) -> (i32, i32, i32) {
    %c0_i32 = arith.constant 0 : i32
    %c0_i32_0 = arith.constant 0 : i32
    return %arg1, %arg0, %c0_i32 : i32, i32, i32
  }
}

module attributes {stable_mosaic.version = 11 : i64} {
  func.func @_proj_stats_kernel(%arg0: i32, %arg1: i32, %arg2: memref<8x128xbf16, #tpu.memory_space<vmem>>, %arg3: memref<128x256xbf16, #tpu.memory_space<vmem>>, %arg4: memref<8x1xf32, #tpu.memory_space<vmem>>, %arg5: memref<8x1xi32, #tpu.memory_space<vmem>>, %arg6: memref<8x1xf32, #tpu.memory_space<vmem>>, %arg7: memref<8x1xf32, #tpu.memory_space<vmem>>, %arg8: memref<8x1xi32, #tpu.memory_space<vmem>>) attributes {dimension_semantics = [#tpu.dimension_semantics<parallel>, #tpu.dimension_semantics<arbitrary>], iteration_bounds = array<i64: 2, 4>, scalar_prefetch = 0 : i64, scratch_operands = 3 : i64, tpu.core_type = #tpu.core_type<tc>, window_params = [{transform_indices = @transform_0, window_bounds = array<i64: 8, 128>}, {transform_indices = @transform_1, window_bounds = array<i64: 128, 256>}, {transform_indices = @transform_2, window_bounds = array<i64: 8, 1>}, {transform_indices = @transform_3, window_bounds = array<i64: 8, 1>}]} {
    %c0_i32 = arith.constant 0 : i32
    %0 = arith.cmpi eq, %arg1, %c0_i32 : i32
    %1 = arith.extui %0 : i1 to i32
    %c0_i32_0 = arith.constant 0 : i32
    %2 = arith.cmpi ne, %1, %c0_i32_0 : i32
    scf.if %2 {
      %cst_21 = arith.constant 0xFF800000 : f32
      %39 = vector.broadcast %cst_21 : f32 to vector<8x1xf32>
      %c0_22 = arith.constant 0 : index
      %c0_23 = arith.constant 0 : index
      %40 = vector.load %arg6[%c0_22, %c0_23] : memref<8x1xf32, #tpu.memory_space<vmem>>, vector<8x1xf32>
      tpu.vector_store %arg6[%c0_22, %c0_23], %39 {strides = array<i32>} : memref<8x1xf32, #tpu.memory_space<vmem>>, vector<8x1xf32>,
      %cst_24 = arith.constant 0.000000e+00 : f32
      %41 = vector.broadcast %cst_24 : f32 to vector<8x1xf32>
      %c0_25 = arith.constant 0 : index
      %c0_26 = arith.constant 0 : index
      %42 = vector.load %arg7[%c0_25, %c0_26] : memref<8x1xf32, #tpu.memory_space<vmem>>, vector<8x1xf32>
      tpu.vector_store %arg7[%c0_25, %c0_26], %41 {strides = array<i32>} : memref<8x1xf32, #tpu.memory_space<vmem>>, vector<8x1xf32>,
      %c0_i32_27 = arith.constant 0 : i32
      %43 = vector.broadcast %c0_i32_27 : i32 to vector<8x1xi32>
      %c0_28 = arith.constant 0 : index
      %c0_29 = arith.constant 0 : index
      %44 = vector.load %arg8[%c0_28, %c0_29] : memref<8x1xi32, #tpu.memory_space<vmem>>, vector<8x1xi32>
      tpu.vector_store %arg8[%c0_28, %c0_29], %43 {strides = array<i32>} : memref<8x1xi32, #tpu.memory_space<vmem>>, vector<8x1xi32>,
    } else {
    }
    %c0 = arith.constant 0 : index
    %c0_1 = arith.constant 0 : index
    %3 = vector.load %arg2[%c0, %c0_1] : memref<8x128xbf16, #tpu.memory_space<vmem>>, vector<8x128xbf16>
    %c0_2 = arith.constant 0 : index
    %c0_3 = arith.constant 0 : index
    %4 = vector.load %arg3[%c0_2, %c0_3] : memref<128x256xbf16, #tpu.memory_space<vmem>>, vector<128x256xbf16>
    %cst = arith.constant dense<0.000000e+00> : vector<8x256xf32>
    %5 = tpu.matmul %3, %4, %cst {dimension_numbers = #tpu.dot_dimension_numbers<[1], [0], [0], [1], [0, 0, 1, 1], [], []>} : vector<8x128xbf16>, vector<128x256xbf16>, vector<8x256xf32> -> vector<8x256xf32>
    %cst_4 = arith.constant dense<0xFF800000> : vector<8xf32>
    %6 = vector.multi_reduction <maximumf>, %5, %cst_4 [1] : vector<8x256xf32> to vector<8xf32>
    %7 = vector.shape_cast %6 : vector<8xf32> to vector<8x1xf32>
    %8 = tpu.iota {dimensions = array<i32: 1>} : vector<8x256xi32>
    %9 = vector.broadcast %7 : vector<8x1xf32> to vector<8x256xf32>
    %10 = arith.cmpf oge, %5, %9 : vector<8x256xf32>
    %c256_i32 = arith.constant 256 : i32
    %11 = vector.broadcast %c256_i32 : i32 to vector<8x256xi32>
    %12 = arith.select %10, %8, %11 : vector<8x256xi1>, vector<8x256xi32>
    %cst_5 = arith.constant dense<2147483647> : vector<8xi32>
    %13 = vector.multi_reduction <minsi>, %12, %cst_5 [1] : vector<8x256xi32> to vector<8xi32>
    %14 = vector.shape_cast %13 : vector<8xi32> to vector<8x1xi32>
    %c256_i32_6 = arith.constant 256 : i32
    %15 = arith.muli %arg1, %c256_i32_6 : i32
    %16 = vector.broadcast %15 : i32 to vector<8x1xi32>
    %17 = arith.addi %14, %16 : vector<8x1xi32>
    %c0_7 = arith.constant 0 : index
    %c0_8 = arith.constant 0 : index
    %18 = vector.load %arg6[%c0_7, %c0_8] : memref<8x1xf32, #tpu.memory_space<vmem>>, vector<8x1xf32>
    %19 = arith.maximumf %18, %7 : vector<8x1xf32>
    %c0_9 = arith.constant 0 : index
    %c0_10 = arith.constant 0 : index
    %20 = vector.load %arg7[%c0_9, %c0_10] : memref<8x1xf32, #tpu.memory_space<vmem>>, vector<8x1xf32>
    %21 = arith.subf %18, %19 : vector<8x1xf32>
    %22 = math.exp %21 : vector<8x1xf32>
    %23 = arith.mulf %20, %22 : vector<8x1xf32>
    %24 = vector.broadcast %19 : vector<8x1xf32> to vector<8x256xf32>
    %25 = arith.subf %5, %24 : vector<8x256xf32>
    %26 = math.exp %25 : vector<8x256xf32>
    %cst_11 = arith.constant dense<0.000000e+00> : vector<8xf32>
    %27 = vector.multi_reduction <add>, %26, %cst_11 [1] : vector<8x256xf32> to vector<8xf32>
    %28 = vector.shape_cast %27 : vector<8xf32> to vector<8x1xf32>
    %29 = arith.addf %23, %28 : vector<8x1xf32>
    %c0_12 = arith.constant 0 : index
    %c0_13 = arith.constant 0 : index
    %30 = vector.load %arg7[%c0_12, %c0_13] : memref<8x1xf32, #tpu.memory_space<vmem>>, vector<8x1xf32>
    tpu.vector_store %arg7[%c0_12, %c0_13], %29 {strides = array<i32>} : memref<8x1xf32, #tpu.memory_space<vmem>>, vector<8x1xf32>,
    %31 = arith.cmpf ogt, %7, %18 : vector<8x1xf32>
    %c0_14 = arith.constant 0 : index
    %c0_15 = arith.constant 0 : index
    %32 = vector.load %arg8[%c0_14, %c0_15] : memref<8x1xi32, #tpu.memory_space<vmem>>, vector<8x1xi32>
    %33 = arith.select %31, %17, %32 : vector<8x1xi1>, vector<8x1xi32>
    %c0_16 = arith.constant 0 : index
    %c0_17 = arith.constant 0 : index
    %34 = vector.load %arg8[%c0_16, %c0_17] : memref<8x1xi32, #tpu.memory_space<vmem>>, vector<8x1xi32>
    tpu.vector_store %arg8[%c0_16, %c0_17], %33 {strides = array<i32>} : memref<8x1xi32, #tpu.memory_space<vmem>>, vector<8x1xi32>,
    %c0_18 = arith.constant 0 : index
    %c0_19 = arith.constant 0 : index
    %35 = vector.load %arg6[%c0_18, %c0_19] : memref<8x1xf32, #tpu.memory_space<vmem>>, vector<8x1xf32>
    tpu.vector_store %arg6[%c0_18, %c0_19], %19 {strides = array<i32>} : memref<8x1xf32, #tpu.memory_space<vmem>>, vector<8x1xf32>,
    %c3_i32 = arith.constant 3 : i32
    %36 = arith.cmpi eq, %arg1, %c3_i32 : i32
    %37 = arith.extui %36 : i1 to i32
    %c0_i32_20 = arith.constant 0 : i32
    %38 = arith.cmpi ne, %37, %c0_i32_20 : i32
    scf.if %38 {
      %c0_21 = arith.constant 0 : index
      %c0_22 = arith.constant 0 : index
      %39 = vector.load %arg6[%c0_21, %c0_22] : memref<8x1xf32, #tpu.memory_space<vmem>>, vector<8x1xf32>
      %c0_23 = arith.constant 0 : index
      %c0_24 = arith.constant 0 : index
      %40 = vector.load %arg7[%c0_23, %c0_24] : memref<8x1xf32, #tpu.memory_space<vmem>>, vector<8x1xf32>
      %41 = math.log %40 : vector<8x1xf32>
      %42 = arith.addf %39, %41 : vector<8x1xf32>
      %c0_25 = arith.constant 0 : index
      %c0_26 = arith.constant 0 : index
      %43 = vector.load %arg4[%c0_25, %c0_26] : memref<8x1xf32, #tpu.memory_space<vmem>>, vector<8x1xf32>
      tpu.vector_store %arg4[%c0_25, %c0_26], %42 {strides = array<i32>} : memref<8x1xf32, #tpu.memory_space<vmem>>, vector<8x1xf32>,
      %c0_27 = arith.constant 0 : index
      %c0_28 = arith.constant 0 : index
      %44 = vector.load %arg8[%c0_27, %c0_28] : memref<8x1xi32, #tpu.memory_space<vmem>>, vector<8x1xi32>
      %c0_29 = arith.constant 0 : index
      %c0_30 = arith.constant 0 : index
      %45 = vector.load %arg5[%c0_29, %c0_30] : memref<8x1xi32, #tpu.memory_space<vmem>>, vector<8x1xi32>
      tpu.vector_store %arg5[%c0_29, %c0_30], %44 {strides = array<i32>} : memref<8x1xi32, #tpu.memory_space<vmem>>, vector<8x1xi32>,
    } else {
    }
    return
  }
  func.func @transform_0(%arg0: i32, %arg1: i32) -> (i32, i32) {
    %c0_i32 = arith.constant 0 : i32
    %c0_i32_0 = arith.constant 0 : i32
    return %arg0, %c0_i32 : i32, i32
  }
  func.func @transform_1(%arg0: i32, %arg1: i32) -> (i32, i32) {
    %c0_i32 = arith.constant 0 : i32
    %c0_i32_0 = arith.constant 0 : i32
    return %c0_i32, %arg1 : i32, i32
  }
  func.func @transform_2(%arg0: i32, %arg1: i32) -> (i32, i32) {
    %c0_i32 = arith.constant 0 : i32
    %c0_i32_0 = arith.constant 0 : i32
    return %arg0, %c0_i32 : i32, i32
  }
  func.func @transform_3(%arg0: i32, %arg1: i32) -> (i32, i32) {
    %c0_i32 = arith.constant 0 : i32
    %c0_i32_0 = arith.constant 0 : i32
    return %arg0, %c0_i32 : i32, i32
  }
}

module attributes {stable_mosaic.version = 11 : i64} {
  func.func @_proj_write_kernel(%arg0: i32, %arg1: i32, %arg2: memref<8x128xbf16, #tpu.memory_space<vmem>>, %arg3: memref<128x256xbf16, #tpu.memory_space<vmem>>, %arg4: memref<8x1xf32, #tpu.memory_space<vmem>>, %arg5: memref<8x256xf32, #tpu.memory_space<vmem>>) attributes {dimension_semantics = [#tpu.dimension_semantics<parallel>, #tpu.dimension_semantics<parallel>], iteration_bounds = array<i64: 2, 4>, scalar_prefetch = 0 : i64, scratch_operands = 0 : i64, tpu.core_type = #tpu.core_type<tc>, window_params = [{transform_indices = @transform_0, window_bounds = array<i64: 8, 128>}, {transform_indices = @transform_1, window_bounds = array<i64: 128, 256>}, {transform_indices = @transform_2, window_bounds = array<i64: 8, 1>}, {transform_indices = @transform_3, window_bounds = array<i64: 8, 256>}]} {
    %c0 = arith.constant 0 : index
    %c0_0 = arith.constant 0 : index
    %0 = vector.load %arg2[%c0, %c0_0] : memref<8x128xbf16, #tpu.memory_space<vmem>>, vector<8x128xbf16>
    %c0_1 = arith.constant 0 : index
    %c0_2 = arith.constant 0 : index
    %1 = vector.load %arg3[%c0_1, %c0_2] : memref<128x256xbf16, #tpu.memory_space<vmem>>, vector<128x256xbf16>
    %cst = arith.constant dense<0.000000e+00> : vector<8x256xf32>
    %2 = tpu.matmul %0, %1, %cst {dimension_numbers = #tpu.dot_dimension_numbers<[1], [0], [0], [1], [0, 0, 1, 1], [], []>} : vector<8x128xbf16>, vector<128x256xbf16>, vector<8x256xf32> -> vector<8x256xf32>
    %c0_3 = arith.constant 0 : index
    %c0_4 = arith.constant 0 : index
    %3 = vector.load %arg4[%c0_3, %c0_4] : memref<8x1xf32, #tpu.memory_space<vmem>>, vector<8x1xf32>
    %4 = vector.broadcast %3 : vector<8x1xf32> to vector<8x256xf32>
    %5 = arith.subf %2, %4 : vector<8x256xf32>
    %c0_5 = arith.constant 0 : index
    %c0_6 = arith.constant 0 : index
    %6 = vector.load %arg5[%c0_5, %c0_6] : memref<8x256xf32, #tpu.memory_space<vmem>>, vector<8x256xf32>
    tpu.vector_store %arg5[%c0_5, %c0_6], %5 {strides = array<i32>} : memref<8x256xf32, #tpu.memory_space<vmem>>, vector<8x256xf32>,
    return
  }
  func.func @transform_0(%arg0: i32, %arg1: i32) -> (i32, i32) {
    %c0_i32 = arith.constant 0 : i32
    %c0_i32_0 = arith.constant 0 : i32
    return %arg0, %c0_i32 : i32, i32
  }
  func.func @transform_1(%arg0: i32, %arg1: i32) -> (i32, i32) {
    %c0_i32 = arith.constant 0 : i32
    %c0_i32_0 = arith.constant 0 : i32
    return %c0_i32, %arg1 : i32, i32
  }
  func.func @transform_2(%arg0: i32, %arg1: i32) -> (i32, i32) {
    %c0_i32 = arith.constant 0 : i32
    %c0_i32_0 = arith.constant 0 : i32
    return %arg0, %c0_i32 : i32, i32
  }
  func.func @transform_3(%arg0: i32, %arg1: i32) -> (i32, i32) {
    %c0_i32 = arith.constant 0 : i32
    return %arg0, %arg1 : i32, i32
  }
}

</mosaic_0001>

<llo_original>
// kernel: squeeze.9
$region0: #{squeeze.9}
  %s0 = inlined_call_operand.vmem [shape: s32[16], index: 0, kind: input, shape index: {}]
  %s1 = inlined_call_operand.hbm [shape: s32[2,8], index: 1, kind: output, shape index: {}]
  $region1: #{squeeze.9} parent=0
    #allocation0 [shape = 'u8[1024]{0}', space=vmem, size = 0x400, scoped, tag = 'operand span for operand 1']
    #allocation1 [shape = 's32[1]{0}', space=sflag, size = 0x4, scoped, tag = 'scoped memory for squeeze.9']
    #allocation2 [shape = 'u8[4096]{0}', space=vmem, size = 0x1000, scoped, tag = 'scoped mem for output reshape']
    #allocation3 [shape = 'u8[4096]{0}', space=vmem, size = 0x1000, scoped, tag = 'scoped mem for input reshape']
    %2 = vsyncpa [#allocation1], 0
    %s4 = sshllo.u32 0, 1
    %v5 = vld [vmem:[%s0] sm:%s4]
    %6 = vst [vmem:[#allocation3] sm:%s4] %v5
    %v7 = vld [vmem:[#allocation3] sm:$0x1]
    %vm8 = vcmask 64512
    %9 = vst.msk [vmem:[#allocation2] sm:$0x1] %vm8, %v7
    %v10 = vld [vmem:[#allocation3] sm:$0x1]
    %11 = vrot.lane.b32.xlu0 %v10, 120
    %v12 = vpop.permute.xlu0 %11
    %vm13 = vcmask 64512
    %s14 = scalar_lea.vmem [#allocation2], 1
    %15 = vst.msk [vmem:[%s14] sm:$0x1] %vm13, %v12
    %s17 = sshllo.u32 0, 2
    %v19 = vld [vmem:[#allocation2] sm:%s17]
    %s20 = sshllo.u32 0, 2
    %21 = vst [vmem:[#allocation0] sm:%s20] %v19
    %s23 = ssub.s32 32, 32
    %24 = vsyncadd [#allocation1], %s23
    %s26 = sshll.u32 [#allocation0], 4
    %s27 = int_to_ptr.vmem [resolvable:$true] %s26
    %29 = dma.vmem_to_hbm [thread:$0]  %s27, 32, %s1, [#allocation1]
    %30 = dma.done [#allocation1], 32
    %31 = vsyncpa [#allocation1], 1

// kernel: critic_forward.6
$region0: #{critic_forward.6}
  #allocation0 [shape = 'u32[]', space=smem, size = 0x4, offset = 0x4, fixed_abs, tag = 'smem constant byte address 0x4 - core index']
  #allocation1 [shape = 'u32[144,128]{1,0:T(1,128)}', space=vmem, size = 0x12000, scoped, tag = 'internal scratch']
  #allocation2 [shape = 'f32[8,1]{1,0:T(8,128)}', space=vmem, size = 0x1000, scoped, tag = 'scratch operand']
  #allocation3 [shape = 'f32[8,1]{1,0:T(8,128)}', space=vmem, size = 0x1000, scoped, tag = 'scratch operand']
  #allocation4 [shape = 's32[8,1]{1,0:T(8,128)}', space=vmem, size = 0x1000, scoped, tag = 'scratch operand']
  %s0 = inlined_call_operand.vmem [shape: bf16[16,128], index: 0, kind: input, shape index: {}]
  %s1 = inlined_call_operand.vmem [shape: bf16[128,1024], index: 1, kind: input, shape index: {}]
  %s2 = inlined_call_operand.vmem [shape: f32[16,1], index: 2, kind: output, shape index: {0}]
  %s3 = inlined_call_operand.vmem [shape: s32[16,1], index: 3, kind: output, shape index: {1}]
  %4 = xla_tuple %s2, %s3
  %s5 = sld [smem:[#allocation0]]
  $region95: #{critic_forward.6} parent=0
    _
  %s7 = ssub.s32 1, %s5
  %s8 = scalar_select 0, %s7, %s5
  $region1: #{critic_forward.6} parent=0
    #allocation5 [shape = 'u8[131072]{0}', space=vmem, size = 0x20000, scoped, tag = 'input window, operand 1']
    loop: start=0, step=1, limit=10
    $region2: #{critic_forward.6} parent=1 // loop_pre_header
      _
    $region3: #{critic_forward.6} parent=1 // loop_header
      %s10 = sphi 0, %s14
      %p11 = scmp.ge.s32.totalorder %s10, 10
      %s17 = sphi 0, %s29
      %s18 = sphi 0, %s25
      %s19 = sphi 0, %s17
      %s20 = sphi 0, %s18
      %s21 = sphi 0, %s19
      %s22 = sphi 0, %s20
      %s32 = sphi 0, %s34
      %s35 = sphi 0, %s32
      %s36 = sphi 0, %s35
      %s52 = sphi 0, %s36
      %s58 = sphi 0, %s60
      %s61 = sphi 0, %s58
      %s62 = sphi 0, %s61
      %s78 = sphi 0, %s62
      %s84 = sphi 0, %s86
      %s87 = sphi 0, %s84
      %s88 = sphi 0, %s87
      %s104 = sphi 0, %s88
      %s110 = sphi 0, %s112
      %s113 = sphi 0, %s110
      %s114 = sphi 0, %s113
      %s130 = sphi 0, %s114
    $region4: #{critic_forward.6} parent=1 // loop_header_branch
      %13 = sbr.rel (%p11) target = $region8
    $region5: #{critic_forward.6} parent=1 // loop_body
      %s15 = ssub.s32 %s10, 1
      %s16 = ssub.s32 %s10, 2
      %s23 = sadd.s32 1, %s18
      %p24 = scmp.ge.s32.totalorder %s23, 4
      %s25 = scalar_select %p24, 0, %s23
      %s26 = sadd.s32 1, %s17
      %s27 = scalar_select %p24, %s26, %s17
      %p28 = scmp.ge.s32.totalorder %s27, 2
      %s29 = scalar_select %p28, 0, %s27
      %s30 = ssub.s32 %s17, %s29
      %p31 = scmp.eq.s32.totalorder %s30, 0
      %s33 = sadd.s32 %s32, 1
      %s34 = scalar_select %p31, %s32, %s33
      %p37 = pneg %p31
      %p38 = scmp.eq.s32.totalorder %s10, 7
      %p39 = por %p37, %p38
      %p40 = scmp.ne.s32.totalorder %s32, %s35
      %p41 = scmp.eq.s32.totalorder %s10, 0
      %p42 = por %p40, %p41
      %p43 = scmp.ne.s32.totalorder %s32, %s35
      %p44 = scmp.eq.s32.totalorder %s15, 7
      %p45 = por %p43, %p44
      %p46 = scmp.ne.s32.totalorder %s35, %s36
      %p47 = scmp.eq.s32.totalorder %s15, 0
      %p48 = por %p46, %p47
      %p49 = scmp.ne.s32.totalorder %s35, %s36
      %p50 = scmp.eq.s32.totalorder %s16, 7
      %p51 = por %p49, %p50
      %p53 = scmp.ne.s32.totalorder %s36, %s52
      %p54 = scmp.eq.s32.totalorder %s16, 0
      %p55 = por %p53, %p54
      %s56 = ssub.s32 %s18, %s25
      %p57 = scmp.eq.s32.totalorder %s56, 0
      %s59 = sadd.s32 %s58, 1
      %s60 = scalar_select %p57, %s58, %s59
      %p63 = pneg %p57
      %p64 = scmp.eq.s32.totalorder %s10, 7
      %p65 = por %p63, %p64
      %p66 = scmp.ne.s32.totalorder %s58, %s61
      %p67 = scmp.eq.s32.totalorder %s10, 0
      %p68 = por %p66, %p67
      %p69 = scmp.ne.s32.totalorder %s58, %s61
      %p70 = scmp.eq.s32.totalorder %s15, 7
      %p71 = por %p69, %p70
      %p72 = scmp.ne.s32.totalorder %s61, %s62
      %p73 = scmp.eq.s32.totalorder %s15, 0
      %p74 = por %p72, %p73
      %p75 = scmp.ne.s32.totalorder %s61, %s62
      %p76 = scmp.eq.s32.totalorder %s16, 7
      %p77 = por %p75, %p76
      %p79 = scmp.ne.s32.totalorder %s62, %s78
      %p80 = scmp.eq.s32.totalorder %s16, 0
      %p81 = por %p79, %p80
      %s82 = ssub.s32 %s17, %s29
      %p83 = scmp.eq.s32.totalorder %s82, 0
      %s85 = sadd.s32 %s84, 1
      %s86 = scalar_select %p83, %s84, %s85
      %p89 = pneg %p83
      %p90 = scmp.eq.s32.totalorder %s10, 7
      %p91 = por %p89, %p90
      %p92 = scmp.ne.s32.totalorder %s84, %s87
      %p93 = scmp.eq.s32.totalorder %s10, 0
      %p94 = por %p92, %p93
      %p95 = scmp.ne.s32.totalorder %s84, %s87
      %p96 = scmp.eq.s32.totalorder %s15, 7
      %p97 = por %p95, %p96
      %p98 = scmp.ne.s32.totalorder %s87, %s88
      %p99 = scmp.eq.s32.totalorder %s15, 0
      %p100 = por %p98, %p99
      %p101 = scmp.ne.s32.totalorder %s87, %s88
      %p102 = scmp.eq.s32.totalorder %s16, 7
      %p103 = por %p101, %p102
      %p105 = scmp.ne.s32.totalorder %s88, %s104
      %p106 = scmp.eq.s32.totalorder %s16, 0
      %p107 = por %p105, %p106
      %s108 = ssub.s32 %s17, %s29
      %p109 = scmp.eq.s32.totalorder %s108, 0
      %s111 = sadd.s32 %s110, 1
      %s112 = scalar_select %p109, %s110, %s111
      %p115 = pneg %p109
      %p116 = scmp.eq.s32.totalorder %s10, 7
      %p117 = por %p115, %p116
      %p118 = scmp.ne.s32.totalorder %s110, %s113
      %p119 = scmp.eq.s32.totalorder %s10, 0
      %p120 = por %p118, %p119
      %p121 = scmp.ne.s32.totalorder %s110, %s113
      %p122 = scmp.eq.s32.totalorder %s15, 7
      %p123 = por %p121, %p122
      %p124 = scmp.ne.s32.totalorder %s113, %s114
      %p125 = scmp.eq.s32.totalorder %s15, 0
      %p126 = por %p124, %p125
      %p127 = scmp.ne.s32.totalorder %s113, %s114
      %p128 = scmp.eq.s32.totalorder %s16, 7
      %p129 = por %p127, %p128
      %p131 = scmp.ne.s32.totalorder %s114, %s130
      %p132 = scmp.eq.s32.totalorder %s16, 0
      %p133 = por %p131, %p132
      %p134 = scmp.le.s32.totalorder 1, %s10
      %p135 = scmp.lt.s32.totalorder %s10, 9
      %p136 = pnand %p134, %p135
      %p137 = pneg %p136
      // Predicated region
      $region9: #{critic_forward.6} parent=5 // pred_check
        _
      $region10: #{critic_forward.6} parent=5 // pred_check_branch
        %139 = sbr.rel (%p136) target = $region12
      $region11: #{critic_forward.6} parent=5 // pred_region
        %s140 = ssub.s32 %s10, 1
      $region12: #{critic_forward.6} parent=5 // pred_fallthru
        _
      %p141 = scmp.lt.s32.totalorder %s10, 8
      // Predicated region
      $region13: #{critic_forward.6} parent=5 // pred_check
        %p142 = pneg %p141
      $region14: #{critic_forward.6} parent=5 // pred_check_branch
        %144 = sbr.rel (%p142) target = $region16
      $region15: #{critic_forward.6} parent=5 // pred_region
        // Predicated region
        $region17: #{critic_forward.6} parent=15 // pred_check
          %p145 = pneg %p42
        $region18: #{critic_forward.6} parent=15 // pred_check_branch
          %147 = sbr.rel (%p145) target = $region20
        $region19: #{critic_forward.6} parent=15 // pred_region
          %p148 = scmp.lt.s32.totalorder %s17, 1
          %s149 = scalar_select %p148, %s17, 1
          %s150 = smul.addr %s149, 4
          %s151 = scalar_lea.vmem %s0, %s150
        $region20: #{critic_forward.6} parent=15 // pred_fallthru
          _
        // Predicated region
        $region21: #{critic_forward.6} parent=15 // pred_check
          %p152 = pneg %p68
        $region22: #{critic_forward.6} parent=15 // pred_check_branch
          %154 = sbr.rel (%p152) target = $region24
        $region23: #{critic_forward.6} parent=15 // pred_region
          %s155 = sand.u32 %s58, 1
          %s156 = sand.u32 %s58, 1
          %s157 = smul.addr %s156, 128
          %s158 = scalar_lea.vmem [#allocation5], %s157
          %s159 = smul.u32 2, %s18
          %s160 = smul.addr %s159, 4
          %s161 = scalar_lea.vmem %s1, %s160
          // Predicated region
          $region25: #{critic_forward.6} parent=23 // pred_check
            _
          $region26: #{critic_forward.6} parent=23 // pred_check_branch
            %163 = sbr.rel (0) target = $region28
          $region27: #{critic_forward.6} parent=23 // pred_region
            // Predicated region
            $region29: #{critic_forward.6} parent=27 // pred_check
              _
            $region30: #{critic_forward.6} parent=27 // pred_check_branch
              %165 = sbr.rel (0) target = $region32
            $region31: #{critic_forward.6} parent=27 // pred_region
              // Predicated region
              $region44: #{critic_forward.6} parent=31 // pred_check
                _
              $region45: #{critic_forward.6} parent=31 // pred_check_branch
                %210 = sbr.rel (0) target = $region47
              $region46: #{critic_forward.6} parent=31 // pred_region
                loop: start=0, step=1, limit=1
                $region48: #{critic_forward.6} parent=46 // loop_pre_header
                  _
                $region49: #{critic_forward.6} parent=46 // loop_header
                  %s212 = sphi 0, %s216
                  %p213 = scmp.ge.s32.totalorder %s212, 1
                  %s217 = sphi %s161, %s161
                  %s218 = sphi %s158, %s158
                $region50: #{critic_forward.6} parent=46 // loop_header_branch
                  %215 = sbr.rel (%p213) target = $region54
                $region51: #{critic_forward.6} parent=46 // loop_body
                  %v219 = vld [vmem:[%s217] sm:$0xff]
                  %220 = vst [vmem:[%s218] sm:$0xff] %v219
                  %v221 = vld [vmem:[%s217 + $0x20] sm:$0xff]
                  %222 = vst [vmem:[%s218 + $0x8] sm:$0xff] %v221
                  %v223 = vld [vmem:[%s217 + $0x40] sm:$0xff]
                  %224 = vst [vmem:[%s218 + $0x10] sm:$0xff] %v223
                  %v225 = vld [vmem:[%s217 + $0x60] sm:$0xff]
                  %226 = vst [vmem:[%s218 + $0x18] sm:$0xff] %v225
                  %v227 = vld [vmem:[%s217 + $0x80] sm:$0xff]
                  %228 = vst [vmem:[%s218 + $0x20] sm:$0xff] %v227
                  %v229 = vld [vmem:[%s217 + $0xa0] sm:$0xff]
                  %230 = vst [vmem:[%s218 + $0x28] sm:$0xff] %v229
                  %v231 = vld [vmem:[%s217 + $0xc0] sm:$0xff]
                  %232 = vst [vmem:[%s218 + $0x30] sm:$0xff] %v231
                  %v233 = vld [vmem:[%s217 + $0xe0] sm:$0xff]
                  %234 = vst [vmem:[%s218 + $0x38] sm:$0xff] %v233
                  %v235 = vld [vmem:[%s217 + $0x100] sm:$0xff]
                  %236 = vst [vmem:[%s218 + $0x40] sm:$0xff] %v235
                  %v237 = vld [vmem:[%s217 + $0x120] sm:$0xff]
                  %238 = vst [vmem:[%s218 + $0x48] sm:$0xff] %v237
                  %v239 = vld [vmem:[%s217 + $0x140] sm:$0xff]
                  %240 = vst [vmem:[%s218 + $0x50] sm:$0xff] %v239
                  %v241 = vld [vmem:[%s217 + $0x160] sm:$0xff]
                  %242 = vst [vmem:[%s218 + $0x58] sm:$0xff] %v241
                  %v243 = vld [vmem:[%s217 + $0x180] sm:$0xff]
                  %244 = vst [vmem:[%s218 + $0x60] sm:$0xff] %v243
                  %v245 = vld [vmem:[%s217 + $0x1a0] sm:$0xff]
                  %246 = vst [vmem:[%s218 + $0x68] sm:$0xff] %v245
                  %v247 = vld [vmem:[%s217 + $0x1c0] sm:$0xff]
                  %248 = vst [vmem:[%s218 + $0x70] sm:$0xff] %v247
                  %v249 = vld [vmem:[%s217 + $0x1e0] sm:$0xff]
                  %250 = vst [vmem:[%s218 + $0x78] sm:$0xff] %v249
                $region52: #{critic_forward.6} parent=46 // loop_footer
                  %s216 = sadd.s32 1, %s212
                $region53: #{critic_forward.6} parent=46 // loop_footer_branch
                  %211 = sbr.rel target = $region49
                $region54: #{critic_forward.6} parent=46 // loop_exit
                  _
              $region47: #{critic_forward.6} parent=31 // pred_fallthru
                _
              // Predicated region
              $region55: #{critic_forward.6} parent=31 // pred_check
                _
              $region56: #{critic_forward.6} parent=31 // pred_check_branch
                %252 = sbr.rel target = $region58
              $region57: #{critic_forward.6} parent=31 // pred_region
                _
              $region58: #{critic_forward.6} parent=31 // pred_fallthru
                _
            $region32: #{critic_forward.6} parent=27 // pred_fallthru
              _
            // Predicated region
            $region33: #{critic_forward.6} parent=27 // pred_check
              _
            $region34: #{critic_forward.6} parent=27 // pred_check_branch
              %167 = sbr.rel target = $region36
            $region35: #{critic_forward.6} parent=27 // pred_region
              loop: start=0, step=1, limit=1
              $region37: #{critic_forward.6} parent=35 // loop_pre_header
                _
              $region38: #{critic_forward.6} parent=35 // loop_header
                %s170 = sphi 0, %s174
                %p171 = scmp.ge.s32.totalorder %s170, 1
                %s175 = sphi %s161, %s161
                %s176 = sphi %s158, %s158
              $region39: #{critic_forward.6} parent=35 // loop_header_branch
                %173 = sbr.rel (%p171) target = $region43
              $region40: #{critic_forward.6} parent=35 // loop_body
                %v177 = vld [vmem:[%s175] sm:$0xff]
                %178 = vst [vmem:[%s176] sm:$0xff] %v177
                %v179 = vld [vmem:[%s175 + $0x20] sm:$0xff]
                %180 = vst [vmem:[%s176 + $0x8] sm:$0xff] %v179
                %v181 = vld [vmem:[%s175 + $0x40] sm:$0xff]
                %182 = vst [vmem:[%s176 + $0x10] sm:$0xff] %v181
                %v183 = vld [vmem:[%s175 + $0x60] sm:$0xff]
                %184 = vst [vmem:[%s176 + $0x18] sm:$0xff] %v183
                %v185 = vld [vmem:[%s175 + $0x80] sm:$0xff]
                %186 = vst [vmem:[%s176 + $0x20] sm:$0xff] %v185
                %v187 = vld [vmem:[%s175 + $0xa0] sm:$0xff]
                %188 = vst [vmem:[%s176 + $0x28] sm:$0xff] %v187
                %v189 = vld [vmem:[%s175 + $0xc0] sm:$0xff]
                %190 = vst [vmem:[%s176 + $0x30] sm:$0xff] %v189
                %v191 = vld [vmem:[%s175 + $0xe0] sm:$0xff]
                %192 = vst [vmem:[%s176 + $0x38] sm:$0xff] %v191
                %v193 = vld [vmem:[%s175 + $0x100] sm:$0xff]
                %194 = vst [vmem:[%s176 + $0x40] sm:$0xff] %v193
                %v195 = vld [vmem:[%s175 + $0x120] sm:$0xff]
                %196 = vst [vmem:[%s176 + $0x48] sm:$0xff] %v195
                %v197 = vld [vmem:[%s175 + $0x140] sm:$0xff]
                %198 = vst [vmem:[%s176 + $0x50] sm:$0xff] %v197
                %v199 = vld [vmem:[%s175 + $0x160] sm:$0xff]
                %200 = vst [vmem:[%s176 + $0x58] sm:$0xff] %v199
                %v201 = vld [vmem:[%s175 + $0x180] sm:$0xff]
                %202 = vst [vmem:[%s176 + $0x60] sm:$0xff] %v201
                %v203 = vld [vmem:[%s175 + $0x1a0] sm:$0xff]
                %204 = vst [vmem:[%s176 + $0x68] sm:$0xff] %v203
                %v205 = vld [vmem:[%s175 + $0x1c0] sm:$0xff]
                %206 = vst [vmem:[%s176 + $0x70] sm:$0xff] %v205
                %v207 = vld [vmem:[%s175 + $0x1e0] sm:$0xff]
                %208 = vst [vmem:[%s176 + $0x78] sm:$0xff] %v207
              $region41: #{critic_forward.6} parent=35 // loop_footer
                %s174 = sadd.s32 1, %s170
              $region42: #{critic_forward.6} parent=35 // loop_footer_branch
                %169 = sbr.rel target = $region38
              $region43: #{critic_forward.6} parent=35 // loop_exit
                _
            $region36: #{critic_forward.6} parent=27 // pred_fallthru
              _
          $region28: #{critic_forward.6} parent=23 // pred_fallthru
            _
          %253 = vnop
        $region24: #{critic_forward.6} parent=15 // pred_fallthru
          _
      $region16: #{critic_forward.6} parent=5 // pred_fallthru
        _
      %p254 = scmp.le.s32.totalorder 1, %s10
      %p255 = scmp.lt.s32.totalorder %s10, 9
      %p256 = pnand %p254, %p255
      %p257 = pneg %p256
      // Predicated region
      $region59: #{critic_forward.6} parent=5 // pred_check
        _
      $region60: #{critic_forward.6} parent=5 // pred_check_branch
        %259 = sbr.rel (%p256) target = $region62
      $region61: #{critic_forward.6} parent=5 // pred_region
        %s260 = ssub.s32 %s10, 1
        %s261 = sand.u32 %s61, 1
        %s262 = sand.u32 %s61, 1
        %s263 = smul.addr %s262, 128
        %s264 = scalar_lea.vmem [#allocation5], %s263
        // Predicated region
        $region63: #{critic_forward.6} parent=61 // pred_check
          %p265 = pneg %p74
        $region64: #{critic_forward.6} parent=61 // pred_check_branch
          %267 = sbr.rel (%p265) target = $region66
        $region65: #{critic_forward.6} parent=61 // pred_region
          _
        $region66: #{critic_forward.6} parent=61 // pred_fallthru
          _
        %p268 = scmp.lt.s32.totalorder %s19, 1
        %s269 = scalar_select %p268, %s19, 1
        %s270 = smul.addr %s269, 4
        %s271 = scalar_lea.vmem %s0, %s270
        %p272 = pneg %p48
        %p273 = pneg %p45
        %s274 = sand.u32 %s61, 1
        %s275 = sand.u32 %s61, 1
        %s276 = smul.addr %s275, 128
        %s277 = scalar_lea.vmem [#allocation5], %s276
        %p278 = pneg %p74
        %p279 = pneg %p71
        %p280 = pneg %p100
        %p281 = pneg %p97
        %p282 = scmp.lt.s32.totalorder %s19, 1
        %s283 = scalar_select %p282, %s19, 1
        %s284 = smul.addr %s283, 8
        %s285 = scalar_lea.vmem %s2, %s284
        %p286 = pneg %p126
        %p287 = pneg %p123
        %p288 = scmp.lt.s32.totalorder %s19, 1
        %s289 = scalar_select %p288, %s19, 1
        %s290 = smul.addr %s289, 8
        %s291 = scalar_lea.vmem %s3, %s290
        %p292 = scmp.lt.s32.totalorder %s19, 1
        %s293 = scalar_select %p292, %s19, 1
        %s294 = smul.addr %s293, 4
        %s295 = scalar_lea.vmem %s0, %s294
        %s296 = smul.u32 2, %s20
        %p297 = scmp.lt.s32.totalorder %s19, 1
        %s298 = scalar_select %p297, %s19, 1
        %s299 = smul.addr %s298, 8
        %s300 = scalar_lea.vmem %s2, %s299
        %p301 = scmp.lt.s32.totalorder %s19, 1
        %s302 = scalar_select %p301, %s19, 1
        %s303 = smul.addr %s302, 8
        %s304 = scalar_lea.vmem %s3, %s303
        %p306 = scmp.eq.s32.totalorder %s20, 0
        // Predicated region
        $region67: #{critic_forward.6} parent=61 // pred_check
          %p307 = pneg %p306
        $region68: #{critic_forward.6} parent=61 // pred_check_branch
          %309 = sbr.rel (%p307) target = $region70
        $region69: #{critic_forward.6} parent=61 // pred_region
          %vm310 = vcmask 7168
          %311 = vst.msk [vmem:[#allocation2] sm:$0xff] %vm310, -inf
          %312 = vst.msk [vmem:[#allocation3] sm:$0xff] %vm310, 0.0
          %313 = vst.msk [vmem:[#allocation4] sm:$0xff] %vm310, 0
        $region70: #{critic_forward.6} parent=61 // pred_fallthru
          _
        %v314 = vld [vmem:[%s295] sm:$0xf]
        %v315 = vld [vmem:[%s264] sm:$0xff]
        %v316 = vld [vmem:[%s264 + $0x8] sm:$0xff]
        %v317 = vld [vmem:[%s264 + $0x10] sm:$0xff]
        %v318 = vld [vmem:[%s264 + $0x18] sm:$0xff]
        %v319 = vld [vmem:[%s264 + $0x20] sm:$0xff]
        %v320 = vld [vmem:[%s264 + $0x28] sm:$0xff]
        %v321 = vld [vmem:[%s264 + $0x30] sm:$0xff]
        %v322 = vld [vmem:[%s264 + $0x38] sm:$0xff]
        %v323 = vld [vmem:[%s264 + $0x40] sm:$0xff]
        %v324 = vld [vmem:[%s264 + $0x48] sm:$0xff]
        %v325 = vld [vmem:[%s264 + $0x50] sm:$0xff]
        %v326 = vld [vmem:[%s264 + $0x58] sm:$0xff]
        %v327 = vld [vmem:[%s264 + $0x60] sm:$0xff]
        %v328 = vld [vmem:[%s264 + $0x68] sm:$0xff]
        %v329 = vld [vmem:[%s264 + $0x70] sm:$0xff]
        %v330 = vld [vmem:[%s264 + $0x78] sm:$0xff]
        %v347 = vunpack.c.l.b16 %v315
        %v348 = vunpack.c.h.b16 %v315
        %v349 = vunpack.c.l.b16 %v316
        %v350 = vunpack.c.h.b16 %v316
        %v351 = vunpack.c.l.b16 %v317
        %v352 = vunpack.c.h.b16 %v317
        %v353 = vunpack.c.l.b16 %v318
        %v354 = vunpack.c.h.b16 %v318
        %v355 = vunpack.c.l.b16 %v319
        %v356 = vunpack.c.h.b16 %v319
        %v357 = vunpack.c.l.b16 %v320
        %v358 = vunpack.c.h.b16 %v320
        %v359 = vunpack.c.l.b16 %v321
        %v360 = vunpack.c.h.b16 %v321
        %v361 = vunpack.c.l.b16 %v322
        %v362 = vunpack.c.h.b16 %v322
        %v363 = vunpack.c.l.b16 %v323
        %v364 = vunpack.c.h.b16 %v323
        %v365 = vunpack.c.l.b16 %v324
        %v366 = vunpack.c.h.b16 %v324
        %v367 = vunpack.c.l.b16 %v325
        %v368 = vunpack.c.h.b16 %v325
        %v369 = vunpack.c.l.b16 %v326
        %v370 = vunpack.c.h.b16 %v326
        %v371 = vunpack.c.l.b16 %v327
        %v372 = vunpack.c.h.b16 %v327
        %v373 = vunpack.c.l.b16 %v328
        %v374 = vunpack.c.h.b16 %v328
        %v375 = vunpack.c.l.b16 %v329
        %v376 = vunpack.c.h.b16 %v329
        %v377 = vunpack.c.l.b16 %v330
        %v378 = vunpack.c.h.b16 %v330
        %v379 = vpack.c.b16 %v349, %v347
        %v380 = vpack.c.b16 %v350, %v348
        %v381 = vpack.c.b16 %v353, %v351
        %v382 = vpack.c.b16 %v354, %v352
        %v383 = vpack.c.b16 %v357, %v355
        %v384 = vpack.c.b16 %v358, %v356
        %v385 = vpack.c.b16 %v361, %v359
        %v386 = vpack.c.b16 %v362, %v360
        %v387 = vpack.c.b16 %v365, %v363
        %v388 = vpack.c.b16 %v366, %v364
        %v389 = vpack.c.b16 %v369, %v367
        %v390 = vpack.c.b16 %v370, %v368
        %v391 = vpack.c.b16 %v373, %v371
        %v392 = vpack.c.b16 %v374, %v372
        %v393 = vpack.c.b16 %v377, %v375
        %v394 = vpack.c.b16 %v378, %v376
        %411 = vmatprep.subr.bf16.mxu0 %v380
        %412 = vmatpush1.bf16.msra.mxu0 %v379
        %413 = vmatprep.subr.bf16.mxu0 %v382
        %414 = vmatpush1.bf16.msra.mxu0 %v381
        %415 = vmatprep.subr.bf16.mxu0 %v384
        %416 = vmatpush1.bf16.msra.mxu0 %v383
        %417 = vmatprep.subr.bf16.mxu0 %v386
        %418 = vmatpush1.bf16.msra.mxu0 %v385
        %419 = vmatprep.subr.bf16.mxu0 %v388
        %420 = vmatpush1.bf16.msra.mxu0 %v387
        %421 = vmatprep.subr.bf16.mxu0 %v390
        %422 = vmatpush1.bf16.msra.mxu0 %v389
        %423 = vmatprep.subr.bf16.mxu0 %v392
        %424 = vmatpush1.bf16.msra.mxu0 %v391
        %425 = vmatprep.subr.bf16.mxu0 %v394
        %426 = vmatpush1.bf16.msra.mxu0 %v393
        %427 = vmatprep.subr.bf16.mxu0 0
        %428 = vmatpush1.bf16.msra.mxu0 0
        %429 = vmatprep.subr.bf16.mxu0 0
        %430 = vmatpush1.bf16.msra.mxu0 0
        %431 = vmatprep.subr.bf16.mxu0 0
        %432 = vmatpush1.bf16.msra.mxu0 0
        %433 = vmatprep.subr.bf16.mxu0 0
        %434 = vmatpush1.bf16.msra.mxu0 0
        %435 = vmatprep.subr.bf16.mxu0 0
        %436 = vmatpush1.bf16.msra.mxu0 0
        %437 = vmatprep.subr.bf16.mxu0 0
        %438 = vmatpush1.bf16.msra.mxu0 0
        %439 = vmatprep.subr.bf16.mxu0 0
        %440 = vmatpush1.bf16.msra.mxu0 0
        %441 = vmatprep.subr.bf16.mxu0 0
        %442 = vmatpush1.bf16.msra.mxu0 0
        %443 = vmatprep.mubr.bf16.mxu0 0
        %444 = vmatmul.mubr.bf16.gmra.mrb[0].mxu0 %v314
        %v445 = vpop.f32.mrb[0].mxu0
        %v446 = vadd.f32 0.0, %v445
        %v447 = vpop.f32.mrb[0].mxu0
        %v448 = vadd.f32 0.0, %v447
        %v449 = vpop.f32.mrb[0].mxu0
        %v450 = vpop.f32.mrb[0].mxu0
        %451 = vdwg.mxu0
        %v452 = vmax.f32 %v446, %v448
        %453 = vmax.xlane.f32.xlu0 %v452
        %v454 = vpop.xlane.xlu0 %453
        %v455 = vlaneseq
        %v456 = vand.u32 %v455, 127
        %v457 = vadd.s32 %v456, 128
        %vm458 = vcmp.ge.f32.partialorder %v446, %v454
        %vm459 = vcmp.ge.f32.partialorder %v448, %v454
        %v460 = vsel %vm458, %v456, 256
        %v461 = vsel %vm459, %v457, 256
        %vm462 = vcmp.lt.s32.totalorder %v460, %v461
        %v463 = vsel %vm462, %v460, %v461
        %v464 = vand.u32 %v463, 65535
        %v465 = vshra.s32 %v463, 16
        %v466 = vcvt.s32.f32 %v464
        %v467 = vcvt.s32.f32 %v465
        %468 = vmin.xlane.f32.xlu0 %v467
        %v469 = vpop.xlane.xlu0 %468
        %vm470 = vcmp.eq.f32.partialorder %v467, %v469
        %v471 = vsel %vm470, %v466, inf
        %472 = vmin.xlane.f32.xlu0 %v471
        %v473 = vpop.xlane.xlu0 %472
        %v474 = vcvt.f32.s32 %v473
        %v475 = vcvt.f32.s32 %v469
        %v476 = vshll.u32 %v475, 16
        %v477 = vadd.s32 %v476, %v474
        %s478 = smul.u32 %s20, 256
        %v479 = vstv %s478
        %v480 = vadd.s32 %v477, %v479
        %v481 = vld [vmem:[#allocation2] sm:$0xff]
        %v482 = vmax.f32 %v481, %v454
        %v483 = vld [vmem:[#allocation3] sm:$0xff]
        %v484 = vsub.f32 %v481, %v482
        %v485 = vmul.f32 %v484, 1.442695
        %v486 = vpow.pop %v485
        %v487 = vmul.f32 %v483, %v486
        %489 = vset.pattern.permute.xlu0 0
        %490 = vperm.xlu0 %489, %v482
        %v491 = vpop.permute.xlu0 %490
        %v493 = vsub.f32 %v446, %v491
        %v494 = vsub.f32 %v448, %v491
        %v495 = vmul.f32 %v493, 1.442695
        %v496 = vpow.pop %v495
        %v497 = vmul.f32 %v494, 1.442695
        %v498 = vpow.pop %v497
        %v499 = vadd.f32 %v496, %v498
        %500 = vadd.xlane.f32.xlu0 %v499
        %v501 = vpop.xlane.xlu0 %500
        %v502 = vadd.f32 %v487, %v501
        %vm503 = vcmask 7168
        %504 = vst.msk [vmem:[#allocation3] sm:$0xff] %vm503, %v502
        %vm505 = vcmp.gt.f32.partialorder %v454, %v481
        %v506 = vld [vmem:[#allocation4] sm:$0xff]
        %v507 = vsel %vm505, %v480, %v506
        %508 = vst.msk [vmem:[#allocation4] sm:$0xff] %vm503, %v507
        %509 = vst.msk [vmem:[#allocation2] sm:$0xff] %vm503, %v482
        %p510 = scmp.eq.s32.totalorder %s20, 3
        // Predicated region
        $region71: #{critic_forward.6} parent=61 // pred_check
          %p511 = pneg %p510
        $region72: #{critic_forward.6} parent=61 // pred_check_branch
          %513 = sbr.rel (%p511) target = $region74
        $region73: #{critic_forward.6} parent=61 // pred_region
          %v514 = vld [vmem:[#allocation2] sm:$0xff]
          %v515 = vld [vmem:[#allocation3] sm:$0xff]
          %v516 = vlog2.pop %v515
          %v517 = vmul.f32 %v516, 0.6931472
          %v518 = vadd.f32 %v514, %v517
          %519 = vst.msk [vmem:[%s300] sm:$0xff] %vm503, %v518
          %v520 = vld [vmem:[#allocation4] sm:$0xff]
          %521 = vst.msk [vmem:[%s304] sm:$0xff] %vm503, %v520
        $region74: #{critic_forward.6} parent=61 // pred_fallthru
          _
        %p522 = scmp.lt.s32.totalorder %s19, 1
        %s523 = scalar_select %p522, %s19, 1
        %s524 = smul.addr %s523, 8
        %s525 = scalar_lea.vmem %s2, %s524
        %p526 = scmp.lt.s32.totalorder %s19, 1
        %s527 = scalar_select %p526, %s19, 1
        %s528 = smul.addr %s527, 8
        %s529 = scalar_lea.vmem %s3, %s528
        // Predicated region
        $region75: #{critic_forward.6} parent=61 // pred_check
          %p530 = pneg %p97
        $region76: #{critic_forward.6} parent=61 // pred_check_branch
          %532 = sbr.rel (%p530) target = $region78
        $region77: #{critic_forward.6} parent=61 // pred_region
          _
        $region78: #{critic_forward.6} parent=61 // pred_fallthru
          _
        // Predicated region
        $region79: #{critic_forward.6} parent=61 // pred_check
          %p533 = pneg %p123
        $region80: #{critic_forward.6} parent=61 // pred_check_branch
          %535 = sbr.rel (%p533) target = $region82
        $region81: #{critic_forward.6} parent=61 // pred_region
          _
        $region82: #{critic_forward.6} parent=61 // pred_fallthru
          _
      $region62: #{critic_forward.6} parent=5 // pred_fallthru
        _
      %p536 = scmp.le.s32.totalorder 2, %s10
      // Predicated region
      $region83: #{critic_forward.6} parent=5 // pred_check
        %p537 = pneg %p536
      $region84: #{critic_forward.6} parent=5 // pred_check_branch
        %539 = sbr.rel (%p537) target = $region86
      $region85: #{critic_forward.6} parent=5 // pred_region
        %s540 = ssub.s32 %s10, 2
        // Predicated region
        $region87: #{critic_forward.6} parent=85 // pred_check
          %p541 = pneg %p103
        $region88: #{critic_forward.6} parent=85 // pred_check_branch
          %543 = sbr.rel (%p541) target = $region90
        $region89: #{critic_forward.6} parent=85 // pred_region
          %p544 = scmp.lt.s32.totalorder %s21, 1
          %s545 = scalar_select %p544, %s21, 1
          %s546 = smul.addr %s545, 8
          %s547 = scalar_lea.vmem %s2, %s546
        $region90: #{critic_forward.6} parent=85 // pred_fallthru
          _
        // Predicated region
        $region91: #{critic_forward.6} parent=85 // pred_check
          %p548 = pneg %p129
        $region92: #{critic_forward.6} parent=85 // pred_check_branch
          %550 = sbr.rel (%p548) target = $region94
        $region93: #{critic_forward.6} parent=85 // pred_region
          %p551 = scmp.lt.s32.totalorder %s21, 1
          %s552 = scalar_select %p551, %s21, 1
          %s553 = smul.addr %s552, 8
          %s554 = scalar_lea.vmem %s3, %s553
        $region94: #{critic_forward.6} parent=85 // pred_fallthru
          _
      $region86: #{critic_forward.6} parent=5 // pred_fallthru
        _
    $region6: #{critic_forward.6} parent=1 // loop_footer
      %s14 = sadd.s32 1, %s10
    $region7: #{critic_forward.6} parent=1 // loop_footer_branch
      %9 = sbr.rel target = $region3
    $region8: #{critic_forward.6} parent=1 // loop_exit
      _

// kernel: critic_forward.7
$region0: #{critic_forward.7}
  #allocation0 [shape = 'u32[]', space=smem, size = 0x4, offset = 0x4, fixed_abs, tag = 'smem constant byte address 0x4 - core index']
  #allocation1 [shape = 'u32[144,128]{1,0:T(1,128)}', space=vmem, size = 0x12000, scoped, tag = 'internal scratch']
  %s0 = inlined_call_operand.vmem [shape: bf16[16,128], index: 0, kind: input, shape index: {}]
  %s1 = inlined_call_operand.vmem [shape: bf16[128,1024], index: 1, kind: input, shape index: {}]
  %s2 = inlined_call_operand.vmem [shape: f32[16,1], index: 2, kind: input, shape index: {}]
  %s3 = inlined_call_operand.hbm [shape: f32[16,1024], index: 3, kind: output, shape index: {}]
  %s4 = sld [smem:[#allocation0]]
  $region83: #{critic_forward.7} parent=0
    _
  %s6 = ssub.s32 1, %s4
  %s7 = scalar_select 0, %s6, %s4
  $region1: #{critic_forward.7} parent=0
    #allocation2 [shape = 'u8[131072]{0}', space=vmem, size = 0x20000, scoped, tag = 'input window, operand 1']
    #allocation3 [shape = 'u8[16384]{0}', space=vmem, size = 0x4000, scoped, tag = 'output window, operand 0']
    #allocation4 [shape = 's32[2]{0}', space=sflag, size = 0x8, scoped, tag = 'scoped memory for critic_forward.7']
    %8 = vsyncpa [#allocation4], 0
    %s9 = scalar_lea.sflag [#allocation4], 1
    %10 = vsyncpa %s9, 0
    loop: start=0, step=1, limit=10
    $region2: #{critic_forward.7} parent=1 // loop_pre_header
      _
    $region3: #{critic_forward.7} parent=1 // loop_header
      %s12 = sphi 0, %s16
      %p13 = scmp.ge.s32.totalorder %s12, 10
      %s19 = sphi 0, %s31
      %s20 = sphi 0, %s27
      %s21 = sphi 0, %s19
      %s22 = sphi 0, %s20
      %s23 = sphi 0, %s21
      %s24 = sphi 0, %s22
      %s34 = sphi 0, %s36
      %s37 = sphi 0, %s34
      %s38 = sphi 0, %s37
      %s54 = sphi 0, %s38
      %s60 = sphi 0, %s62
      %s63 = sphi 0, %s60
      %s64 = sphi 0, %s63
      %s80 = sphi 0, %s64
      %s86 = sphi 0, %s88
      %s89 = sphi 0, %s86
      %s90 = sphi 0, %s89
      %s106 = sphi 0, %s90
      %s114 = sphi 0, %s116
      %s117 = sphi 0, %s114
      %s118 = sphi 0, %s117
      %s134 = sphi 0, %s118
    $region4: #{critic_forward.7} parent=1 // loop_header_branch
      %15 = sbr.rel (%p13) target = $region8
    $region5: #{critic_forward.7} parent=1 // loop_body
      %s17 = ssub.s32 %s12, 1
      %s18 = ssub.s32 %s12, 2
      %s25 = sadd.s32 1, %s20
      %p26 = scmp.ge.s32.totalorder %s25, 4
      %s27 = scalar_select %p26, 0, %s25
      %s28 = sadd.s32 1, %s19
      %s29 = scalar_select %p26, %s28, %s19
      %p30 = scmp.ge.s32.totalorder %s29, 2
      %s31 = scalar_select %p30, 0, %s29
      %s32 = ssub.s32 %s19, %s31
      %p33 = scmp.eq.s32.totalorder %s32, 0
      %s35 = sadd.s32 %s34, 1
      %s36 = scalar_select %p33, %s34, %s35
      %p39 = pneg %p33
      %p40 = scmp.eq.s32.totalorder %s12, 7
      %p41 = por %p39, %p40
      %p42 = scmp.ne.s32.totalorder %s34, %s37
      %p43 = scmp.eq.s32.totalorder %s12, 0
      %p44 = por %p42, %p43
      %p45 = scmp.ne.s32.totalorder %s34, %s37
      %p46 = scmp.eq.s32.totalorder %s17, 7
      %p47 = por %p45, %p46
      %p48 = scmp.ne.s32.totalorder %s37, %s38
      %p49 = scmp.eq.s32.totalorder %s17, 0
      %p50 = por %p48, %p49
      %p51 = scmp.ne.s32.totalorder %s37, %s38
      %p52 = scmp.eq.s32.totalorder %s18, 7
      %p53 = por %p51, %p52
      %p55 = scmp.ne.s32.totalorder %s38, %s54
      %p56 = scmp.eq.s32.totalorder %s18, 0
      %p57 = por %p55, %p56
      %s58 = ssub.s32 %s20, %s27
      %p59 = scmp.eq.s32.totalorder %s58, 0
      %s61 = sadd.s32 %s60, 1
      %s62 = scalar_select %p59, %s60, %s61
      %p65 = pneg %p59
      %p66 = scmp.eq.s32.totalorder %s12, 7
      %p67 = por %p65, %p66
      %p68 = scmp.ne.s32.totalorder %s60, %s63
      %p69 = scmp.eq.s32.totalorder %s12, 0
      %p70 = por %p68, %p69
      %p71 = scmp.ne.s32.totalorder %s60, %s63
      %p72 = scmp.eq.s32.totalorder %s17, 7
      %p73 = por %p71, %p72
      %p74 = scmp.ne.s32.totalorder %s63, %s64
      %p75 = scmp.eq.s32.totalorder %s17, 0
      %p76 = por %p74, %p75
      %p77 = scmp.ne.s32.totalorder %s63, %s64
      %p78 = scmp.eq.s32.totalorder %s18, 7
      %p79 = por %p77, %p78
      %p81 = scmp.ne.s32.totalorder %s64, %s80
      %p82 = scmp.eq.s32.totalorder %s18, 0
      %p83 = por %p81, %p82
      %s84 = ssub.s32 %s19, %s31
      %p85 = scmp.eq.s32.totalorder %s84, 0
      %s87 = sadd.s32 %s86, 1
      %s88 = scalar_select %p85, %s86, %s87
      %p91 = pneg %p85
      %p92 = scmp.eq.s32.totalorder %s12, 7
      %p93 = por %p91, %p92
      %p94 = scmp.ne.s32.totalorder %s86, %s89
      %p95 = scmp.eq.s32.totalorder %s12, 0
      %p96 = por %p94, %p95
      %p97 = scmp.ne.s32.totalorder %s86, %s89
      %p98 = scmp.eq.s32.totalorder %s17, 7
      %p99 = por %p97, %p98
      %p100 = scmp.ne.s32.totalorder %s89, %s90
      %p101 = scmp.eq.s32.totalorder %s17, 0
      %p102 = por %p100, %p101
      %p103 = scmp.ne.s32.totalorder %s89, %s90
      %p104 = scmp.eq.s32.totalorder %s18, 7
      %p105 = por %p103, %p104
      %p107 = scmp.ne.s32.totalorder %s90, %s106
      %p108 = scmp.eq.s32.totalorder %s18, 0
      %p109 = por %p107, %p108
      %s110 = ssub.s32 %s19, %s31
      %s111 = ssub.s32 %s20, %s27
      %s112 = sor.u32 %s110, %s111
      %p113 = scmp.eq.s32.totalorder %s112, 0
      %s115 = sadd.s32 %s114, 1
      %s116 = scalar_select %p113, %s114, %s115
      %p119 = pneg %p113
      %p120 = scmp.eq.s32.totalorder %s12, 7
      %p121 = por %p119, %p120
      %p122 = scmp.ne.s32.totalorder %s114, %s117
      %p123 = scmp.eq.s32.totalorder %s12, 0
      %p124 = por %p122, %p123
      %p125 = scmp.ne.s32.totalorder %s114, %s117
      %p126 = scmp.eq.s32.totalorder %s17, 7
      %p127 = por %p125, %p126
      %p128 = scmp.ne.s32.totalorder %s117, %s118
      %p129 = scmp.eq.s32.totalorder %s17, 0
      %p130 = por %p128, %p129
      %p131 = scmp.ne.s32.totalorder %s117, %s118
      %p132 = scmp.eq.s32.totalorder %s18, 7
      %p133 = por %p131, %p132
      %p135 = scmp.ne.s32.totalorder %s118, %s134
      %p136 = scmp.eq.s32.totalorder %s18, 0
      %p137 = por %p135, %p136
      %p138 = scmp.le.s32.totalorder 1, %s12
      %p139 = scmp.lt.s32.totalorder %s12, 9
      %p140 = pnand %p138, %p139
      %p141 = pneg %p140
      // Predicated region
      $region9: #{critic_forward.7} parent=5 // pred_check
        _
      $region10: #{critic_forward.7} parent=5 // pred_check_branch
        %143 = sbr.rel (%p140) target = $region12
      $region11: #{critic_forward.7} parent=5 // pred_region
        %s144 = ssub.s32 %s12, 1
      $region12: #{critic_forward.7} parent=5 // pred_fallthru
        _
      %p145 = scmp.lt.s32.totalorder %s12, 8
      // Predicated region
      $region13: #{critic_forward.7} parent=5 // pred_check
        %p146 = pneg %p145
      $region14: #{critic_forward.7} parent=5 // pred_check_branch
        %148 = sbr.rel (%p146) target = $region16
      $region15: #{critic_forward.7} parent=5 // pred_region
        // Predicated region
        $region17: #{critic_forward.7} parent=15 // pred_check
          %p149 = pneg %p44
        $region18: #{critic_forward.7} parent=15 // pred_check_branch
          %151 = sbr.rel (%p149) target = $region20
        $region19: #{critic_forward.7} parent=15 // pred_region
          %p152 = scmp.lt.s32.totalorder %s19, 1
          %s153 = scalar_select %p152, %s19, 1
          %s154 = smul.addr %s153, 4
          %s155 = scalar_lea.vmem %s0, %s154
        $region20: #{critic_forward.7} parent=15 // pred_fallthru
          _
        // Predicated region
        $region21: #{critic_forward.7} parent=15 // pred_check
          %p156 = pneg %p70
        $region22: #{critic_forward.7} parent=15 // pred_check_branch
          %158 = sbr.rel (%p156) target = $region24
        $region23: #{critic_forward.7} parent=15 // pred_region
          %s159 = sand.u32 %s60, 1
          %s160 = sand.u32 %s60, 1
          %s161 = smul.addr %s160, 128
          %s162 = scalar_lea.vmem [#allocation2], %s161
          %s163 = smul.u32 2, %s20
          %s164 = smul.addr %s163, 4
          %s165 = scalar_lea.vmem %s1, %s164
          // Predicated region
          $region25: #{critic_forward.7} parent=23 // pred_check
            _
          $region26: #{critic_forward.7} parent=23 // pred_check_branch
            %167 = sbr.rel (0) target = $region28
          $region27: #{critic_forward.7} parent=23 // pred_region
            // Predicated region
            $region29: #{critic_forward.7} parent=27 // pred_check
              _
            $region30: #{critic_forward.7} parent=27 // pred_check_branch
              %169 = sbr.rel (0) target = $region32
            $region31: #{critic_forward.7} parent=27 // pred_region
              // Predicated region
              $region44: #{critic_forward.7} parent=31 // pred_check
                _
              $region45: #{critic_forward.7} parent=31 // pred_check_branch
                %214 = sbr.rel (0) target = $region47
              $region46: #{critic_forward.7} parent=31 // pred_region
                loop: start=0, step=1, limit=1
                $region48: #{critic_forward.7} parent=46 // loop_pre_header
                  _
                $region49: #{critic_forward.7} parent=46 // loop_header
                  %s216 = sphi 0, %s220
                  %p217 = scmp.ge.s32.totalorder %s216, 1
                  %s221 = sphi %s165, %s165
                  %s222 = sphi %s162, %s162
                $region50: #{critic_forward.7} parent=46 // loop_header_branch
                  %219 = sbr.rel (%p217) target = $region54
                $region51: #{critic_forward.7} parent=46 // loop_body
                  %v223 = vld [vmem:[%s221] sm:$0xff]
                  %224 = vst [vmem:[%s222] sm:$0xff] %v223
                  %v225 = vld [vmem:[%s221 + $0x20] sm:$0xff]
                  %226 = vst [vmem:[%s222 + $0x8] sm:$0xff] %v225
                  %v227 = vld [vmem:[%s221 + $0x40] sm:$0xff]
                  %228 = vst [vmem:[%s222 + $0x10] sm:$0xff] %v227
                  %v229 = vld [vmem:[%s221 + $0x60] sm:$0xff]
                  %230 = vst [vmem:[%s222 + $0x18] sm:$0xff] %v229
                  %v231 = vld [vmem:[%s221 + $0x80] sm:$0xff]
                  %232 = vst [vmem:[%s222 + $0x20] sm:$0xff] %v231
                  %v233 = vld [vmem:[%s221 + $0xa0] sm:$0xff]
                  %234 = vst [vmem:[%s222 + $0x28] sm:$0xff] %v233
                  %v235 = vld [vmem:[%s221 + $0xc0] sm:$0xff]
                  %236 = vst [vmem:[%s222 + $0x30] sm:$0xff] %v235
                  %v237 = vld [vmem:[%s221 + $0xe0] sm:$0xff]
                  %238 = vst [vmem:[%s222 + $0x38] sm:$0xff] %v237
                  %v239 = vld [vmem:[%s221 + $0x100] sm:$0xff]
                  %240 = vst [vmem:[%s222 + $0x40] sm:$0xff] %v239
                  %v241 = vld [vmem:[%s221 + $0x120] sm:$0xff]
                  %242 = vst [vmem:[%s222 + $0x48] sm:$0xff] %v241
                  %v243 = vld [vmem:[%s221 + $0x140] sm:$0xff]
                  %244 = vst [vmem:[%s222 + $0x50] sm:$0xff] %v243
                  %v245 = vld [vmem:[%s221 + $0x160] sm:$0xff]
                  %246 = vst [vmem:[%s222 + $0x58] sm:$0xff] %v245
                  %v247 = vld [vmem:[%s221 + $0x180] sm:$0xff]
                  %248 = vst [vmem:[%s222 + $0x60] sm:$0xff] %v247
                  %v249 = vld [vmem:[%s221 + $0x1a0] sm:$0xff]
                  %250 = vst [vmem:[%s222 + $0x68] sm:$0xff] %v249
                  %v251 = vld [vmem:[%s221 + $0x1c0] sm:$0xff]
                  %252 = vst [vmem:[%s222 + $0x70] sm:$0xff] %v251
                  %v253 = vld [vmem:[%s221 + $0x1e0] sm:$0xff]
                  %254 = vst [vmem:[%s222 + $0x78] sm:$0xff] %v253
                $region52: #{critic_forward.7} parent=46 // loop_footer
                  %s220 = sadd.s32 1, %s216
                $region53: #{critic_forward.7} parent=46 // loop_footer_branch
                  %215 = sbr.rel target = $region49
                $region54: #{critic_forward.7} parent=46 // loop_exit
                  _
              $region47: #{critic_forward.7} parent=31 // pred_fallthru
                _
              // Predicated region
              $region55: #{critic_forward.7} parent=31 // pred_check
                _
              $region56: #{critic_forward.7} parent=31 // pred_check_branch
                %256 = sbr.rel target = $region58
              $region57: #{critic_forward.7} parent=31 // pred_region
                _
              $region58: #{critic_forward.7} parent=31 // pred_fallthru
                _
            $region32: #{critic_forward.7} parent=27 // pred_fallthru
              _
            // Predicated region
            $region33: #{critic_forward.7} parent=27 // pred_check
              _
            $region34: #{critic_forward.7} parent=27 // pred_check_branch
              %171 = sbr.rel target = $region36
            $region35: #{critic_forward.7} parent=27 // pred_region
              loop: start=0, step=1, limit=1
              $region37: #{critic_forward.7} parent=35 // loop_pre_header
                _
              $region38: #{critic_forward.7} parent=35 // loop_header
                %s174 = sphi 0, %s178
                %p175 = scmp.ge.s32.totalorder %s174, 1
                %s179 = sphi %s165, %s165
                %s180 = sphi %s162, %s162
              $region39: #{critic_forward.7} parent=35 // loop_header_branch
                %177 = sbr.rel (%p175) target = $region43
              $region40: #{critic_forward.7} parent=35 // loop_body
                %v181 = vld [vmem:[%s179] sm:$0xff]
                %182 = vst [vmem:[%s180] sm:$0xff] %v181
                %v183 = vld [vmem:[%s179 + $0x20] sm:$0xff]
                %184 = vst [vmem:[%s180 + $0x8] sm:$0xff] %v183
                %v185 = vld [vmem:[%s179 + $0x40] sm:$0xff]
                %186 = vst [vmem:[%s180 + $0x10] sm:$0xff] %v185
                %v187 = vld [vmem:[%s179 + $0x60] sm:$0xff]
                %188 = vst [vmem:[%s180 + $0x18] sm:$0xff] %v187
                %v189 = vld [vmem:[%s179 + $0x80] sm:$0xff]
                %190 = vst [vmem:[%s180 + $0x20] sm:$0xff] %v189
                %v191 = vld [vmem:[%s179 + $0xa0] sm:$0xff]
                %192 = vst [vmem:[%s180 + $0x28] sm:$0xff] %v191
                %v193 = vld [vmem:[%s179 + $0xc0] sm:$0xff]
                %194 = vst [vmem:[%s180 + $0x30] sm:$0xff] %v193
                %v195 = vld [vmem:[%s179 + $0xe0] sm:$0xff]
                %196 = vst [vmem:[%s180 + $0x38] sm:$0xff] %v195
                %v197 = vld [vmem:[%s179 + $0x100] sm:$0xff]
                %198 = vst [vmem:[%s180 + $0x40] sm:$0xff] %v197
                %v199 = vld [vmem:[%s179 + $0x120] sm:$0xff]
                %200 = vst [vmem:[%s180 + $0x48] sm:$0xff] %v199
                %v201 = vld [vmem:[%s179 + $0x140] sm:$0xff]
                %202 = vst [vmem:[%s180 + $0x50] sm:$0xff] %v201
                %v203 = vld [vmem:[%s179 + $0x160] sm:$0xff]
                %204 = vst [vmem:[%s180 + $0x58] sm:$0xff] %v203
                %v205 = vld [vmem:[%s179 + $0x180] sm:$0xff]
                %206 = vst [vmem:[%s180 + $0x60] sm:$0xff] %v205
                %v207 = vld [vmem:[%s179 + $0x1a0] sm:$0xff]
                %208 = vst [vmem:[%s180 + $0x68] sm:$0xff] %v207
                %v209 = vld [vmem:[%s179 + $0x1c0] sm:$0xff]
                %210 = vst [vmem:[%s180 + $0x70] sm:$0xff] %v209
                %v211 = vld [vmem:[%s179 + $0x1e0] sm:$0xff]
                %212 = vst [vmem:[%s180 + $0x78] sm:$0xff] %v211
              $region41: #{critic_forward.7} parent=35 // loop_footer
                %s178 = sadd.s32 1, %s174
              $region42: #{critic_forward.7} parent=35 // loop_footer_branch
                %173 = sbr.rel target = $region38
              $region43: #{critic_forward.7} parent=35 // loop_exit
                _
            $region36: #{critic_forward.7} parent=27 // pred_fallthru
              _
          $region28: #{critic_forward.7} parent=23 // pred_fallthru
            _
          %257 = vnop
        $region24: #{critic_forward.7} parent=15 // pred_fallthru
          _
        // Predicated region
        $region59: #{critic_forward.7} parent=15 // pred_check
          %p258 = pneg %p96
        $region60: #{critic_forward.7} parent=15 // pred_check_branch
          %260 = sbr.rel (%p258) target = $region62
        $region61: #{critic_forward.7} parent=15 // pred_region
          %p261 = scmp.lt.s32.totalorder %s19, 1
          %s262 = scalar_select %p261, %s19, 1
          %s263 = smul.addr %s262, 8
          %s264 = scalar_lea.vmem %s2, %s263
        $region62: #{critic_forward.7} parent=15 // pred_fallthru
          _
      $region16: #{critic_forward.7} parent=5 // pred_fallthru
        _
      %p265 = scmp.le.s32.totalorder 1, %s12
      %p266 = scmp.lt.s32.totalorder %s12, 9
      %p267 = pnand %p265, %p266
      %p268 = pneg %p267
      // Predicated region
      $region63: #{critic_forward.7} parent=5 // pred_check
        _
      $region64: #{critic_forward.7} parent=5 // pred_check_branch
        %270 = sbr.rel (%p267) target = $region66
      $region65: #{critic_forward.7} parent=5 // pred_region
        %s271 = ssub.s32 %s12, 1
        %s272 = sand.u32 %s63, 1
        %s273 = sand.u32 %s63, 1
        %s274 = smul.addr %s273, 128
        %s275 = scalar_lea.vmem [#allocation2], %s274
        // Predicated region
        $region67: #{critic_forward.7} parent=65 // pred_check
          %p276 = pneg %p76
        $region68: #{critic_forward.7} parent=65 // pred_check_branch
          %278 = sbr.rel (%p276) target = $region70
        $region69: #{critic_forward.7} parent=65 // pred_region
          _
        $region70: #{critic_forward.7} parent=65 // pred_fallthru
          _
        %p279 = scmp.lt.s32.totalorder %s21, 1
        %s280 = scalar_select %p279, %s21, 1
        %s281 = smul.addr %s280, 4
        %s282 = scalar_lea.vmem %s0, %s281
        %p283 = pneg %p50
        %p284 = pneg %p47
        %s285 = sand.u32 %s63, 1
        %s286 = sand.u32 %s63, 1
        %s287 = smul.addr %s286, 128
        %s288 = scalar_lea.vmem [#allocation2], %s287
        %p289 = pneg %p76
        %p290 = pneg %p73
        %p291 = scmp.lt.s32.totalorder %s21, 1
        %s292 = scalar_select %p291, %s21, 1
        %s293 = smul.addr %s292, 8
        %s294 = scalar_lea.vmem %s2, %s293
        %p295 = pneg %p102
        %p296 = pneg %p99
        %p297 = pneg %p130
        %p298 = pneg %p127
        %s299 = sand.u32 %s117, 1
        %s300 = scalar_lea.sflag [#allocation4], %s299
        %s301 = sand.u32 %s117, 1
        %s302 = smul.addr %s301, 16
        %s303 = scalar_lea.vmem [#allocation3], %s302
        %p304 = scmp.lt.s32.totalorder %s21, 1
        %s305 = scalar_select %p304, %s21, 1
        %s306 = smul.addr %s305, 4
        %s307 = scalar_lea.vmem %s0, %s306
        %s308 = smul.u32 2, %s22
        %p309 = scmp.lt.s32.totalorder %s21, 1
        %s310 = scalar_select %p309, %s21, 1
        %s311 = smul.addr %s310, 8
        %s312 = scalar_lea.vmem %s2, %s311
        %s313 = smul.u32 2, %s22
        %v315 = vld [vmem:[%s307] sm:$0xf]
        %v316 = vld [vmem:[%s275] sm:$0xff]
        %v317 = vld [vmem:[%s275 + $0x8] sm:$0xff]
        %v318 = vld [vmem:[%s275 + $0x10] sm:$0xff]
        %v319 = vld [vmem:[%s275 + $0x18] sm:$0xff]
        %v320 = vld [vmem:[%s275 + $0x20] sm:$0xff]
        %v321 = vld [vmem:[%s275 + $0x28] sm:$0xff]
        %v322 = vld [vmem:[%s275 + $0x30] sm:$0xff]
        %v323 = vld [vmem:[%s275 + $0x38] sm:$0xff]
        %v324 = vld [vmem:[%s275 + $0x40] sm:$0xff]
        %v325 = vld [vmem:[%s275 + $0x48] sm:$0xff]
        %v326 = vld [vmem:[%s275 + $0x50] sm:$0xff]
        %v327 = vld [vmem:[%s275 + $0x58] sm:$0xff]
        %v328 = vld [vmem:[%s275 + $0x60] sm:$0xff]
        %v329 = vld [vmem:[%s275 + $0x68] sm:$0xff]
        %v330 = vld [vmem:[%s275 + $0x70] sm:$0xff]
        %v331 = vld [vmem:[%s275 + $0x78] sm:$0xff]
        %v348 = vunpack.c.l.b16 %v316
        %v349 = vunpack.c.h.b16 %v316
        %v350 = vunpack.c.l.b16 %v317
        %v351 = vunpack.c.h.b16 %v317
        %v352 = vunpack.c.l.b16 %v318
        %v353 = vunpack.c.h.b16 %v318
        %v354 = vunpack.c.l.b16 %v319
        %v355 = vunpack.c.h.b16 %v319
        %v356 = vunpack.c.l.b16 %v320
        %v357 = vunpack.c.h.b16 %v320
        %v358 = vunpack.c.l.b16 %v321
        %v359 = vunpack.c.h.b16 %v321
        %v360 = vunpack.c.l.b16 %v322
        %v361 = vunpack.c.h.b16 %v322
        %v362 = vunpack.c.l.b16 %v323
        %v363 = vunpack.c.h.b16 %v323
        %v364 = vunpack.c.l.b16 %v324
        %v365 = vunpack.c.h.b16 %v324
        %v366 = vunpack.c.l.b16 %v325
        %v367 = vunpack.c.h.b16 %v325
        %v368 = vunpack.c.l.b16 %v326
        %v369 = vunpack.c.h.b16 %v326
        %v370 = vunpack.c.l.b16 %v327
        %v371 = vunpack.c.h.b16 %v327
        %v372 = vunpack.c.l.b16 %v328
        %v373 = vunpack.c.h.b16 %v328
        %v374 = vunpack.c.l.b16 %v329
        %v375 = vunpack.c.h.b16 %v329
        %v376 = vunpack.c.l.b16 %v330
        %v377 = vunpack.c.h.b16 %v330
        %v378 = vunpack.c.l.b16 %v331
        %v379 = vunpack.c.h.b16 %v331
        %v380 = vpack.c.b16 %v350, %v348
        %v381 = vpack.c.b16 %v351, %v349
        %v382 = vpack.c.b16 %v354, %v352
        %v383 = vpack.c.b16 %v355, %v353
        %v384 = vpack.c.b16 %v358, %v356
        %v385 = vpack.c.b16 %v359, %v357
        %v386 = vpack.c.b16 %v362, %v360
        %v387 = vpack.c.b16 %v363, %v361
        %v388 = vpack.c.b16 %v366, %v364
        %v389 = vpack.c.b16 %v367, %v365
        %v390 = vpack.c.b16 %v370, %v368
        %v391 = vpack.c.b16 %v371, %v369
        %v392 = vpack.c.b16 %v374, %v372
        %v393 = vpack.c.b16 %v375, %v373
        %v394 = vpack.c.b16 %v378, %v376
        %v395 = vpack.c.b16 %v379, %v377
        %412 = vmatprep.subr.bf16.mxu0 %v381
        %413 = vmatpush1.bf16.msra.mxu0 %v380
        %414 = vmatprep.subr.bf16.mxu0 %v383
        %415 = vmatpush1.bf16.msra.mxu0 %v382
        %416 = vmatprep.subr.bf16.mxu0 %v385
        %417 = vmatpush1.bf16.msra.mxu0 %v384
        %418 = vmatprep.subr.bf16.mxu0 %v387
        %419 = vmatpush1.bf16.msra.mxu0 %v386
        %420 = vmatprep.subr.bf16.mxu0 %v389
        %421 = vmatpush1.bf16.msra.mxu0 %v388
        %422 = vmatprep.subr.bf16.mxu0 %v391
        %423 = vmatpush1.bf16.msra.mxu0 %v390
        %424 = vmatprep.subr.bf16.mxu0 %v393
        %425 = vmatpush1.bf16.msra.mxu0 %v392
        %426 = vmatprep.subr.bf16.mxu0 %v395
        %427 = vmatpush1.bf16.msra.mxu0 %v394
        %428 = vmatprep.subr.bf16.mxu0 0
        %429 = vmatpush1.bf16.msra.mxu0 0
        %430 = vmatprep.subr.bf16.mxu0 0
        %431 = vmatpush1.bf16.msra.mxu0 0
        %432 = vmatprep.subr.bf16.mxu0 0
        %433 = vmatpush1.bf16.msra.mxu0 0
        %434 = vmatprep.subr.bf16.mxu0 0
        %435 = vmatpush1.bf16.msra.mxu0 0
        %436 = vmatprep.subr.bf16.mxu0 0
        %437 = vmatpush1.bf16.msra.mxu0 0
        %438 = vmatprep.subr.bf16.mxu0 0
        %439 = vmatpush1.bf16.msra.mxu0 0
        %440 = vmatprep.subr.bf16.mxu0 0
        %441 = vmatpush1.bf16.msra.mxu0 0
        %442 = vmatprep.subr.bf16.mxu0 0
        %443 = vmatpush1.bf16.msra.mxu0 0
        %444 = vmatprep.mubr.bf16.mxu0 0
        %445 = vmatmul.mubr.bf16.gmra.mrb[0].mxu0 %v315
        %v446 = vpop.f32.mrb[0].mxu0
        %v447 = vadd.f32 0.0, %v446
        %v448 = vpop.f32.mrb[0].mxu0
        %v449 = vadd.f32 0.0, %v448
        %v450 = vpop.f32.mrb[0].mxu0
        %v451 = vpop.f32.mrb[0].mxu0
        %452 = vdwg.mxu0
        %v453 = vld [vmem:[%s312] sm:$0xff]
        %455 = vset.pattern.permute.xlu0 0
        %456 = vperm.xlu0 %455, %v453
        %v457 = vpop.permute.xlu0 %456
        %v459 = vsub.f32 %v447, %v457
        %v460 = vsub.f32 %v449, %v457
        %461 = vst [vmem:[%s303] sm:$0xff] %v459
        %462 = vst [vmem:[%s303 + $0x8] sm:$0xff] %v460
        %s463 = sand.u32 %s117, 1
        %s464 = scalar_lea.sflag [#allocation4], %s463
        %s465 = sand.u32 %s117, 1
        %s466 = smul.addr %s465, 16
        %s467 = scalar_lea.vmem [#allocation3], %s466
        // Predicated region
        $region71: #{critic_forward.7} parent=65 // pred_check
          %p468 = pneg %p127
        $region72: #{critic_forward.7} parent=65 // pred_check_branch
          %470 = sbr.rel (%p468) target = $region74
        $region73: #{critic_forward.7} parent=65 // pred_region
          %s471 = smul.u32 2, %s22
          %s473 = ssub.s32 256, 256
          %474 = vsyncadd %s464, %s473
          %s475 = smul.addr %s21, 8
          %s476 = sadd.s32 %s471, %s475
          %s477 = smul.addr %s476, 128
          %s478 = scalar_lea.hbm %s3, %s477
          %s480 = sshll.u32 %s467, 4
          %s481 = int_to_ptr.vmem [resolvable:$true] %s480
          %483 = dma.vmem_to_hbm [thread:$0]  %s481, 256, %s478, %s464
        $region74: #{critic_forward.7} parent=65 // pred_fallthru
          _
      $region66: #{critic_forward.7} parent=5 // pred_fallthru
        _
      %p484 = scmp.le.s32.totalorder 2, %s12
      // Predicated region
      $region75: #{critic_forward.7} parent=5 // pred_check
        %p485 = pneg %p484
      $region76: #{critic_forward.7} parent=5 // pred_check_branch
        %487 = sbr.rel (%p485) target = $region78
      $region77: #{critic_forward.7} parent=5 // pred_region
        %s488 = ssub.s32 %s12, 2
        // Predicated region
        $region79: #{critic_forward.7} parent=77 // pred_check
          %p489 = pneg %p133
        $region80: #{critic_forward.7} parent=77 // pred_check_branch
          %491 = sbr.rel (%p489) target = $region82
        $region81: #{critic_forward.7} parent=77 // pred_region
          %s492 = sand.u32 %s118, 1
          %s493 = scalar_lea.sflag [#allocation4], %s492
          %s494 = sand.u32 %s118, 1
          %s495 = smul.addr %s494, 16
          %s496 = scalar_lea.vmem [#allocation3], %s495
          %497 = dma.done %s493, 256
        $region82: #{critic_forward.7} parent=77 // pred_fallthru
          _
      $region78: #{critic_forward.7} parent=5 // pred_fallthru
        _
    $region6: #{critic_forward.7} parent=1 // loop_footer
      %s16 = sadd.s32 1, %s12
    $region7: #{critic_forward.7} parent=1 // loop_footer_branch
      %11 = sbr.rel target = $region3
    $region8: #{critic_forward.7} parent=1 // loop_exit
      _
    %498 = vsyncpa [#allocation4], 1
    %s499 = scalar_lea.sflag [#allocation4], 1
    %500 = vsyncpa %s499, 1

// kernel: critic_forward.4
$region0: #{critic_forward.4}
  #allocation0 [shape = 'u32[]', space=smem, size = 0x4, offset = 0x4, fixed_abs, tag = 'smem constant byte address 0x4 - core index']
  #allocation1 [shape = 'u32[144,128]{1,0:T(1,128)}', space=vmem, size = 0x12000, scoped, tag = 'internal scratch']
  #allocation2 [shape = 'f32[2,128]{1,0:T(2,128)}', space=vmem, size = 0x400, scoped, tag = 'scratch operand']
  #allocation3 [shape = 'f32[2,128]{1,0:T(2,128)}', space=vmem, size = 0x400, scoped, tag = 'scratch operand']
  %s0 = inlined_call_operand.vmem [shape: bf16[9,2,128], index: 0, kind: input, shape index: {}]
  %s1 = inlined_call_operand.hbm [shape: bf16[128,512], index: 1, kind: input, shape index: {}]
  %s2 = inlined_call_operand.hbm [shape: bf16[128,512], index: 2, kind: input, shape index: {}]
  %s3 = inlined_call_operand.vmem [shape: f32[1,512], index: 3, kind: input, shape index: {}]
  %s4 = inlined_call_operand.vmem [shape: f32[2,128], index: 4, kind: input, shape index: {}]
  %s5 = inlined_call_operand.vmem [shape: f32[2,128], index: 5, kind: input, shape index: {}]
  %s6 = inlined_call_operand.vmem [shape: bf16[9,2,128], index: 6, kind: output, shape index: {}]
  %s7 = sld [smem:[#allocation0]]
  $region69: #{critic_forward.4} parent=0
    _
  %s9 = ssub.s32 1, %s7
  %s10 = scalar_select 0, %s9, %s7
  $region1: #{critic_forward.4} parent=0
    #allocation4 [shape = 'u8[131072]{0}', space=vmem, size = 0x20000, scoped, tag = 'input window, operand 1, single buffered']
    #allocation5 [shape = 's32[2]{0}', space=sflag, size = 0x8, scoped, tag = 'scoped memory for critic_forward.4']
    #allocation6 [shape = 'u8[131072]{0}', space=vmem, size = 0x20000, scoped, tag = 'input window, operand 2, single buffered']
    #allocation7 [shape = 's32[1]{0}', space=sflag, size = 0x4, scoped, tag = 'scoped memory for critic_forward.4']
    %11 = vsyncpa [#allocation5], 0
    %12 = vsyncpa [#allocation7], 0
    loop: start=0, step=1, limit=5
    $region2: #{critic_forward.4} parent=1 // loop_pre_header
      _
    $region3: #{critic_forward.4} parent=1 // loop_header
      %s14 = sphi 0, %s18
      %p15 = scmp.ge.s32.totalorder %s14, 5
      %s21 = sphi 0, %s33
      %s22 = sphi 0, %s29
      %s23 = sphi 0, %s21
      %s24 = sphi 0, %s22
      %s25 = sphi 0, %s23
      %s26 = sphi 0, %s24
      %s38 = sphi 0, %s40
      %s41 = sphi 0, %s38
      %s42 = sphi 0, %s41
      %s58 = sphi 0, %s42
      %s62 = sphi 0, %s62
      %s64 = sphi 0, %s62
      %s65 = sphi 0, %s64
      %s79 = sphi 0, %s65
      %s83 = sphi 0, %s83
      %s85 = sphi 0, %s83
      %s86 = sphi 0, %s85
      %s100 = sphi 0, %s86
      %s104 = sphi 0, %s104
      %s106 = sphi 0, %s104
      %s107 = sphi 0, %s106
      %s121 = sphi 0, %s107
      %s127 = sphi 0, %s129
      %s130 = sphi 0, %s127
      %s131 = sphi 0, %s130
      %s147 = sphi 0, %s131
      %s153 = sphi 0, %s155
      %s156 = sphi 0, %s153
      %s157 = sphi 0, %s156
      %s173 = sphi 0, %s157
      %s181 = sphi 0, %s183
      %s184 = sphi 0, %s181
      %s185 = sphi 0, %s184
      %s201 = sphi 0, %s185
    $region4: #{critic_forward.4} parent=1 // loop_header_branch
      %17 = sbr.rel (%p15) target = $region8
    $region5: #{critic_forward.4} parent=1 // loop_body
      %s19 = ssub.s32 %s14, 1
      %s20 = ssub.s32 %s14, 2
      %s27 = sadd.s32 1, %s22
      %p28 = scmp.ge.s32.totalorder %s27, 3
      %s29 = scalar_select %p28, 0, %s27
      %s30 = sadd.s32 1, %s21
      %s31 = scalar_select %p28, %s30, %s21
      %p32 = scmp.ge.s32.totalorder %s31, 1
      %s33 = scalar_select %p32, 0, %s31
      %s34 = ssub.s32 %s22, %s29
      %s35 = ssub.s32 %s21, %s33
      %s36 = sor.u32 %s34, %s35
      %p37 = scmp.eq.s32.totalorder %s36, 0
      %s39 = sadd.s32 %s38, 1
      %s40 = scalar_select %p37, %s38, %s39
      %p43 = pneg %p37
      %p44 = scmp.eq.s32.totalorder %s14, 2
      %p45 = por %p43, %p44
      %p46 = scmp.ne.s32.totalorder %s38, %s41
      %p47 = scmp.eq.s32.totalorder %s14, 0
      %p48 = por %p46, %p47
      %p49 = scmp.ne.s32.totalorder %s38, %s41
      %p50 = scmp.eq.s32.totalorder %s19, 2
      %p51 = por %p49, %p50
      %p52 = scmp.ne.s32.totalorder %s41, %s42
      %p53 = scmp.eq.s32.totalorder %s19, 0
      %p54 = por %p52, %p53
      %p55 = scmp.ne.s32.totalorder %s41, %s42
      %p56 = scmp.eq.s32.totalorder %s20, 2
      %p57 = por %p55, %p56
      %p59 = scmp.ne.s32.totalorder %s42, %s58
      %p60 = scmp.eq.s32.totalorder %s20, 0
      %p61 = por %p59, %p60
      %s63 = sadd.s32 %s62, 1
      %p66 = scmp.eq.s32.totalorder %s14, 2
      %p67 = scmp.ne.s32.totalorder %s62, %s64
      %p68 = scmp.eq.s32.totalorder %s14, 0
      %p69 = por %p67, %p68
      %p70 = scmp.ne.s32.totalorder %s62, %s64
      %p71 = scmp.eq.s32.totalorder %s19, 2
      %p72 = por %p70, %p71
      %p73 = scmp.ne.s32.totalorder %s64, %s65
      %p74 = scmp.eq.s32.totalorder %s19, 0
      %p75 = por %p73, %p74
      %p76 = scmp.ne.s32.totalorder %s64, %s65
      %p77 = scmp.eq.s32.totalorder %s20, 2
      %p78 = por %p76, %p77
      %p80 = scmp.ne.s32.totalorder %s65, %s79
      %p81 = scmp.eq.s32.totalorder %s20, 0
      %p82 = por %p80, %p81
      %s84 = sadd.s32 %s83, 1
      %p87 = scmp.eq.s32.totalorder %s14, 2
      %p88 = scmp.ne.s32.totalorder %s83, %s85
      %p89 = scmp.eq.s32.totalorder %s14, 0
      %p90 = por %p88, %p89
      %p91 = scmp.ne.s32.totalorder %s83, %s85
      %p92 = scmp.eq.s32.totalorder %s19, 2
      %p93 = por %p91, %p92
      %p94 = scmp.ne.s32.totalorder %s85, %s86
      %p95 = scmp.eq.s32.totalorder %s19, 0
      %p96 = por %p94, %p95
      %p97 = scmp.ne.s32.totalorder %s85, %s86
      %p98 = scmp.eq.s32.totalorder %s20, 2
      %p99 = por %p97, %p98
      %p101 = scmp.ne.s32.totalorder %s86, %s100
      %p102 = scmp.eq.s32.totalorder %s20, 0
      %p103 = por %p101, %p102
      %s105 = sadd.s32 %s104, 1
      %p108 = scmp.eq.s32.totalorder %s14, 2
      %p109 = scmp.ne.s32.totalorder %s104, %s106
      %p110 = scmp.eq.s32.totalorder %s14, 0
      %p111 = por %p109, %p110
      %p112 = scmp.ne.s32.totalorder %s104, %s106
      %p113 = scmp.eq.s32.totalorder %s19, 2
      %p114 = por %p112, %p113
      %p115 = scmp.ne.s32.totalorder %s106, %s107
      %p116 = scmp.eq.s32.totalorder %s19, 0
      %p117 = por %p115, %p116
      %p118 = scmp.ne.s32.totalorder %s106, %s107
      %p119 = scmp.eq.s32.totalorder %s20, 2
      %p120 = por %p118, %p119
      %p122 = scmp.ne.s32.totalorder %s107, %s121
      %p123 = scmp.eq.s32.totalorder %s20, 0
      %p124 = por %p122, %p123
      %s125 = ssub.s32 %s21, %s33
      %p126 = scmp.eq.s32.totalorder %s125, 0
      %s128 = sadd.s32 %s127, 1
      %s129 = scalar_select %p126, %s127, %s128
      %p132 = pneg %p126
      %p133 = scmp.eq.s32.totalorder %s14, 2
      %p134 = por %p132, %p133
      %p135 = scmp.ne.s32.totalorder %s127, %s130
      %p136 = scmp.eq.s32.totalorder %s14, 0
      %p137 = por %p135, %p136
      %p138 = scmp.ne.s32.totalorder %s127, %s130
      %p139 = scmp.eq.s32.totalorder %s19, 2
      %p140 = por %p138, %p139
      %p141 = scmp.ne.s32.totalorder %s130, %s131
      %p142 = scmp.eq.s32.totalorder %s19, 0
      %p143 = por %p141, %p142
      %p144 = scmp.ne.s32.totalorder %s130, %s131
      %p145 = scmp.eq.s32.totalorder %s20, 2
      %p146 = por %p144, %p145
      %p148 = scmp.ne.s32.totalorder %s131, %s147
      %p149 = scmp.eq.s32.totalorder %s20, 0
      %p150 = por %p148, %p149
      %s151 = ssub.s32 %s21, %s33
      %p152 = scmp.eq.s32.totalorder %s151, 0
      %s154 = sadd.s32 %s153, 1
      %s155 = scalar_select %p152, %s153, %s154
      %p158 = pneg %p152
      %p159 = scmp.eq.s32.totalorder %s14, 2
      %p160 = por %p158, %p159
      %p161 = scmp.ne.s32.totalorder %s153, %s156
      %p162 = scmp.eq.s32.totalorder %s14, 0
      %p163 = por %p161, %p162
      %p164 = scmp.ne.s32.totalorder %s153, %s156
      %p165 = scmp.eq.s32.totalorder %s19, 2
      %p166 = por %p164, %p165
      %p167 = scmp.ne.s32.totalorder %s156, %s157
      %p168 = scmp.eq.s32.totalorder %s19, 0
      %p169 = por %p167, %p168
      %p170 = scmp.ne.s32.totalorder %s156, %s157
      %p171 = scmp.eq.s32.totalorder %s20, 2
      %p172 = por %p170, %p171
      %p174 = scmp.ne.s32.totalorder %s157, %s173
      %p175 = scmp.eq.s32.totalorder %s20, 0
      %p176 = por %p174, %p175
      %s177 = ssub.s32 %s22, %s29
      %s178 = ssub.s32 %s21, %s33
      %s179 = sor.u32 %s177, %s178
      %p180 = scmp.eq.s32.totalorder %s179, 0
      %s182 = sadd.s32 %s181, 1
      %s183 = scalar_select %p180, %s181, %s182
      %p186 = pneg %p180
      %p187 = scmp.eq.s32.totalorder %s14, 2
      %p188 = por %p186, %p187
      %p189 = scmp.ne.s32.totalorder %s181, %s184
      %p190 = scmp.eq.s32.totalorder %s14, 0
      %p191 = por %p189, %p190
      %p192 = scmp.ne.s32.totalorder %s181, %s184
      %p193 = scmp.eq.s32.totalorder %s19, 2
      %p194 = por %p192, %p193
      %p195 = scmp.ne.s32.totalorder %s184, %s185
      %p196 = scmp.eq.s32.totalorder %s19, 0
      %p197 = por %p195, %p196
      %p198 = scmp.ne.s32.totalorder %s184, %s185
      %p199 = scmp.eq.s32.totalorder %s20, 2
      %p200 = por %p198, %p199
      %p202 = scmp.ne.s32.totalorder %s185, %s201
      %p203 = scmp.eq.s32.totalorder %s20, 0
      %p204 = por %p202, %p203
      %p205 = scmp.le.s32.totalorder 1, %s14
      %p206 = scmp.lt.s32.totalorder %s14, 4
      %p207 = pnand %p205, %p206
      %p208 = pneg %p207
      // Predicated region
      $region9: #{critic_forward.4} parent=5 // pred_check
        _
      $region10: #{critic_forward.4} parent=5 // pred_check_branch
        %210 = sbr.rel (%p207) target = $region12
      $region11: #{critic_forward.4} parent=5 // pred_region
        %s211 = ssub.s32 %s14, 1
        // Predicated region
        $region13: #{critic_forward.4} parent=11 // pred_check
          %p212 = pneg %p75
        $region14: #{critic_forward.4} parent=11 // pred_check_branch
          %214 = sbr.rel (%p212) target = $region16
        $region15: #{critic_forward.4} parent=11 // pred_region
          %s216 = ssub.s32 4096, 4096
          %217 = vsyncadd [#allocation5], %s216
          %s218 = sshll.u32 [#allocation4], 4
          %s219 = int_to_ptr.vmem [resolvable:$true] %s218
          %224 = dma.hbm_to_vmem [thread:$0]  %s1, 4096, %s219, [#allocation5], 256, 256, 16
        $region16: #{critic_forward.4} parent=11 // pred_fallthru
          _
        // Predicated region
        $region17: #{critic_forward.4} parent=11 // pred_check
          %p225 = pneg %p96
        $region18: #{critic_forward.4} parent=11 // pred_check_branch
          %227 = sbr.rel (%p225) target = $region20
        $region19: #{critic_forward.4} parent=11 // pred_region
          %s229 = ssub.s32 4096, 4096
          %230 = vsyncadd [#allocation7], %s229
          %s231 = sshll.u32 [#allocation6], 4
          %s232 = int_to_ptr.vmem [resolvable:$true] %s231
          %237 = dma.hbm_to_vmem [thread:$0]  %s2, 4096, %s232, [#allocation7], 256, 256, 16
        $region20: #{critic_forward.4} parent=11 // pred_fallthru
          _
        // Predicated region
        $region21: #{critic_forward.4} parent=11 // pred_check
          %p238 = pneg %p117
        $region22: #{critic_forward.4} parent=11 // pred_check_branch
          %240 = sbr.rel (%p238) target = $region24
        $region23: #{critic_forward.4} parent=11 // pred_region
          _
        $region24: #{critic_forward.4} parent=11 // pred_fallthru
          _
        // Predicated region
        $region25: #{critic_forward.4} parent=11 // pred_check
          %p241 = pneg %p143
        $region26: #{critic_forward.4} parent=11 // pred_check_branch
          %243 = sbr.rel (%p241) target = $region28
        $region27: #{critic_forward.4} parent=11 // pred_region
          %p244 = scmp.lt.s32.totalorder %s23, 0
          %s245 = scalar_select %p244, %s23, 0
          %s246 = smul.addr %s245, 2
          %s247 = scalar_lea.vmem %s4, %s246
        $region28: #{critic_forward.4} parent=11 // pred_fallthru
          _
        // Predicated region
        $region29: #{critic_forward.4} parent=11 // pred_check
          %p248 = pneg %p169
        $region30: #{critic_forward.4} parent=11 // pred_check_branch
          %250 = sbr.rel (%p248) target = $region32
        $region31: #{critic_forward.4} parent=11 // pred_region
          %p251 = scmp.lt.s32.totalorder %s23, 0
          %s252 = scalar_select %p251, %s23, 0
          %s253 = smul.addr %s252, 2
          %s254 = scalar_lea.vmem %s5, %s253
        $region32: #{critic_forward.4} parent=11 // pred_fallthru
          _
      $region12: #{critic_forward.4} parent=5 // pred_fallthru
        _
      %p255 = scmp.lt.s32.totalorder %s14, 3
      // Predicated region
      $region33: #{critic_forward.4} parent=5 // pred_check
        %p256 = pneg %p255
      $region34: #{critic_forward.4} parent=5 // pred_check_branch
        %258 = sbr.rel (%p256) target = $region36
      $region35: #{critic_forward.4} parent=5 // pred_region
        // Predicated region
        $region37: #{critic_forward.4} parent=35 // pred_check
          %p259 = pneg %p48
        $region38: #{critic_forward.4} parent=35 // pred_check_branch
          %261 = sbr.rel (%p259) target = $region40
        $region39: #{critic_forward.4} parent=35 // pred_region
          %s262 = smul.u32 3, %s22
          %p263 = scmp.lt.s32.totalorder %s262, 8
          %s264 = scalar_select %p263, %s262, 8
          %p265 = scmp.lt.s32.totalorder %s21, 0
          %s266 = scalar_select %p265, %s21, 0
          %s267 = sadd.s32 %s266, %s264
          %s268 = scalar_lea.vmem %s0, %s267
          %s269 = smul.u32 3, %s22
        $region40: #{critic_forward.4} parent=35 // pred_fallthru
          _
      $region36: #{critic_forward.4} parent=5 // pred_fallthru
        _
      %p270 = scmp.le.s32.totalorder 1, %s14
      %p271 = scmp.lt.s32.totalorder %s14, 4
      %p272 = pnand %p270, %p271
      %p273 = pneg %p272
      // Predicated region
      $region41: #{critic_forward.4} parent=5 // pred_check
        _
      $region42: #{critic_forward.4} parent=5 // pred_check_branch
        %275 = sbr.rel (%p272) target = $region44
      $region43: #{critic_forward.4} parent=5 // pred_region
        %s276 = ssub.s32 %s14, 1
        // Predicated region
        $region45: #{critic_forward.4} parent=43 // pred_check
          %p277 = pneg %p75
        $region46: #{critic_forward.4} parent=43 // pred_check_branch
          %279 = sbr.rel (%p277) target = $region48
        $region47: #{critic_forward.4} parent=43 // pred_region
          %280 = dma.done [#allocation5], 4096
        $region48: #{critic_forward.4} parent=43 // pred_fallthru
          _
        // Predicated region
        $region49: #{critic_forward.4} parent=43 // pred_check
          %p281 = pneg %p96
        $region50: #{critic_forward.4} parent=43 // pred_check_branch
          %283 = sbr.rel (%p281) target = $region52
        $region51: #{critic_forward.4} parent=43 // pred_region
          %284 = dma.done [#allocation7], 4096
        $region52: #{critic_forward.4} parent=43 // pred_fallthru
          _
        %s285 = smul.u32 3, %s24
        %p286 = scmp.lt.s32.totalorder %s285, 8
        %s287 = scalar_select %p286, %s285, 8
        %p288 = scmp.lt.s32.totalorder %s23, 0
        %s289 = scalar_select %p288, %s23, 0
        %s290 = sadd.s32 %s289, %s287
        %s291 = scalar_lea.vmem %s0, %s290
        %p292 = pneg %p54
        %p293 = pneg %p51
        %p294 = pneg %p75
        %p295 = pneg %p72
        %p296 = pneg %p96
        %p297 = pneg %p93
        %p298 = pneg %p117
        %p299 = pneg %p114
        %p300 = scmp.lt.s32.totalorder %s23, 0
        %s301 = scalar_select %p300, %s23, 0
        %s302 = smul.addr %s301, 2
        %s303 = scalar_lea.vmem %s4, %s302
        %p304 = pneg %p143
        %p305 = pneg %p140
        %p306 = scmp.lt.s32.totalorder %s23, 0
        %s307 = scalar_select %p306, %s23, 0
        %s308 = smul.addr %s307, 2
        %s309 = scalar_lea.vmem %s5, %s308
        %p310 = pneg %p169
        %p311 = pneg %p166
        %p312 = pneg %p197
        %p313 = pneg %p194
        %s314 = smul.u32 3, %s24
        %p315 = scmp.lt.s32.totalorder %s314, 8
        %s316 = scalar_select %p315, %s314, 8
        %p317 = scmp.lt.s32.totalorder %s23, 0
        %s318 = scalar_select %p317, %s23, 0
        %s319 = sadd.s32 %s318, %s316
        %s320 = scalar_lea.vmem %s6, %s319
        %s321 = smul.u32 3, %s24
        %p322 = scmp.lt.s32.totalorder %s321, 8
        %s323 = scalar_select %p322, %s321, 8
        %p324 = scmp.lt.s32.totalorder %s23, 0
        %s325 = scalar_select %p324, %s23, 0
        %s326 = sadd.s32 %s325, %s323
        %s327 = scalar_lea.vmem %s0, %s326
        %s328 = smul.u32 3, %s24
        %p329 = scmp.lt.s32.totalorder %s23, 0
        %s330 = scalar_select %p329, %s23, 0
        %s331 = smul.addr %s330, 2
        %s332 = scalar_lea.vmem %s4, %s331
        %p333 = scmp.lt.s32.totalorder %s23, 0
        %s334 = scalar_select %p333, %s23, 0
        %s335 = smul.addr %s334, 2
        %s336 = scalar_lea.vmem %s5, %s335
        %s337 = smul.u32 3, %s24
        %p338 = scmp.lt.s32.totalorder %s337, 8
        %s339 = scalar_select %p338, %s337, 8
        %p340 = scmp.lt.s32.totalorder %s23, 0
        %s341 = scalar_select %p340, %s23, 0
        %s342 = sadd.s32 %s341, %s339
        %s343 = scalar_lea.vmem %s6, %s342
        %s344 = smul.u32 3, %s24
        %p346 = scmp.eq.s32.totalorder %s24, 0
        // Predicated region
        $region53: #{critic_forward.4} parent=43 // pred_check
          %p347 = pneg %p346
        $region54: #{critic_forward.4} parent=43 // pred_check_branch
          %349 = sbr.rel (%p347) target = $region56
        $region55: #{critic_forward.4} parent=43 // pred_region
          %v350 = vld [vmem:[%s332] sm:$0x3]
          %351 = vst [vmem:[#allocation2] sm:$0x3] %v350
          %v352 = vld [vmem:[%s336] sm:$0x3]
          %353 = vst [vmem:[#allocation3] sm:$0x3] %v352
        $region56: #{critic_forward.4} parent=43 // pred_fallthru
          _
        %v354 = vld [vmem:[#allocation4] sm:$0xff]
        %v355 = vld [vmem:[#allocation4 + $0x8] sm:$0xff]
        %v356 = vld [vmem:[#allocation4 + $0x10] sm:$0xff]
        %v357 = vld [vmem:[#allocation4 + $0x18] sm:$0xff]
        %v358 = vld [vmem:[#allocation4 + $0x20] sm:$0xff]
        %v359 = vld [vmem:[#allocation4 + $0x28] sm:$0xff]
        %v360 = vld [vmem:[#allocation4 + $0x30] sm:$0xff]
        %v361 = vld [vmem:[#allocation4 + $0x38] sm:$0xff]
        %v362 = vld [vmem:[#allocation4 + $0x40] sm:$0xff]
        %v363 = vld [vmem:[#allocation4 + $0x48] sm:$0xff]
        %v364 = vld [vmem:[#allocation4 + $0x50] sm:$0xff]
        %v365 = vld [vmem:[#allocation4 + $0x58] sm:$0xff]
        %v366 = vld [vmem:[#allocation4 + $0x60] sm:$0xff]
        %v367 = vld [vmem:[#allocation4 + $0x68] sm:$0xff]
        %v368 = vld [vmem:[#allocation4 + $0x70] sm:$0xff]
        %v369 = vld [vmem:[#allocation4 + $0x78] sm:$0xff]
        %v370 = vld [vmem:[#allocation4 + $0x80] sm:$0xff]
        %v371 = vld [vmem:[#allocation4 + $0x88] sm:$0xff]
        %v372 = vld [vmem:[#allocation4 + $0x90] sm:$0xff]
        %v373 = vld [vmem:[#allocation4 + $0x98] sm:$0xff]
        %v374 = vld [vmem:[#allocation4 + $0xa0] sm:$0xff]
        %v375 = vld [vmem:[#allocation4 + $0xa8] sm:$0xff]
        %v376 = vld [vmem:[#allocation4 + $0xb0] sm:$0xff]
        %v377 = vld [vmem:[#allocation4 + $0xb8] sm:$0xff]
        %v378 = vld [vmem:[#allocation4 + $0xc0] sm:$0xff]
        %v379 = vld [vmem:[#allocation4 + $0xc8] sm:$0xff]
        %v380 = vld [vmem:[#allocation4 + $0xd0] sm:$0xff]
        %v381 = vld [vmem:[#allocation4 + $0xd8] sm:$0xff]
        %v382 = vld [vmem:[#allocation4 + $0xe0] sm:$0xff]
        %v383 = vld [vmem:[#allocation4 + $0xe8] sm:$0xff]
        %v384 = vld [vmem:[#allocation4 + $0xf0] sm:$0xff]
        %v385 = vld [vmem:[#allocation4 + $0xf8] sm:$0xff]
        %v386 = vld [vmem:[#allocation6] sm:$0xff]
        %v387 = vld [vmem:[#allocation6 + $0x8] sm:$0xff]
        %v388 = vld [vmem:[#allocation6 + $0x10] sm:$0xff]
        %v389 = vld [vmem:[#allocation6 + $0x18] sm:$0xff]
        %v390 = vld [vmem:[#allocation6 + $0x20] sm:$0xff]
        %v391 = vld [vmem:[#allocation6 + $0x28] sm:$0xff]
        %v392 = vld [vmem:[#allocation6 + $0x30] sm:$0xff]
        %v393 = vld [vmem:[#allocation6 + $0x38] sm:$0xff]
        %v394 = vld [vmem:[#allocation6 + $0x40] sm:$0xff]
        %v395 = vld [vmem:[#allocation6 + $0x48] sm:$0xff]
        %v396 = vld [vmem:[#allocation6 + $0x50] sm:$0xff]
        %v397 = vld [vmem:[#allocation6 + $0x58] sm:$0xff]
        %v398 = vld [vmem:[#allocation6 + $0x60] sm:$0xff]
        %v399 = vld [vmem:[#allocation6 + $0x68] sm:$0xff]
        %v400 = vld [vmem:[#allocation6 + $0x70] sm:$0xff]
        %v401 = vld [vmem:[#allocation6 + $0x78] sm:$0xff]
        %v402 = vld [vmem:[#allocation6 + $0x80] sm:$0xff]
        %v403 = vld [vmem:[#allocation6 + $0x88] sm:$0xff]
        %v404 = vld [vmem:[#allocation6 + $0x90] sm:$0xff]
        %v405 = vld [vmem:[#allocation6 + $0x98] sm:$0xff]
        %v406 = vld [vmem:[#allocation6 + $0xa0] sm:$0xff]
        %v407 = vld [vmem:[#allocation6 + $0xa8] sm:$0xff]
        %v408 = vld [vmem:[#allocation6 + $0xb0] sm:$0xff]
        %v409 = vld [vmem:[#allocation6 + $0xb8] sm:$0xff]
        %v410 = vld [vmem:[#allocation6 + $0xc0] sm:$0xff]
        %v411 = vld [vmem:[#allocation6 + $0xc8] sm:$0xff]
        %v412 = vld [vmem:[#allocation6 + $0xd0] sm:$0xff]
        %v413 = vld [vmem:[#allocation6 + $0xd8] sm:$0xff]
        %v414 = vld [vmem:[#allocation6 + $0xe0] sm:$0xff]
        %v415 = vld [vmem:[#allocation6 + $0xe8] sm:$0xff]
        %v416 = vld [vmem:[#allocation6 + $0xf0] sm:$0xff]
        %v417 = vld [vmem:[#allocation6 + $0xf8] sm:$0xff]
        %v418 = vld [vmem:[%s3] sm:$0xf]
        %v420 = vlaneseq
        %v421 = vshrl.u32 %v420, 7
        %v422 = vsub.s32 0, %v421
        %v423 = vrot.slane %v418, %v422
        %v424 = vlaneseq
        %v425 = vshrl.u32 %v424, 7
        %v426 = vsub.s32 1, %v425
        %v427 = vrot.slane %v418, %v426
        %v428 = vlaneseq
        %v429 = vshrl.u32 %v428, 7
        %v430 = vsub.s32 2, %v429
        %v431 = vrot.slane %v418, %v430
        %v432 = vlaneseq
        %v433 = vshrl.u32 %v432, 7
        %v434 = vsub.s32 3, %v433
        %v435 = vrot.slane %v418, %v434
        %v440 = vld [vmem:[%s327] sm:$0x1]
        %v441 = vld [vmem:[#allocation2] sm:$0x3]
        %v442 = vpack.c.bf16 %v441, %v441
        %v475 = vunpack.c.l.b16 %v386
        %v476 = vunpack.c.h.b16 %v386
        %v477 = vunpack.c.l.b16 %v387
        %v478 = vunpack.c.h.b16 %v387
        %v479 = vunpack.c.l.b16 %v388
        %v480 = vunpack.c.h.b16 %v388
        %v481 = vunpack.c.l.b16 %v389
        %v482 = vunpack.c.h.b16 %v389
        %v483 = vunpack.c.l.b16 %v390
        %v484 = vunpack.c.h.b16 %v390
        %v485 = vunpack.c.l.b16 %v391
        %v486 = vunpack.c.h.b16 %v391
        %v487 = vunpack.c.l.b16 %v392
        %v488 = vunpack.c.h.b16 %v392
        %v489 = vunpack.c.l.b16 %v393
        %v490 = vunpack.c.h.b16 %v393
        %v491 = vunpack.c.l.b16 %v394
        %v492 = vunpack.c.h.b16 %v394
        %v493 = vunpack.c.l.b16 %v395
        %v494 = vunpack.c.h.b16 %v395
        %v495 = vunpack.c.l.b16 %v396
        %v496 = vunpack.c.h.b16 %v396
        %v497 = vunpack.c.l.b16 %v397
        %v498 = vunpack.c.h.b16 %v397
        %v499 = vunpack.c.l.b16 %v398
        %v500 = vunpack.c.h.b16 %v398
        %v501 = vunpack.c.l.b16 %v399
        %v502 = vunpack.c.h.b16 %v399
        %v503 = vunpack.c.l.b16 %v400
        %v504 = vunpack.c.h.b16 %v400
        %v505 = vunpack.c.l.b16 %v401
        %v506 = vunpack.c.h.b16 %v401
        %v507 = vunpack.c.l.b16 %v402
        %v508 = vunpack.c.h.b16 %v402
        %v509 = vunpack.c.l.b16 %v403
        %v510 = vunpack.c.h.b16 %v403
        %v511 = vunpack.c.l.b16 %v404
        %v512 = vunpack.c.h.b16 %v404
        %v513 = vunpack.c.l.b16 %v405
        %v514 = vunpack.c.h.b16 %v405
        %v515 = vunpack.c.l.b16 %v406
        %v516 = vunpack.c.h.b16 %v406
        %v517 = vunpack.c.l.b16 %v407
        %v518 = vunpack.c.h.b16 %v407
        %v519 = vunpack.c.l.b16 %v408
        %v520 = vunpack.c.h.b16 %v408
        %v521 = vunpack.c.l.b16 %v409
        %v522 = vunpack.c.h.b16 %v409
        %v523 = vunpack.c.l.b16 %v410
        %v524 = vunpack.c.h.b16 %v410
        %v525 = vunpack.c.l.b16 %v411
        %v526 = vunpack.c.h.b16 %v411
        %v527 = vunpack.c.l.b16 %v412
        %v528 = vunpack.c.h.b16 %v412
        %v529 = vunpack.c.l.b16 %v413
        %v530 = vunpack.c.h.b16 %v413
        %v531 = vunpack.c.l.b16 %v414
        %v532 = vunpack.c.h.b16 %v414
        %v533 = vunpack.c.l.b16 %v415
        %v534 = vunpack.c.h.b16 %v415
        %v535 = vunpack.c.l.b16 %v416
        %v536 = vunpack.c.h.b16 %v416
        %v537 = vunpack.c.l.b16 %v417
        %v538 = vunpack.c.h.b16 %v417
        %v539 = vpack.c.b16 %v479, %v475
        %v540 = vpack.c.b16 %v480, %v476
        %v541 = vpack.c.b16 %v481, %v477
        %v542 = vpack.c.b16 %v482, %v478
        %v543 = vpack.c.b16 %v487, %v483
        %v544 = vpack.c.b16 %v488, %v484
        %v545 = vpack.c.b16 %v489, %v485
        %v546 = vpack.c.b16 %v490, %v486
        %v547 = vpack.c.b16 %v495, %v491
        %v548 = vpack.c.b16 %v496, %v492
        %v549 = vpack.c.b16 %v497, %v493
        %v550 = vpack.c.b16 %v498, %v494
        %v551 = vpack.c.b16 %v503, %v499
        %v552 = vpack.c.b16 %v504, %v500
        %v553 = vpack.c.b16 %v505, %v501
        %v554 = vpack.c.b16 %v506, %v502
        %v555 = vpack.c.b16 %v511, %v507
        %v556 = vpack.c.b16 %v512, %v508
        %v557 = vpack.c.b16 %v513, %v509
        %v558 = vpack.c.b16 %v514, %v510
        %v559 = vpack.c.b16 %v519, %v515
        %v560 = vpack.c.b16 %v520, %v516
        %v561 = vpack.c.b16 %v521, %v517
        %v562 = vpack.c.b16 %v522, %v518
        %v563 = vpack.c.b16 %v527, %v523
        %v564 = vpack.c.b16 %v528, %v524
        %v565 = vpack.c.b16 %v529, %v525
        %v566 = vpack.c.b16 %v530, %v526
        %v567 = vpack.c.b16 %v535, %v531
        %v568 = vpack.c.b16 %v536, %v532
        %v569 = vpack.c.b16 %v537, %v533
        %v570 = vpack.c.b16 %v538, %v534
        %603 = vmatprep.subr.bf16.mxu0 %v540
        %604 = vmatpush1.bf16.msra.mxu0 %v539
        %605 = vmatprep.subr.bf16.mxu0 %v544
        %606 = vmatpush1.bf16.msra.mxu0 %v543
        %607 = vmatprep.subr.bf16.mxu0 %v548
        %608 = vmatpush1.bf16.msra.mxu0 %v547
        %609 = vmatprep.subr.bf16.mxu0 %v552
        %610 = vmatpush1.bf16.msra.mxu0 %v551
        %611 = vmatprep.subr.bf16.mxu0 %v556
        %612 = vmatpush1.bf16.msra.mxu0 %v555
        %613 = vmatprep.subr.bf16.mxu0 %v560
        %614 = vmatpush1.bf16.msra.mxu0 %v559
        %615 = vmatprep.subr.bf16.mxu0 %v564
        %616 = vmatpush1.bf16.msra.mxu0 %v563
        %617 = vmatprep.subr.bf16.mxu0 %v568
        %618 = vmatpush1.bf16.msra.mxu0 %v567
        %619 = vmatprep.subr.bf16.mxu0 0
        %620 = vmatpush1.bf16.msra.mxu0 0
        %621 = vmatprep.subr.bf16.mxu0 0
        %622 = vmatpush1.bf16.msra.mxu0 0
        %623 = vmatprep.subr.bf16.mxu0 0
        %624 = vmatpush1.bf16.msra.mxu0 0
        %625 = vmatprep.subr.bf16.mxu0 0
        %626 = vmatpush1.bf16.msra.mxu0 0
        %627 = vmatprep.subr.bf16.mxu0 0
        %628 = vmatpush1.bf16.msra.mxu0 0
        %629 = vmatprep.subr.bf16.mxu0 0
        %630 = vmatpush1.bf16.msra.mxu0 0
        %631 = vmatprep.subr.bf16.mxu0 0
        %632 = vmatpush1.bf16.msra.mxu0 0
        %633 = vmatprep.subr.bf16.mxu0 0
        %634 = vmatpush1.bf16.msra.mxu0 0
        %635 = vmatprep.mubr.bf16.mxu0 0
        %636 = vmatmul.mubr.bf16.gmra.mrb[0].mxu0 %v442
        %v637 = vpop.f32.mrb[0].mxu0
        %v638 = vadd.f32 0.0, %v637
        %v639 = vpop.f32.mrb[0].mxu0
        %v640 = vadd.f32 0.0, %v639
        %v641 = vpop.f32.mrb[0].mxu0
        %v642 = vpop.f32.mrb[0].mxu0
        %643 = vdwg.mxu0
        %644 = vmatprep.subr.bf16.mxu0 %v542
        %645 = vmatpush1.bf16.msra.mxu0 %v541
        %646 = vmatprep.subr.bf16.mxu0 %v546
        %647 = vmatpush1.bf16.msra.mxu0 %v545
        %648 = vmatprep.subr.bf16.mxu0 %v550
        %649 = vmatpush1.bf16.msra.mxu0 %v549
        %650 = vmatprep.subr.bf16.mxu0 %v554
        %651 = vmatpush1.bf16.msra.mxu0 %v553
        %652 = vmatprep.subr.bf16.mxu0 %v558
        %653 = vmatpush1.bf16.msra.mxu0 %v557
        %654 = vmatprep.subr.bf16.mxu0 %v562
        %655 = vmatpush1.bf16.msra.mxu0 %v561
        %656 = vmatprep.subr.bf16.mxu0 %v566
        %657 = vmatpush1.bf16.msra.mxu0 %v565
        %658 = vmatprep.subr.bf16.mxu0 %v570
        %659 = vmatpush1.bf16.msra.mxu0 %v569
        %660 = vmatprep.subr.bf16.mxu0 0
        %661 = vmatpush1.bf16.msra.mxu0 0
        %662 = vmatprep.subr.bf16.mxu0 0
        %663 = vmatpush1.bf16.msra.mxu0 0
        %664 = vmatprep.subr.bf16.mxu0 0
        %665 = vmatpush1.bf16.msra.mxu0 0
        %666 = vmatprep.subr.bf16.mxu0 0
        %667 = vmatpush1.bf16.msra.mxu0 0
        %668 = vmatprep.subr.bf16.mxu0 0
        %669 = vmatpush1.bf16.msra.mxu0 0
        %670 = vmatprep.subr.bf16.mxu0 0
        %671 = vmatpush1.bf16.msra.mxu0 0
        %672 = vmatprep.subr.bf16.mxu0 0
        %673 = vmatpush1.bf16.msra.mxu0 0
        %674 = vmatprep.subr.bf16.mxu0 0
        %675 = vmatpush1.bf16.msra.mxu0 0
        %676 = vmatprep.mubr.bf16.mxu0 0
        %677 = vmatmul.mubr.bf16.gmra.mrb[0].mxu0 %v442
        %v678 = vpop.f32.mrb[0].mxu0
        %v679 = vadd.f32 0.0, %v678
        %v680 = vpop.f32.mrb[0].mxu0
        %v681 = vadd.f32 0.0, %v680
        %v682 = vpop.f32.mrb[0].mxu0
        %v683 = vpop.f32.mrb[0].mxu0
        %684 = vdwg.mxu0
        %v717 = vunpack.c.l.b16 %v354
        %v718 = vunpack.c.h.b16 %v354
        %v719 = vunpack.c.l.b16 %v355
        %v720 = vunpack.c.h.b16 %v355
        %v721 = vunpack.c.l.b16 %v356
        %v722 = vunpack.c.h.b16 %v356
        %v723 = vunpack.c.l.b16 %v357
        %v724 = vunpack.c.h.b16 %v357
        %v725 = vunpack.c.l.b16 %v358
        %v726 = vunpack.c.h.b16 %v358
        %v727 = vunpack.c.l.b16 %v359
        %v728 = vunpack.c.h.b16 %v359
        %v729 = vunpack.c.l.b16 %v360
        %v730 = vunpack.c.h.b16 %v360
        %v731 = vunpack.c.l.b16 %v361
        %v732 = vunpack.c.h.b16 %v361
        %v733 = vunpack.c.l.b16 %v362
        %v734 = vunpack.c.h.b16 %v362
        %v735 = vunpack.c.l.b16 %v363
        %v736 = vunpack.c.h.b16 %v363
        %v737 = vunpack.c.l.b16 %v364
        %v738 = vunpack.c.h.b16 %v364
        %v739 = vunpack.c.l.b16 %v365
        %v740 = vunpack.c.h.b16 %v365
        %v741 = vunpack.c.l.b16 %v366
        %v742 = vunpack.c.h.b16 %v366
        %v743 = vunpack.c.l.b16 %v367
        %v744 = vunpack.c.h.b16 %v367
        %v745 = vunpack.c.l.b16 %v368
        %v746 = vunpack.c.h.b16 %v368
        %v747 = vunpack.c.l.b16 %v369
        %v748 = vunpack.c.h.b16 %v369
        %v749 = vunpack.c.l.b16 %v370
        %v750 = vunpack.c.h.b16 %v370
        %v751 = vunpack.c.l.b16 %v371
        %v752 = vunpack.c.h.b16 %v371
        %v753 = vunpack.c.l.b16 %v372
        %v754 = vunpack.c.h.b16 %v372
        %v755 = vunpack.c.l.b16 %v373
        %v756 = vunpack.c.h.b16 %v373
        %v757 = vunpack.c.l.b16 %v374
        %v758 = vunpack.c.h.b16 %v374
        %v759 = vunpack.c.l.b16 %v375
        %v760 = vunpack.c.h.b16 %v375
        %v761 = vunpack.c.l.b16 %v376
        %v762 = vunpack.c.h.b16 %v376
        %v763 = vunpack.c.l.b16 %v377
        %v764 = vunpack.c.h.b16 %v377
        %v765 = vunpack.c.l.b16 %v378
        %v766 = vunpack.c.h.b16 %v378
        %v767 = vunpack.c.l.b16 %v379
        %v768 = vunpack.c.h.b16 %v379
        %v769 = vunpack.c.l.b16 %v380
        %v770 = vunpack.c.h.b16 %v380
        %v771 = vunpack.c.l.b16 %v381
        %v772 = vunpack.c.h.b16 %v381
        %v773 = vunpack.c.l.b16 %v382
        %v774 = vunpack.c.h.b16 %v382
        %v775 = vunpack.c.l.b16 %v383
        %v776 = vunpack.c.h.b16 %v383
        %v777 = vunpack.c.l.b16 %v384
        %v778 = vunpack.c.h.b16 %v384
        %v779 = vunpack.c.l.b16 %v385
        %v780 = vunpack.c.h.b16 %v385
        %v781 = vpack.c.b16 %v721, %v717
        %v782 = vpack.c.b16 %v722, %v718
        %v783 = vpack.c.b16 %v723, %v719
        %v784 = vpack.c.b16 %v724, %v720
        %v785 = vpack.c.b16 %v729, %v725
        %v786 = vpack.c.b16 %v730, %v726
        %v787 = vpack.c.b16 %v731, %v727
        %v788 = vpack.c.b16 %v732, %v728
        %v789 = vpack.c.b16 %v737, %v733
        %v790 = vpack.c.b16 %v738, %v734
        %v791 = vpack.c.b16 %v739, %v735
        %v792 = vpack.c.b16 %v740, %v736
        %v793 = vpack.c.b16 %v745, %v741
        %v794 = vpack.c.b16 %v746, %v742
        %v795 = vpack.c.b16 %v747, %v743
        %v796 = vpack.c.b16 %v748, %v744
        %v797 = vpack.c.b16 %v753, %v749
        %v798 = vpack.c.b16 %v754, %v750
        %v799 = vpack.c.b16 %v755, %v751
        %v800 = vpack.c.b16 %v756, %v752
        %v801 = vpack.c.b16 %v761, %v757
        %v802 = vpack.c.b16 %v762, %v758
        %v803 = vpack.c.b16 %v763, %v759
        %v804 = vpack.c.b16 %v764, %v760
        %v805 = vpack.c.b16 %v769, %v765
        %v806 = vpack.c.b16 %v770, %v766
        %v807 = vpack.c.b16 %v771, %v767
        %v808 = vpack.c.b16 %v772, %v768
        %v809 = vpack.c.b16 %v777, %v773
        %v810 = vpack.c.b16 %v778, %v774
        %v811 = vpack.c.b16 %v779, %v775
        %v812 = vpack.c.b16 %v780, %v776
        %845 = vmatprep.subr.bf16.mxu0 %v782
        %846 = vmatpush1.bf16.msra.mxu0 %v781
        %847 = vmatprep.subr.bf16.mxu0 %v786
        %848 = vmatpush1.bf16.msra.mxu0 %v785
        %849 = vmatprep.subr.bf16.mxu0 %v790
        %850 = vmatpush1.bf16.msra.mxu0 %v789
        %851 = vmatprep.subr.bf16.mxu0 %v794
        %852 = vmatpush1.bf16.msra.mxu0 %v793
        %853 = vmatprep.subr.bf16.mxu0 %v798
        %854 = vmatpush1.bf16.msra.mxu0 %v797
        %855 = vmatprep.subr.bf16.mxu0 %v802
        %856 = vmatpush1.bf16.msra.mxu0 %v801
        %857 = vmatprep.subr.bf16.mxu0 %v806
        %858 = vmatpush1.bf16.msra.mxu0 %v805
        %859 = vmatprep.subr.bf16.mxu0 %v810
        %860 = vmatpush1.bf16.msra.mxu0 %v809
        %861 = vmatprep.subr.bf16.mxu0 0
        %862 = vmatpush1.bf16.msra.mxu0 0
        %863 = vmatprep.subr.bf16.mxu0 0
        %864 = vmatpush1.bf16.msra.mxu0 0
        %865 = vmatprep.subr.bf16.mxu0 0
        %866 = vmatpush1.bf16.msra.mxu0 0
        %867 = vmatprep.subr.bf16.mxu0 0
        %868 = vmatpush1.bf16.msra.mxu0 0
        %869 = vmatprep.subr.bf16.mxu0 0
        %870 = vmatpush1.bf16.msra.mxu0 0
        %871 = vmatprep.subr.bf16.mxu0 0
        %872 = vmatpush1.bf16.msra.mxu0 0
        %873 = vmatprep.subr.bf16.mxu0 0
        %874 = vmatpush1.bf16.msra.mxu0 0
        %875 = vmatprep.subr.bf16.mxu0 0
        %876 = vmatpush1.bf16.msra.mxu0 0
        %877 = vmatprep.mubr.bf16.mxu0 0
        %878 = vmatmul.mubr.bf16.gmra.mrb[0].mxu0 %v440
        %v879 = vpop.f32.mrb[0].mxu0
        %v880 = vadd.f32 %v638, %v879
        %v881 = vpop.f32.mrb[0].mxu0
        %v882 = vadd.f32 %v640, %v881
        %v883 = vpop.f32.mrb[0].mxu0
        %v884 = vpop.f32.mrb[0].mxu0
        %885 = vdwg.mxu0
        %886 = vmatprep.subr.bf16.mxu0 %v784
        %887 = vmatpush1.bf16.msra.mxu0 %v783
        %888 = vmatprep.subr.bf16.mxu0 %v788
        %889 = vmatpush1.bf16.msra.mxu0 %v787
        %890 = vmatprep.subr.bf16.mxu0 %v792
        %891 = vmatpush1.bf16.msra.mxu0 %v791
        %892 = vmatprep.subr.bf16.mxu0 %v796
        %893 = vmatpush1.bf16.msra.mxu0 %v795
        %894 = vmatprep.subr.bf16.mxu0 %v800
        %895 = vmatpush1.bf16.msra.mxu0 %v799
        %896 = vmatprep.subr.bf16.mxu0 %v804
        %897 = vmatpush1.bf16.msra.mxu0 %v803
        %898 = vmatprep.subr.bf16.mxu0 %v808
        %899 = vmatpush1.bf16.msra.mxu0 %v807
        %900 = vmatprep.subr.bf16.mxu0 %v812
        %901 = vmatpush1.bf16.msra.mxu0 %v811
        %902 = vmatprep.subr.bf16.mxu0 0
        %903 = vmatpush1.bf16.msra.mxu0 0
        %904 = vmatprep.subr.bf16.mxu0 0
        %905 = vmatpush1.bf16.msra.mxu0 0
        %906 = vmatprep.subr.bf16.mxu0 0
        %907 = vmatpush1.bf16.msra.mxu0 0
        %908 = vmatprep.subr.bf16.mxu0 0
        %909 = vmatpush1.bf16.msra.mxu0 0
        %910 = vmatprep.subr.bf16.mxu0 0
        %911 = vmatpush1.bf16.msra.mxu0 0
        %912 = vmatprep.subr.bf16.mxu0 0
        %913 = vmatpush1.bf16.msra.mxu0 0
        %914 = vmatprep.subr.bf16.mxu0 0
        %915 = vmatpush1.bf16.msra.mxu0 0
        %916 = vmatprep.subr.bf16.mxu0 0
        %917 = vmatpush1.bf16.msra.mxu0 0
        %918 = vmatprep.mubr.bf16.mxu0 0
        %919 = vmatmul.mubr.bf16.gmra.mrb[0].mxu0 %v440
        %v920 = vpop.f32.mrb[0].mxu0
        %v921 = vadd.f32 %v679, %v920
        %v922 = vpop.f32.mrb[0].mxu0
        %v923 = vadd.f32 %v681, %v922
        %v924 = vpop.f32.mrb[0].mxu0
        %v925 = vpop.f32.mrb[0].mxu0
        %926 = vdwg.mxu0
        %v927 = vadd.f32 %v880, %v423
        %v928 = vadd.f32 %v882, %v427
        %v929 = vadd.f32 %v921, %v431
        %v930 = vadd.f32 %v923, %v435
        %v931 = vxor.u32 %v927, 2147483648
        %v932 = vmul.f32 %v931, 1.442695
        %v933 = vpow.pop %v932
        %v934 = vadd.f32 %v933, 1.0
        %v935 = vrcp.pop %v934
        %v936 = vmul.f32 1.0, %v935
        %v937 = vxor.u32 %v928, 2147483648
        %v938 = vmul.f32 %v937, 1.442695
        %v939 = vpow.pop %v938
        %v940 = vadd.f32 %v939, 1.0
        %v941 = vrcp.pop %v940
        %v942 = vmul.f32 1.0, %v941
        %v943 = vtanh.pop %v929
        %v944 = vxor.u32 %v930, 2147483648
        %v945 = vmul.f32 %v944, 1.442695
        %v946 = vpow.pop %v945
        %v947 = vadd.f32 %v946, 1.0
        %v948 = vrcp.pop %v947
        %v949 = vmul.f32 1.0, %v948
        %v950 = vld [vmem:[#allocation3] sm:$0x3]
        %v951 = vmul.f32 %v942, %v950
        %v952 = vmul.f32 %v936, %v943
        %v953 = vadd.f32 %v951, %v952
        %v954 = vtanh.pop %v953
        %v955 = vmul.f32 %v949, %v954
        %956 = vst [vmem:[#allocation3] sm:$0x3] %v953
        %957 = vst [vmem:[#allocation2] sm:$0x3] %v955
        %v958 = vpack.c.bf16 %v955, %v955
        %959 = vst [vmem:[%s343] sm:$0x1] %v958
        %s960 = scalar_lea.vmem %s327, 1
        %v961 = vld [vmem:[%s960] sm:$0x1]
        %v962 = vld [vmem:[#allocation2] sm:$0x3]
        %v963 = vpack.c.bf16 %v962, %v962
        %964 = vmatprep.subr.bf16.mxu0 %v540
        %965 = vmatpush1.bf16.msra.mxu0 %v539
        %966 = vmatprep.subr.bf16.mxu0 %v544
        %967 = vmatpush1.bf16.msra.mxu0 %v543
        %968 = vmatprep.subr.bf16.mxu0 %v548
        %969 = vmatpush1.bf16.msra.mxu0 %v547
        %970 = vmatprep.subr.bf16.mxu0 %v552
        %971 = vmatpush1.bf16.msra.mxu0 %v551
        %972 = vmatprep.subr.bf16.mxu0 %v556
        %973 = vmatpush1.bf16.msra.mxu0 %v555
        %974 = vmatprep.subr.bf16.mxu0 %v560
        %975 = vmatpush1.bf16.msra.mxu0 %v559
        %976 = vmatprep.subr.bf16.mxu0 %v564
        %977 = vmatpush1.bf16.msra.mxu0 %v563
        %978 = vmatprep.subr.bf16.mxu0 %v568
        %979 = vmatpush1.bf16.msra.mxu0 %v567
        %980 = vmatprep.subr.bf16.mxu0 0
        %981 = vmatpush1.bf16.msra.mxu0 0
        %982 = vmatprep.subr.bf16.mxu0 0
        %983 = vmatpush1.bf16.msra.mxu0 0
        %984 = vmatprep.subr.bf16.mxu0 0
        %985 = vmatpush1.bf16.msra.mxu0 0
        %986 = vmatprep.subr.bf16.mxu0 0
        %987 = vmatpush1.bf16.msra.mxu0 0
        %988 = vmatprep.subr.bf16.mxu0 0
        %989 = vmatpush1.bf16.msra.mxu0 0
        %990 = vmatprep.subr.bf16.mxu0 0
        %991 = vmatpush1.bf16.msra.mxu0 0
        %992 = vmatprep.subr.bf16.mxu0 0
        %993 = vmatpush1.bf16.msra.mxu0 0
        %994 = vmatprep.subr.bf16.mxu0 0
        %995 = vmatpush1.bf16.msra.mxu0 0
        %996 = vmatprep.mubr.bf16.mxu0 0
        %997 = vmatmul.mubr.bf16.gmra.mrb[0].mxu0 %v963
        %v998 = vpop.f32.mrb[0].mxu0
        %v999 = vadd.f32 0.0, %v998
        %v1000 = vpop.f32.mrb[0].mxu0
        %v1001 = vadd.f32 0.0, %v1000
        %v1002 = vpop.f32.mrb[0].mxu0
        %v1003 = vpop.f32.mrb[0].mxu0
        %1004 = vdwg.mxu0
        %1005 = vmatprep.subr.bf16.mxu0 %v542
        %1006 = vmatpush1.bf16.msra.mxu0 %v541
        %1007 = vmatprep.subr.bf16.mxu0 %v546
        %1008 = vmatpush1.bf16.msra.mxu0 %v545
        %1009 = vmatprep.subr.bf16.mxu0 %v550
        %1010 = vmatpush1.bf16.msra.mxu0 %v549
        %1011 = vmatprep.subr.bf16.mxu0 %v554
        %1012 = vmatpush1.bf16.msra.mxu0 %v553
        %1013 = vmatprep.subr.bf16.mxu0 %v558
        %1014 = vmatpush1.bf16.msra.mxu0 %v557
        %1015 = vmatprep.subr.bf16.mxu0 %v562
        %1016 = vmatpush1.bf16.msra.mxu0 %v561
        %1017 = vmatprep.subr.bf16.mxu0 %v566
        %1018 = vmatpush1.bf16.msra.mxu0 %v565
        %1019 = vmatprep.subr.bf16.mxu0 %v570
        %1020 = vmatpush1.bf16.msra.mxu0 %v569
        %1021 = vmatprep.subr.bf16.mxu0 0
        %1022 = vmatpush1.bf16.msra.mxu0 0
        %1023 = vmatprep.subr.bf16.mxu0 0
        %1024 = vmatpush1.bf16.msra.mxu0 0
        %1025 = vmatprep.subr.bf16.mxu0 0
        %1026 = vmatpush1.bf16.msra.mxu0 0
        %1027 = vmatprep.subr.bf16.mxu0 0
        %1028 = vmatpush1.bf16.msra.mxu0 0
        %1029 = vmatprep.subr.bf16.mxu0 0
        %1030 = vmatpush1.bf16.msra.mxu0 0
        %1031 = vmatprep.subr.bf16.mxu0 0
        %1032 = vmatpush1.bf16.msra.mxu0 0
        %1033 = vmatprep.subr.bf16.mxu0 0
        %1034 = vmatpush1.bf16.msra.mxu0 0
        %1035 = vmatprep.subr.bf16.mxu0 0
        %1036 = vmatpush1.bf16.msra.mxu0 0
        %1037 = vmatprep.mubr.bf16.mxu0 0
        %1038 = vmatmul.mubr.bf16.gmra.mrb[0].mxu0 %v963
        %v1039 = vpop.f32.mrb[0].mxu0
        %v1040 = vadd.f32 0.0, %v1039
        %v1041 = vpop.f32.mrb[0].mxu0
        %v1042 = vadd.f32 0.0, %v1041
        %v1043 = vpop.f32.mrb[0].mxu0
        %v1044 = vpop.f32.mrb[0].mxu0
        %1045 = vdwg.mxu0
        %1046 = vmatprep.subr.bf16.mxu0 %v782
        %1047 = vmatpush1.bf16.msra.mxu0 %v781
        %1048 = vmatprep.subr.bf16.mxu0 %v786
        %1049 = vmatpush1.bf16.msra.mxu0 %v785
        %1050 = vmatprep.subr.bf16.mxu0 %v790
        %1051 = vmatpush1.bf16.msra.mxu0 %v789
        %1052 = vmatprep.subr.bf16.mxu0 %v794
        %1053 = vmatpush1.bf16.msra.mxu0 %v793
        %1054 = vmatprep.subr.bf16.mxu0 %v798
        %1055 = vmatpush1.bf16.msra.mxu0 %v797
        %1056 = vmatprep.subr.bf16.mxu0 %v802
        %1057 = vmatpush1.bf16.msra.mxu0 %v801
        %1058 = vmatprep.subr.bf16.mxu0 %v806
        %1059 = vmatpush1.bf16.msra.mxu0 %v805
        %1060 = vmatprep.subr.bf16.mxu0 %v810
        %1061 = vmatpush1.bf16.msra.mxu0 %v809
        %1062 = vmatprep.subr.bf16.mxu0 0
        %1063 = vmatpush1.bf16.msra.mxu0 0
        %1064 = vmatprep.subr.bf16.mxu0 0
        %1065 = vmatpush1.bf16.msra.mxu0 0
        %1066 = vmatprep.subr.bf16.mxu0 0
        %1067 = vmatpush1.bf16.msra.mxu0 0
        %1068 = vmatprep.subr.bf16.mxu0 0
        %1069 = vmatpush1.bf16.msra.mxu0 0
        %1070 = vmatprep.subr.bf16.mxu0 0
        %1071 = vmatpush1.bf16.msra.mxu0 0
        %1072 = vmatprep.subr.bf16.mxu0 0
        %1073 = vmatpush1.bf16.msra.mxu0 0
        %1074 = vmatprep.subr.bf16.mxu0 0
        %1075 = vmatpush1.bf16.msra.mxu0 0
        %1076 = vmatprep.subr.bf16.mxu0 0
        %1077 = vmatpush1.bf16.msra.mxu0 0
        %1078 = vmatprep.mubr.bf16.mxu0 0
        %1079 = vmatmul.mubr.bf16.gmra.mrb[0].mxu0 %v961
        %v1080 = vpop.f32.mrb[0].mxu0
        %v1081 = vadd.f32 %v999, %v1080
        %v1082 = vpop.f32.mrb[0].mxu0
        %v1083 = vadd.f32 %v1001, %v1082
        %v1084 = vpop.f32.mrb[0].mxu0
        %v1085 = vpop.f32.mrb[0].mxu0
        %1086 = vdwg.mxu0
        %1087 = vmatprep.subr.bf16.mxu0 %v784
        %1088 = vmatpush1.bf16.msra.mxu0 %v783
        %1089 = vmatprep.subr.bf16.mxu0 %v788
        %1090 = vmatpush1.bf16.msra.mxu0 %v787
        %1091 = vmatprep.subr.bf16.mxu0 %v792
        %1092 = vmatpush1.bf16.msra.mxu0 %v791
        %1093 = vmatprep.subr.bf16.mxu0 %v796
        %1094 = vmatpush1.bf16.msra.mxu0 %v795
        %1095 = vmatprep.subr.bf16.mxu0 %v800
        %1096 = vmatpush1.bf16.msra.mxu0 %v799
        %1097 = vmatprep.subr.bf16.mxu0 %v804
        %1098 = vmatpush1.bf16.msra.mxu0 %v803
        %1099 = vmatprep.subr.bf16.mxu0 %v808
        %1100 = vmatpush1.bf16.msra.mxu0 %v807
        %1101 = vmatprep.subr.bf16.mxu0 %v812
        %1102 = vmatpush1.bf16.msra.mxu0 %v811
        %1103 = vmatprep.subr.bf16.mxu0 0
        %1104 = vmatpush1.bf16.msra.mxu0 0
        %1105 = vmatprep.subr.bf16.mxu0 0
        %1106 = vmatpush1.bf16.msra.mxu0 0
        %1107 = vmatprep.subr.bf16.mxu0 0
        %1108 = vmatpush1.bf16.msra.mxu0 0
        %1109 = vmatprep.subr.bf16.mxu0 0
        %1110 = vmatpush1.bf16.msra.mxu0 0
        %1111 = vmatprep.subr.bf16.mxu0 0
        %1112 = vmatpush1.bf16.msra.mxu0 0
        %1113 = vmatprep.subr.bf16.mxu0 0
        %1114 = vmatpush1.bf16.msra.mxu0 0
        %1115 = vmatprep.subr.bf16.mxu0 0
        %1116 = vmatpush1.bf16.msra.mxu0 0
        %1117 = vmatprep.subr.bf16.mxu0 0
        %1118 = vmatpush1.bf16.msra.mxu0 0
        %1119 = vmatprep.mubr.bf16.mxu0 0
        %1120 = vmatmul.mubr.bf16.gmra.mrb[0].mxu0 %v961
        %v1121 = vpop.f32.mrb[0].mxu0
        %v1122 = vadd.f32 %v1040, %v1121
        %v1123 = vpop.f32.mrb[0].mxu0
        %v1124 = vadd.f32 %v1042, %v1123
        %v1125 = vpop.f32.mrb[0].mxu0
        %v1126 = vpop.f32.mrb[0].mxu0
        %1127 = vdwg.mxu0
        %v1128 = vadd.f32 %v1081, %v423
        %v1129 = vadd.f32 %v1083, %v427
        %v1130 = vadd.f32 %v1122, %v431
        %v1131 = vadd.f32 %v1124, %v435
        %v1132 = vxor.u32 %v1128, 2147483648
        %v1133 = vmul.f32 %v1132, 1.442695
        %v1134 = vpow.pop %v1133
        %v1135 = vadd.f32 %v1134, 1.0
        %v1136 = vrcp.pop %v1135
        %v1137 = vmul.f32 1.0, %v1136
        %v1138 = vxor.u32 %v1129, 2147483648
        %v1139 = vmul.f32 %v1138, 1.442695
        %v1140 = vpow.pop %v1139
        %v1141 = vadd.f32 %v1140, 1.0
        %v1142 = vrcp.pop %v1141
        %v1143 = vmul.f32 1.0, %v1142
        %v1144 = vtanh.pop %v1130
        %v1145 = vxor.u32 %v1131, 2147483648
        %v1146 = vmul.f32 %v1145, 1.442695
        %v1147 = vpow.pop %v1146
        %v1148 = vadd.f32 %v1147, 1.0
        %v1149 = vrcp.pop %v1148
        %v1150 = vmul.f32 1.0, %v1149
        %v1151 = vld [vmem:[#allocation3] sm:$0x3]
        %v1152 = vmul.f32 %v1143, %v1151
        %v1153 = vmul.f32 %v1137, %v1144
        %v1154 = vadd.f32 %v1152, %v1153
        %v1155 = vtanh.pop %v1154
        %v1156 = vmul.f32 %v1150, %v1155
        %1157 = vst [vmem:[#allocation3] sm:$0x3] %v1154
        %1158 = vst [vmem:[#allocation2] sm:$0x3] %v1156
        %v1159 = vpack.c.bf16 %v1156, %v1156
        %s1160 = scalar_lea.vmem %s343, 1
        %1161 = vst [vmem:[%s1160] sm:$0x1] %v1159
        %s1162 = scalar_lea.vmem %s327, 2
        %v1163 = vld [vmem:[%s1162] sm:$0x1]
        %v1164 = vld [vmem:[#allocation2] sm:$0x3]
        %v1165 = vpack.c.bf16 %v1164, %v1164
        %1166 = vmatprep.subr.bf16.mxu0 %v540
        %1167 = vmatpush1.bf16.msra.mxu0 %v539
        %1168 = vmatprep.subr.bf16.mxu0 %v544
        %1169 = vmatpush1.bf16.msra.mxu0 %v543
        %1170 = vmatprep.subr.bf16.mxu0 %v548
        %1171 = vmatpush1.bf16.msra.mxu0 %v547
        %1172 = vmatprep.subr.bf16.mxu0 %v552
        %1173 = vmatpush1.bf16.msra.mxu0 %v551
        %1174 = vmatprep.subr.bf16.mxu0 %v556
        %1175 = vmatpush1.bf16.msra.mxu0 %v555
        %1176 = vmatprep.subr.bf16.mxu0 %v560
        %1177 = vmatpush1.bf16.msra.mxu0 %v559
        %1178 = vmatprep.subr.bf16.mxu0 %v564
        %1179 = vmatpush1.bf16.msra.mxu0 %v563
        %1180 = vmatprep.subr.bf16.mxu0 %v568
        %1181 = vmatpush1.bf16.msra.mxu0 %v567
        %1182 = vmatprep.subr.bf16.mxu0 0
        %1183 = vmatpush1.bf16.msra.mxu0 0
        %1184 = vmatprep.subr.bf16.mxu0 0
        %1185 = vmatpush1.bf16.msra.mxu0 0
        %1186 = vmatprep.subr.bf16.mxu0 0
        %1187 = vmatpush1.bf16.msra.mxu0 0
        %1188 = vmatprep.subr.bf16.mxu0 0
        %1189 = vmatpush1.bf16.msra.mxu0 0
        %1190 = vmatprep.subr.bf16.mxu0 0
        %1191 = vmatpush1.bf16.msra.mxu0 0
        %1192 = vmatprep.subr.bf16.mxu0 0
        %1193 = vmatpush1.bf16.msra.mxu0 0
        %1194 = vmatprep.subr.bf16.mxu0 0
        %1195 = vmatpush1.bf16.msra.mxu0 0
        %1196 = vmatprep.subr.bf16.mxu0 0
        %1197 = vmatpush1.bf16.msra.mxu0 0
        %1198 = vmatprep.mubr.bf16.mxu0 0
        %1199 = vmatmul.mubr.bf16.gmra.mrb[0].mxu0 %v1165
        %v1200 = vpop.f32.mrb[0].mxu0
        %v1201 = vadd.f32 0.0, %v1200
        %v1202 = vpop.f32.mrb[0].mxu0
        %v1203 = vadd.f32 0.0, %v1202
        %v1204 = vpop.f32.mrb[0].mxu0
        %v1205 = vpop.f32.mrb[0].mxu0
        %1206 = vdwg.mxu0
        %1207 = vmatprep.subr.bf16.mxu0 %v542
        %1208 = vmatpush1.bf16.msra.mxu0 %v541
        %1209 = vmatprep.subr.bf16.mxu0 %v546
        %1210 = vmatpush1.bf16.msra.mxu0 %v545
        %1211 = vmatprep.subr.bf16.mxu0 %v550
        %1212 = vmatpush1.bf16.msra.mxu0 %v549
        %1213 = vmatprep.subr.bf16.mxu0 %v554
        %1214 = vmatpush1.bf16.msra.mxu0 %v553
        %1215 = vmatprep.subr.bf16.mxu0 %v558
        %1216 = vmatpush1.bf16.msra.mxu0 %v557
        %1217 = vmatprep.subr.bf16.mxu0 %v562
        %1218 = vmatpush1.bf16.msra.mxu0 %v561
        %1219 = vmatprep.subr.bf16.mxu0 %v566
        %1220 = vmatpush1.bf16.msra.mxu0 %v565
        %1221 = vmatprep.subr.bf16.mxu0 %v570
        %1222 = vmatpush1.bf16.msra.mxu0 %v569
        %1223 = vmatprep.subr.bf16.mxu0 0
        %1224 = vmatpush1.bf16.msra.mxu0 0
        %1225 = vmatprep.subr.bf16.mxu0 0
        %1226 = vmatpush1.bf16.msra.mxu0 0
        %1227 = vmatprep.subr.bf16.mxu0 0
        %1228 = vmatpush1.bf16.msra.mxu0 0
        %1229 = vmatprep.subr.bf16.mxu0 0
        %1230 = vmatpush1.bf16.msra.mxu0 0
        %1231 = vmatprep.subr.bf16.mxu0 0
        %1232 = vmatpush1.bf16.msra.mxu0 0
        %1233 = vmatprep.subr.bf16.mxu0 0
        %1234 = vmatpush1.bf16.msra.mxu0 0
        %1235 = vmatprep.subr.bf16.mxu0 0
        %1236 = vmatpush1.bf16.msra.mxu0 0
        %1237 = vmatprep.subr.bf16.mxu0 0
        %1238 = vmatpush1.bf16.msra.mxu0 0
        %1239 = vmatprep.mubr.bf16.mxu0 0
        %1240 = vmatmul.mubr.bf16.gmra.mrb[0].mxu0 %v1165
        %v1241 = vpop.f32.mrb[0].mxu0
        %v1242 = vadd.f32 0.0, %v1241
        %v1243 = vpop.f32.mrb[0].mxu0
        %v1244 = vadd.f32 0.0, %v1243
        %v1245 = vpop.f32.mrb[0].mxu0
        %v1246 = vpop.f32.mrb[0].mxu0
        %1247 = vdwg.mxu0
        %1248 = vmatprep.subr.bf16.mxu0 %v782
        %1249 = vmatpush1.bf16.msra.mxu0 %v781
        %1250 = vmatprep.subr.bf16.mxu0 %v786
        %1251 = vmatpush1.bf16.msra.mxu0 %v785
        %1252 = vmatprep.subr.bf16.mxu0 %v790
        %1253 = vmatpush1.bf16.msra.mxu0 %v789
        %1254 = vmatprep.subr.bf16.mxu0 %v794
        %1255 = vmatpush1.bf16.msra.mxu0 %v793
        %1256 = vmatprep.subr.bf16.mxu0 %v798
        %1257 = vmatpush1.bf16.msra.mxu0 %v797
        %1258 = vmatprep.subr.bf16.mxu0 %v802
        %1259 = vmatpush1.bf16.msra.mxu0 %v801
        %1260 = vmatprep.subr.bf16.mxu0 %v806
        %1261 = vmatpush1.bf16.msra.mxu0 %v805
        %1262 = vmatprep.subr.bf16.mxu0 %v810
        %1263 = vmatpush1.bf16.msra.mxu0 %v809
        %1264 = vmatprep.subr.bf16.mxu0 0
        %1265 = vmatpush1.bf16.msra.mxu0 0
        %1266 = vmatprep.subr.bf16.mxu0 0
        %1267 = vmatpush1.bf16.msra.mxu0 0
        %1268 = vmatprep.subr.bf16.mxu0 0
        %1269 = vmatpush1.bf16.msra.mxu0 0
        %1270 = vmatprep.subr.bf16.mxu0 0
        %1271 = vmatpush1.bf16.msra.mxu0 0
        %1272 = vmatprep.subr.bf16.mxu0 0
        %1273 = vmatpush1.bf16.msra.mxu0 0
        %1274 = vmatprep.subr.bf16.mxu0 0
        %1275 = vmatpush1.bf16.msra.mxu0 0
        %1276 = vmatprep.subr.bf16.mxu0 0
        %1277 = vmatpush1.bf16.msra.mxu0 0
        %1278 = vmatprep.subr.bf16.mxu0 0
        %1279 = vmatpush1.bf16.msra.mxu0 0
        %1280 = vmatprep.mubr.bf16.mxu0 0
        %1281 = vmatmul.mubr.bf16.gmra.mrb[0].mxu0 %v1163
        %v1282 = vpop.f32.mrb[0].mxu0
        %v1283 = vadd.f32 %v1201, %v1282
        %v1284 = vpop.f32.mrb[0].mxu0
        %v1285 = vadd.f32 %v1203, %v1284
        %v1286 = vpop.f32.mrb[0].mxu0
        %v1287 = vpop.f32.mrb[0].mxu0
        %1288 = vdwg.mxu0
        %1289 = vmatprep.subr.bf16.mxu0 %v784
        %1290 = vmatpush1.bf16.msra.mxu0 %v783
        %1291 = vmatprep.subr.bf16.mxu0 %v788
        %1292 = vmatpush1.bf16.msra.mxu0 %v787
        %1293 = vmatprep.subr.bf16.mxu0 %v792
        %1294 = vmatpush1.bf16.msra.mxu0 %v791
        %1295 = vmatprep.subr.bf16.mxu0 %v796
        %1296 = vmatpush1.bf16.msra.mxu0 %v795
        %1297 = vmatprep.subr.bf16.mxu0 %v800
        %1298 = vmatpush1.bf16.msra.mxu0 %v799
        %1299 = vmatprep.subr.bf16.mxu0 %v804
        %1300 = vmatpush1.bf16.msra.mxu0 %v803
        %1301 = vmatprep.subr.bf16.mxu0 %v808
        %1302 = vmatpush1.bf16.msra.mxu0 %v807
        %1303 = vmatprep.subr.bf16.mxu0 %v812
        %1304 = vmatpush1.bf16.msra.mxu0 %v811
        %1305 = vmatprep.subr.bf16.mxu0 0
        %1306 = vmatpush1.bf16.msra.mxu0 0
        %1307 = vmatprep.subr.bf16.mxu0 0
        %1308 = vmatpush1.bf16.msra.mxu0 0
        %1309 = vmatprep.subr.bf16.mxu0 0
        %1310 = vmatpush1.bf16.msra.mxu0 0
        %1311 = vmatprep.subr.bf16.mxu0 0
        %1312 = vmatpush1.bf16.msra.mxu0 0
        %1313 = vmatprep.subr.bf16.mxu0 0
        %1314 = vmatpush1.bf16.msra.mxu0 0
        %1315 = vmatprep.subr.bf16.mxu0 0
        %1316 = vmatpush1.bf16.msra.mxu0 0
        %1317 = vmatprep.subr.bf16.mxu0 0
        %1318 = vmatpush1.bf16.msra.mxu0 0
        %1319 = vmatprep.subr.bf16.mxu0 0
        %1320 = vmatpush1.bf16.msra.mxu0 0
        %1321 = vmatprep.mubr.bf16.mxu0 0
        %1322 = vmatmul.mubr.bf16.gmra.mrb[0].mxu0 %v1163
        %v1323 = vpop.f32.mrb[0].mxu0
        %v1324 = vadd.f32 %v1242, %v1323
        %v1325 = vpop.f32.mrb[0].mxu0
        %v1326 = vadd.f32 %v1244, %v1325
        %v1327 = vpop.f32.mrb[0].mxu0
        %v1328 = vpop.f32.mrb[0].mxu0
        %1329 = vdwg.mxu0
        %v1330 = vadd.f32 %v1283, %v423
        %v1331 = vadd.f32 %v1285, %v427
        %v1332 = vadd.f32 %v1324, %v431
        %v1333 = vadd.f32 %v1326, %v435
        %v1334 = vxor.u32 %v1330, 2147483648
        %v1335 = vmul.f32 %v1334, 1.442695
        %v1336 = vpow.pop %v1335
        %v1337 = vadd.f32 %v1336, 1.0
        %v1338 = vrcp.pop %v1337
        %v1339 = vmul.f32 1.0, %v1338
        %v1340 = vxor.u32 %v1331, 2147483648
        %v1341 = vmul.f32 %v1340, 1.442695
        %v1342 = vpow.pop %v1341
        %v1343 = vadd.f32 %v1342, 1.0
        %v1344 = vrcp.pop %v1343
        %v1345 = vmul.f32 1.0, %v1344
        %v1346 = vtanh.pop %v1332
        %v1347 = vxor.u32 %v1333, 2147483648
        %v1348 = vmul.f32 %v1347, 1.442695
        %v1349 = vpow.pop %v1348
        %v1350 = vadd.f32 %v1349, 1.0
        %v1351 = vrcp.pop %v1350
        %v1352 = vmul.f32 1.0, %v1351
        %v1353 = vld [vmem:[#allocation3] sm:$0x3]
        %v1354 = vmul.f32 %v1345, %v1353
        %v1355 = vmul.f32 %v1339, %v1346
        %v1356 = vadd.f32 %v1354, %v1355
        %v1357 = vtanh.pop %v1356
        %v1358 = vmul.f32 %v1352, %v1357
        %1359 = vst [vmem:[#allocation3] sm:$0x3] %v1356
        %1360 = vst [vmem:[#allocation2] sm:$0x3] %v1358
        %v1361 = vpack.c.bf16 %v1358, %v1358
        %s1362 = scalar_lea.vmem %s343, 2
        %1363 = vst [vmem:[%s1362] sm:$0x1] %v1361
        %s1364 = smul.u32 3, %s24
        %p1365 = scmp.lt.s32.totalorder %s1364, 8
        %s1366 = scalar_select %p1365, %s1364, 8
        %p1367 = scmp.lt.s32.totalorder %s23, 0
        %s1368 = scalar_select %p1367, %s23, 0
        %s1369 = sadd.s32 %s1368, %s1366
        %s1370 = scalar_lea.vmem %s6, %s1369
        // Predicated region
        $region57: #{critic_forward.4} parent=43 // pred_check
          %p1371 = pneg %p194
        $region58: #{critic_forward.4} parent=43 // pred_check_branch
          %1373 = sbr.rel (%p1371) target = $region60
        $region59: #{critic_forward.4} parent=43 // pred_region
          %s1374 = smul.u32 3, %s24
        $region60: #{critic_forward.4} parent=43 // pred_fallthru
          _
      $region44: #{critic_forward.4} parent=5 // pred_fallthru
        _
      %p1375 = scmp.le.s32.totalorder 2, %s14
      // Predicated region
      $region61: #{critic_forward.4} parent=5 // pred_check
        %p1376 = pneg %p1375
      $region62: #{critic_forward.4} parent=5 // pred_check_branch
        %1378 = sbr.rel (%p1376) target = $region64
      $region63: #{critic_forward.4} parent=5 // pred_region
        %s1379 = ssub.s32 %s14, 2
        // Predicated region
        $region65: #{critic_forward.4} parent=63 // pred_check
          %p1380 = pneg %p200
        $region66: #{critic_forward.4} parent=63 // pred_check_branch
          %1382 = sbr.rel (%p1380) target = $region68
        $region67: #{critic_forward.4} parent=63 // pred_region
          %s1383 = smul.u32 3, %s26
          %p1384 = scmp.lt.s32.totalorder %s1383, 8
          %s1385 = scalar_select %p1384, %s1383, 8
          %p1386 = scmp.lt.s32.totalorder %s25, 0
          %s1387 = scalar_select %p1386, %s25, 0
          %s1388 = sadd.s32 %s1387, %s1385
          %s1389 = scalar_lea.vmem %s6, %s1388
        $region68: #{critic_forward.4} parent=63 // pred_fallthru
          _
      $region64: #{critic_forward.4} parent=5 // pred_fallthru
        _
    $region6: #{critic_forward.4} parent=1 // loop_footer
      %s18 = sadd.s32 1, %s14
    $region7: #{critic_forward.4} parent=1 // loop_footer_branch
      %13 = sbr.rel target = $region3
    $region8: #{critic_forward.4} parent=1 // loop_exit
      _
    %1390 = vsyncpa [#allocation5], 1
    %s1391 = scalar_lea.sflag [#allocation5], 1
    %1392 = vsyncpa %s1391, 1
    %1393 = vsyncpa [#allocation7], 1

// kernel: critic_forward.5
$region0: #{critic_forward.5}
  #allocation0 [shape = 'u32[]', space=smem, size = 0x4, offset = 0x4, fixed_abs, tag = 'smem constant byte address 0x4 - core index']
  #allocation1 [shape = 'u32[144,128]{1,0:T(1,128)}', space=vmem, size = 0x12000, scoped, tag = 'internal scratch']
  #allocation2 [shape = 'f32[2,128]{1,0:T(2,128)}', space=vmem, size = 0x400, scoped, tag = 'scratch operand']
  #allocation3 [shape = 'f32[2,128]{1,0:T(2,128)}', space=vmem, size = 0x400, scoped, tag = 'scratch operand']
  %s0 = inlined_call_operand.vmem [shape: bf16[9,2,128], index: 0, kind: input, shape index: {}]
  %s1 = inlined_call_operand.vmem [shape: bf16[128,512], index: 1, kind: input, shape index: {}]
  %s2 = inlined_call_operand.vmem [shape: bf16[128,512], index: 2, kind: input, shape index: {}]
  %s3 = inlined_call_operand.vmem [shape: f32[1,512], index: 3, kind: input, shape index: {}]
  %s4 = inlined_call_operand.vmem [shape: f32[2,128], index: 4, kind: input, shape index: {}]
  %s5 = inlined_call_operand.vmem [shape: f32[2,128], index: 5, kind: input, shape index: {}]
  %s6 = inlined_call_operand.vmem [shape: bf16[9,2,128], index: 6, kind: output, shape index: {}]
  %s7 = sld [smem:[#allocation0]]
  $region61: #{critic_forward.5} parent=0
    _
  %s9 = ssub.s32 1, %s7
  %s10 = scalar_select 0, %s9, %s7
  loop: start=0, step=1, limit=5
  $region2: #{critic_forward.5} parent=0 // loop_pre_header
    _
  $region3: #{critic_forward.5} parent=0 // loop_header
    %s12 = sphi 0, %s16
    %p13 = scmp.ge.s32.totalorder %s12, 5
    %s19 = sphi 0, %s31
    %s20 = sphi 0, %s27
    %s21 = sphi 0, %s19
    %s22 = sphi 0, %s20
    %s23 = sphi 0, %s21
    %s24 = sphi 0, %s22
    %s36 = sphi 0, %s38
    %s39 = sphi 0, %s36
    %s40 = sphi 0, %s39
    %s56 = sphi 0, %s40
    %s60 = sphi 0, %s60
    %s62 = sphi 0, %s60
    %s63 = sphi 0, %s62
    %s77 = sphi 0, %s63
    %s81 = sphi 0, %s81
    %s83 = sphi 0, %s81
    %s84 = sphi 0, %s83
    %s98 = sphi 0, %s84
    %s102 = sphi 0, %s102
    %s104 = sphi 0, %s102
    %s105 = sphi 0, %s104
    %s119 = sphi 0, %s105
    %s125 = sphi 0, %s127
    %s128 = sphi 0, %s125
    %s129 = sphi 0, %s128
    %s145 = sphi 0, %s129
    %s151 = sphi 0, %s153
    %s154 = sphi 0, %s151
    %s155 = sphi 0, %s154
    %s171 = sphi 0, %s155
    %s179 = sphi 0, %s181
    %s182 = sphi 0, %s179
    %s183 = sphi 0, %s182
    %s199 = sphi 0, %s183
  $region4: #{critic_forward.5} parent=0 // loop_header_branch
    %15 = sbr.rel (%p13) target = $region8
  $region5: #{critic_forward.5} parent=0 // loop_body
    %s17 = ssub.s32 %s12, 1
    %s18 = ssub.s32 %s12, 2
    %s25 = sadd.s32 1, %s20
    %p26 = scmp.ge.s32.totalorder %s25, 3
    %s27 = scalar_select %p26, 0, %s25
    %s28 = sadd.s32 1, %s19
    %s29 = scalar_select %p26, %s28, %s19
    %p30 = scmp.ge.s32.totalorder %s29, 1
    %s31 = scalar_select %p30, 0, %s29
    %s32 = ssub.s32 %s20, %s27
    %s33 = ssub.s32 %s19, %s31
    %s34 = sor.u32 %s32, %s33
    %p35 = scmp.eq.s32.totalorder %s34, 0
    %s37 = sadd.s32 %s36, 1
    %s38 = scalar_select %p35, %s36, %s37
    %p41 = pneg %p35
    %p42 = scmp.eq.s32.totalorder %s12, 2
    %p43 = por %p41, %p42
    %p44 = scmp.ne.s32.totalorder %s36, %s39
    %p45 = scmp.eq.s32.totalorder %s12, 0
    %p46 = por %p44, %p45
    %p47 = scmp.ne.s32.totalorder %s36, %s39
    %p48 = scmp.eq.s32.totalorder %s17, 2
    %p49 = por %p47, %p48
    %p50 = scmp.ne.s32.totalorder %s39, %s40
    %p51 = scmp.eq.s32.totalorder %s17, 0
    %p52 = por %p50, %p51
    %p53 = scmp.ne.s32.totalorder %s39, %s40
    %p54 = scmp.eq.s32.totalorder %s18, 2
    %p55 = por %p53, %p54
    %p57 = scmp.ne.s32.totalorder %s40, %s56
    %p58 = scmp.eq.s32.totalorder %s18, 0
    %p59 = por %p57, %p58
    %s61 = sadd.s32 %s60, 1
    %p64 = scmp.eq.s32.totalorder %s12, 2
    %p65 = scmp.ne.s32.totalorder %s60, %s62
    %p66 = scmp.eq.s32.totalorder %s12, 0
    %p67 = por %p65, %p66
    %p68 = scmp.ne.s32.totalorder %s60, %s62
    %p69 = scmp.eq.s32.totalorder %s17, 2
    %p70 = por %p68, %p69
    %p71 = scmp.ne.s32.totalorder %s62, %s63
    %p72 = scmp.eq.s32.totalorder %s17, 0
    %p73 = por %p71, %p72
    %p74 = scmp.ne.s32.totalorder %s62, %s63
    %p75 = scmp.eq.s32.totalorder %s18, 2
    %p76 = por %p74, %p75
    %p78 = scmp.ne.s32.totalorder %s63, %s77
    %p79 = scmp.eq.s32.totalorder %s18, 0
    %p80 = por %p78, %p79
    %s82 = sadd.s32 %s81, 1
    %p85 = scmp.eq.s32.totalorder %s12, 2
    %p86 = scmp.ne.s32.totalorder %s81, %s83
    %p87 = scmp.eq.s32.totalorder %s12, 0
    %p88 = por %p86, %p87
    %p89 = scmp.ne.s32.totalorder %s81, %s83
    %p90 = scmp.eq.s32.totalorder %s17, 2
    %p91 = por %p89, %p90
    %p92 = scmp.ne.s32.totalorder %s83, %s84
    %p93 = scmp.eq.s32.totalorder %s17, 0
    %p94 = por %p92, %p93
    %p95 = scmp.ne.s32.totalorder %s83, %s84
    %p96 = scmp.eq.s32.totalorder %s18, 2
    %p97 = por %p95, %p96
    %p99 = scmp.ne.s32.totalorder %s84, %s98
    %p100 = scmp.eq.s32.totalorder %s18, 0
    %p101 = por %p99, %p100
    %s103 = sadd.s32 %s102, 1
    %p106 = scmp.eq.s32.totalorder %s12, 2
    %p107 = scmp.ne.s32.totalorder %s102, %s104
    %p108 = scmp.eq.s32.totalorder %s12, 0
    %p109 = por %p107, %p108
    %p110 = scmp.ne.s32.totalorder %s102, %s104
    %p111 = scmp.eq.s32.totalorder %s17, 2
    %p112 = por %p110, %p111
    %p113 = scmp.ne.s32.totalorder %s104, %s105
    %p114 = scmp.eq.s32.totalorder %s17, 0
    %p115 = por %p113, %p114
    %p116 = scmp.ne.s32.totalorder %s104, %s105
    %p117 = scmp.eq.s32.totalorder %s18, 2
    %p118 = por %p116, %p117
    %p120 = scmp.ne.s32.totalorder %s105, %s119
    %p121 = scmp.eq.s32.totalorder %s18, 0
    %p122 = por %p120, %p121
    %s123 = ssub.s32 %s19, %s31
    %p124 = scmp.eq.s32.totalorder %s123, 0
    %s126 = sadd.s32 %s125, 1
    %s127 = scalar_select %p124, %s125, %s126
    %p130 = pneg %p124
    %p131 = scmp.eq.s32.totalorder %s12, 2
    %p132 = por %p130, %p131
    %p133 = scmp.ne.s32.totalorder %s125, %s128
    %p134 = scmp.eq.s32.totalorder %s12, 0
    %p135 = por %p133, %p134
    %p136 = scmp.ne.s32.totalorder %s125, %s128
    %p137 = scmp.eq.s32.totalorder %s17, 2
    %p138 = por %p136, %p137
    %p139 = scmp.ne.s32.totalorder %s128, %s129
    %p140 = scmp.eq.s32.totalorder %s17, 0
    %p141 = por %p139, %p140
    %p142 = scmp.ne.s32.totalorder %s128, %s129
    %p143 = scmp.eq.s32.totalorder %s18, 2
    %p144 = por %p142, %p143
    %p146 = scmp.ne.s32.totalorder %s129, %s145
    %p147 = scmp.eq.s32.totalorder %s18, 0
    %p148 = por %p146, %p147
    %s149 = ssub.s32 %s19, %s31
    %p150 = scmp.eq.s32.totalorder %s149, 0
    %s152 = sadd.s32 %s151, 1
    %s153 = scalar_select %p150, %s151, %s152
    %p156 = pneg %p150
    %p157 = scmp.eq.s32.totalorder %s12, 2
    %p158 = por %p156, %p157
    %p159 = scmp.ne.s32.totalorder %s151, %s154
    %p160 = scmp.eq.s32.totalorder %s12, 0
    %p161 = por %p159, %p160
    %p162 = scmp.ne.s32.totalorder %s151, %s154
    %p163 = scmp.eq.s32.totalorder %s17, 2
    %p164 = por %p162, %p163
    %p165 = scmp.ne.s32.totalorder %s154, %s155
    %p166 = scmp.eq.s32.totalorder %s17, 0
    %p167 = por %p165, %p166
    %p168 = scmp.ne.s32.totalorder %s154, %s155
    %p169 = scmp.eq.s32.totalorder %s18, 2
    %p170 = por %p168, %p169
    %p172 = scmp.ne.s32.totalorder %s155, %s171
    %p173 = scmp.eq.s32.totalorder %s18, 0
    %p174 = por %p172, %p173
    %s175 = ssub.s32 %s20, %s27
    %s176 = ssub.s32 %s19, %s31
    %s177 = sor.u32 %s175, %s176
    %p178 = scmp.eq.s32.totalorder %s177, 0
    %s180 = sadd.s32 %s179, 1
    %s181 = scalar_select %p178, %s179, %s180
    %p184 = pneg %p178
    %p185 = scmp.eq.s32.totalorder %s12, 2
    %p186 = por %p184, %p185
    %p187 = scmp.ne.s32.totalorder %s179, %s182
    %p188 = scmp.eq.s32.totalorder %s12, 0
    %p189 = por %p187, %p188
    %p190 = scmp.ne.s32.totalorder %s179, %s182
    %p191 = scmp.eq.s32.totalorder %s17, 2
    %p192 = por %p190, %p191
    %p193 = scmp.ne.s32.totalorder %s182, %s183
    %p194 = scmp.eq.s32.totalorder %s17, 0
    %p195 = por %p193, %p194
    %p196 = scmp.ne.s32.totalorder %s182, %s183
    %p197 = scmp.eq.s32.totalorder %s18, 2
    %p198 = por %p196, %p197
    %p200 = scmp.ne.s32.totalorder %s183, %s199
    %p201 = scmp.eq.s32.totalorder %s18, 0
    %p202 = por %p200, %p201
    %p203 = scmp.le.s32.totalorder 1, %s12
    %p204 = scmp.lt.s32.totalorder %s12, 4
    %p205 = pnand %p203, %p204
    %p206 = pneg %p205
    // Predicated region
    $region9: #{critic_forward.5} parent=5 // pred_check
      _
    $region10: #{critic_forward.5} parent=5 // pred_check_branch
      %208 = sbr.rel (%p205) target = $region12
    $region11: #{critic_forward.5} parent=5 // pred_region
      %s209 = ssub.s32 %s12, 1
      // Predicated region
      $region13: #{critic_forward.5} parent=11 // pred_check
        %p210 = pneg %p73
      $region14: #{critic_forward.5} parent=11 // pred_check_branch
        %212 = sbr.rel (%p210) target = $region16
      $region15: #{critic_forward.5} parent=11 // pred_region
        _
      $region16: #{critic_forward.5} parent=11 // pred_fallthru
        _
      // Predicated region
      $region17: #{critic_forward.5} parent=11 // pred_check
        %p213 = pneg %p94
      $region18: #{critic_forward.5} parent=11 // pred_check_branch
        %215 = sbr.rel (%p213) target = $region20
      $region19: #{critic_forward.5} parent=11 // pred_region
        _
      $region20: #{critic_forward.5} parent=11 // pred_fallthru
        _
      // Predicated region
      $region21: #{critic_forward.5} parent=11 // pred_check
        %p216 = pneg %p115
      $region22: #{critic_forward.5} parent=11 // pred_check_branch
        %218 = sbr.rel (%p216) target = $region24
      $region23: #{critic_forward.5} parent=11 // pred_region
        _
      $region24: #{critic_forward.5} parent=11 // pred_fallthru
        _
      // Predicated region
      $region25: #{critic_forward.5} parent=11 // pred_check
        %p219 = pneg %p141
      $region26: #{critic_forward.5} parent=11 // pred_check_branch
        %221 = sbr.rel (%p219) target = $region28
      $region27: #{critic_forward.5} parent=11 // pred_region
        %p222 = scmp.lt.s32.totalorder %s21, 0
        %s223 = scalar_select %p222, %s21, 0
        %s224 = smul.addr %s223, 2
        %s225 = scalar_lea.vmem %s4, %s224
      $region28: #{critic_forward.5} parent=11 // pred_fallthru
        _
      // Predicated region
      $region29: #{critic_forward.5} parent=11 // pred_check
        %p226 = pneg %p167
      $region30: #{critic_forward.5} parent=11 // pred_check_branch
        %228 = sbr.rel (%p226) target = $region32
      $region31: #{critic_forward.5} parent=11 // pred_region
        %p229 = scmp.lt.s32.totalorder %s21, 0
        %s230 = scalar_select %p229, %s21, 0
        %s231 = smul.addr %s230, 2
        %s232 = scalar_lea.vmem %s5, %s231
      $region32: #{critic_forward.5} parent=11 // pred_fallthru
        _
    $region12: #{critic_forward.5} parent=5 // pred_fallthru
      _
    %p233 = scmp.lt.s32.totalorder %s12, 3
    // Predicated region
    $region33: #{critic_forward.5} parent=5 // pred_check
      %p234 = pneg %p233
    $region34: #{critic_forward.5} parent=5 // pred_check_branch
      %236 = sbr.rel (%p234) target = $region36
    $region35: #{critic_forward.5} parent=5 // pred_region
      // Predicated region
      $region37: #{critic_forward.5} parent=35 // pred_check
        %p237 = pneg %p46
      $region38: #{critic_forward.5} parent=35 // pred_check_branch
        %239 = sbr.rel (%p237) target = $region40
      $region39: #{critic_forward.5} parent=35 // pred_region
        %s240 = smul.u32 3, %s20
        %p241 = scmp.lt.s32.totalorder %s240, 8
        %s242 = scalar_select %p241, %s240, 8
        %p243 = scmp.lt.s32.totalorder %s19, 0
        %s244 = scalar_select %p243, %s19, 0
        %s245 = sadd.s32 %s244, %s242
        %s246 = scalar_lea.vmem %s0, %s245
        %s247 = smul.u32 3, %s20
      $region40: #{critic_forward.5} parent=35 // pred_fallthru
        _
    $region36: #{critic_forward.5} parent=5 // pred_fallthru
      _
    %p248 = scmp.le.s32.totalorder 1, %s12
    %p249 = scmp.lt.s32.totalorder %s12, 4
    %p250 = pnand %p248, %p249
    %p251 = pneg %p250
    // Predicated region
    $region41: #{critic_forward.5} parent=5 // pred_check
      _
    $region42: #{critic_forward.5} parent=5 // pred_check_branch
      %253 = sbr.rel (%p250) target = $region44
    $region43: #{critic_forward.5} parent=5 // pred_region
      %s254 = ssub.s32 %s12, 1
      %s255 = smul.u32 3, %s22
      %p256 = scmp.lt.s32.totalorder %s255, 8
      %s257 = scalar_select %p256, %s255, 8
      %p258 = scmp.lt.s32.totalorder %s21, 0
      %s259 = scalar_select %p258, %s21, 0
      %s260 = sadd.s32 %s259, %s257
      %s261 = scalar_lea.vmem %s0, %s260
      %p262 = pneg %p52
      %p263 = pneg %p49
      %p264 = pneg %p73
      %p265 = pneg %p70
      %p266 = pneg %p94
      %p267 = pneg %p91
      %p268 = pneg %p115
      %p269 = pneg %p112
      %p270 = scmp.lt.s32.totalorder %s21, 0
      %s271 = scalar_select %p270, %s21, 0
      %s272 = smul.addr %s271, 2
      %s273 = scalar_lea.vmem %s4, %s272
      %p274 = pneg %p141
      %p275 = pneg %p138
      %p276 = scmp.lt.s32.totalorder %s21, 0
      %s277 = scalar_select %p276, %s21, 0
      %s278 = smul.addr %s277, 2
      %s279 = scalar_lea.vmem %s5, %s278
      %p280 = pneg %p167
      %p281 = pneg %p164
      %p282 = pneg %p195
      %p283 = pneg %p192
      %s284 = smul.u32 3, %s22
      %p285 = scmp.lt.s32.totalorder %s284, 8
      %s286 = scalar_select %p285, %s284, 8
      %p287 = scmp.lt.s32.totalorder %s21, 0
      %s288 = scalar_select %p287, %s21, 0
      %s289 = sadd.s32 %s288, %s286
      %s290 = scalar_lea.vmem %s6, %s289
      %s291 = smul.u32 3, %s22
      %p292 = scmp.lt.s32.totalorder %s291, 8
      %s293 = scalar_select %p292, %s291, 8
      %p294 = scmp.lt.s32.totalorder %s21, 0
      %s295 = scalar_select %p294, %s21, 0
      %s296 = sadd.s32 %s295, %s293
      %s297 = scalar_lea.vmem %s0, %s296
      %s298 = smul.u32 3, %s22
      %p299 = scmp.lt.s32.totalorder %s21, 0
      %s300 = scalar_select %p299, %s21, 0
      %s301 = smul.addr %s300, 2
      %s302 = scalar_lea.vmem %s4, %s301
      %p303 = scmp.lt.s32.totalorder %s21, 0
      %s304 = scalar_select %p303, %s21, 0
      %s305 = smul.addr %s304, 2
      %s306 = scalar_lea.vmem %s5, %s305
      %s307 = smul.u32 3, %s22
      %p308 = scmp.lt.s32.totalorder %s307, 8
      %s309 = scalar_select %p308, %s307, 8
      %p310 = scmp.lt.s32.totalorder %s21, 0
      %s311 = scalar_select %p310, %s21, 0
      %s312 = sadd.s32 %s311, %s309
      %s313 = scalar_lea.vmem %s6, %s312
      %s314 = smul.u32 3, %s22
      %p316 = scmp.eq.s32.totalorder %s22, 0
      // Predicated region
      $region45: #{critic_forward.5} parent=43 // pred_check
        %p317 = pneg %p316
      $region46: #{critic_forward.5} parent=43 // pred_check_branch
        %319 = sbr.rel (%p317) target = $region48
      $region47: #{critic_forward.5} parent=43 // pred_region
        %v320 = vld [vmem:[%s302] sm:$0x3]
        %321 = vst [vmem:[#allocation2] sm:$0x3] %v320
        %v322 = vld [vmem:[%s306] sm:$0x3]
        %323 = vst [vmem:[#allocation3] sm:$0x3] %v322
      $region48: #{critic_forward.5} parent=43 // pred_fallthru
        _
      %v324 = vld [vmem:[%s1] sm:$0xff]
      %v325 = vld [vmem:[%s1 + $0x8] sm:$0xff]
      %v326 = vld [vmem:[%s1 + $0x10] sm:$0xff]
      %v327 = vld [vmem:[%s1 + $0x18] sm:$0xff]
      %v328 = vld [vmem:[%s1 + $0x20] sm:$0xff]
      %v329 = vld [vmem:[%s1 + $0x28] sm:$0xff]
      %v330 = vld [vmem:[%s1 + $0x30] sm:$0xff]
      %v331 = vld [vmem:[%s1 + $0x38] sm:$0xff]
      %v332 = vld [vmem:[%s1 + $0x40] sm:$0xff]
      %v333 = vld [vmem:[%s1 + $0x48] sm:$0xff]
      %v334 = vld [vmem:[%s1 + $0x50] sm:$0xff]
      %v335 = vld [vmem:[%s1 + $0x58] sm:$0xff]
      %v336 = vld [vmem:[%s1 + $0x60] sm:$0xff]
      %v337 = vld [vmem:[%s1 + $0x68] sm:$0xff]
      %v338 = vld [vmem:[%s1 + $0x70] sm:$0xff]
      %v339 = vld [vmem:[%s1 + $0x78] sm:$0xff]
      %v340 = vld [vmem:[%s1 + $0x80] sm:$0xff]
      %v341 = vld [vmem:[%s1 + $0x88] sm:$0xff]
      %v342 = vld [vmem:[%s1 + $0x90] sm:$0xff]
      %v343 = vld [vmem:[%s1 + $0x98] sm:$0xff]
      %v344 = vld [vmem:[%s1 + $0xa0] sm:$0xff]
      %v345 = vld [vmem:[%s1 + $0xa8] sm:$0xff]
      %v346 = vld [vmem:[%s1 + $0xb0] sm:$0xff]
      %v347 = vld [vmem:[%s1 + $0xb8] sm:$0xff]
      %v348 = vld [vmem:[%s1 + $0xc0] sm:$0xff]
      %v349 = vld [vmem:[%s1 + $0xc8] sm:$0xff]
      %v350 = vld [vmem:[%s1 + $0xd0] sm:$0xff]
      %v351 = vld [vmem:[%s1 + $0xd8] sm:$0xff]
      %v352 = vld [vmem:[%s1 + $0xe0] sm:$0xff]
      %v353 = vld [vmem:[%s1 + $0xe8] sm:$0xff]
      %v354 = vld [vmem:[%s1 + $0xf0] sm:$0xff]
      %v355 = vld [vmem:[%s1 + $0xf8] sm:$0xff]
      %v356 = vld [vmem:[%s2] sm:$0xff]
      %v357 = vld [vmem:[%s2 + $0x8] sm:$0xff]
      %v358 = vld [vmem:[%s2 + $0x10] sm:$0xff]
      %v359 = vld [vmem:[%s2 + $0x18] sm:$0xff]
      %v360 = vld [vmem:[%s2 + $0x20] sm:$0xff]
      %v361 = vld [vmem:[%s2 + $0x28] sm:$0xff]
      %v362 = vld [vmem:[%s2 + $0x30] sm:$0xff]
      %v363 = vld [vmem:[%s2 + $0x38] sm:$0xff]
      %v364 = vld [vmem:[%s2 + $0x40] sm:$0xff]
      %v365 = vld [vmem:[%s2 + $0x48] sm:$0xff]
      %v366 = vld [vmem:[%s2 + $0x50] sm:$0xff]
      %v367 = vld [vmem:[%s2 + $0x58] sm:$0xff]
      %v368 = vld [vmem:[%s2 + $0x60] sm:$0xff]
      %v369 = vld [vmem:[%s2 + $0x68] sm:$0xff]
      %v370 = vld [vmem:[%s2 + $0x70] sm:$0xff]
      %v371 = vld [vmem:[%s2 + $0x78] sm:$0xff]
      %v372 = vld [vmem:[%s2 + $0x80] sm:$0xff]
      %v373 = vld [vmem:[%s2 + $0x88] sm:$0xff]
      %v374 = vld [vmem:[%s2 + $0x90] sm:$0xff]
      %v375 = vld [vmem:[%s2 + $0x98] sm:$0xff]
      %v376 = vld [vmem:[%s2 + $0xa0] sm:$0xff]
      %v377 = vld [vmem:[%s2 + $0xa8] sm:$0xff]
      %v378 = vld [vmem:[%s2 + $0xb0] sm:$0xff]
      %v379 = vld [vmem:[%s2 + $0xb8] sm:$0xff]
      %v380 = vld [vmem:[%s2 + $0xc0] sm:$0xff]
      %v381 = vld [vmem:[%s2 + $0xc8] sm:$0xff]
      %v382 = vld [vmem:[%s2 + $0xd0] sm:$0xff]
      %v383 = vld [vmem:[%s2 + $0xd8] sm:$0xff]
      %v384 = vld [vmem:[%s2 + $0xe0] sm:$0xff]
      %v385 = vld [vmem:[%s2 + $0xe8] sm:$0xff]
      %v386 = vld [vmem:[%s2 + $0xf0] sm:$0xff]
      %v387 = vld [vmem:[%s2 + $0xf8] sm:$0xff]
      %v388 = vld [vmem:[%s3] sm:$0xf]
      %v390 = vlaneseq
      %v391 = vshrl.u32 %v390, 7
      %v392 = vsub.s32 0, %v391
      %v393 = vrot.slane %v388, %v392
      %v394 = vlaneseq
      %v395 = vshrl.u32 %v394, 7
      %v396 = vsub.s32 1, %v395
      %v397 = vrot.slane %v388, %v396
      %v398 = vlaneseq
      %v399 = vshrl.u32 %v398, 7
      %v400 = vsub.s32 2, %v399
      %v401 = vrot.slane %v388, %v400
      %v402 = vlaneseq
      %v403 = vshrl.u32 %v402, 7
      %v404 = vsub.s32 3, %v403
      %v405 = vrot.slane %v388, %v404
      %v410 = vld [vmem:[%s297] sm:$0x1]
      %v411 = vld [vmem:[#allocation2] sm:$0x3]
      %v412 = vpack.c.bf16 %v411, %v411
      %v445 = vunpack.c.l.b16 %v356
      %v446 = vunpack.c.h.b16 %v356
      %v447 = vunpack.c.l.b16 %v357
      %v448 = vunpack.c.h.b16 %v357
      %v449 = vunpack.c.l.b16 %v358
      %v450 = vunpack.c.h.b16 %v358
      %v451 = vunpack.c.l.b16 %v359
      %v452 = vunpack.c.h.b16 %v359
      %v453 = vunpack.c.l.b16 %v360
      %v454 = vunpack.c.h.b16 %v360
      %v455 = vunpack.c.l.b16 %v361
      %v456 = vunpack.c.h.b16 %v361
      %v457 = vunpack.c.l.b16 %v362
      %v458 = vunpack.c.h.b16 %v362
      %v459 = vunpack.c.l.b16 %v363
      %v460 = vunpack.c.h.b16 %v363
      %v461 = vunpack.c.l.b16 %v364
      %v462 = vunpack.c.h.b16 %v364
      %v463 = vunpack.c.l.b16 %v365
      %v464 = vunpack.c.h.b16 %v365
      %v465 = vunpack.c.l.b16 %v366
      %v466 = vunpack.c.h.b16 %v366
      %v467 = vunpack.c.l.b16 %v367
      %v468 = vunpack.c.h.b16 %v367
      %v469 = vunpack.c.l.b16 %v368
      %v470 = vunpack.c.h.b16 %v368
      %v471 = vunpack.c.l.b16 %v369
      %v472 = vunpack.c.h.b16 %v369
      %v473 = vunpack.c.l.b16 %v370
      %v474 = vunpack.c.h.b16 %v370
      %v475 = vunpack.c.l.b16 %v371
      %v476 = vunpack.c.h.b16 %v371
      %v477 = vunpack.c.l.b16 %v372
      %v478 = vunpack.c.h.b16 %v372
      %v479 = vunpack.c.l.b16 %v373
      %v480 = vunpack.c.h.b16 %v373
      %v481 = vunpack.c.l.b16 %v374
      %v482 = vunpack.c.h.b16 %v374
      %v483 = vunpack.c.l.b16 %v375
      %v484 = vunpack.c.h.b16 %v375
      %v485 = vunpack.c.l.b16 %v376
      %v486 = vunpack.c.h.b16 %v376
      %v487 = vunpack.c.l.b16 %v377
      %v488 = vunpack.c.h.b16 %v377
      %v489 = vunpack.c.l.b16 %v378
      %v490 = vunpack.c.h.b16 %v378
      %v491 = vunpack.c.l.b16 %v379
      %v492 = vunpack.c.h.b16 %v379
      %v493 = vunpack.c.l.b16 %v380
      %v494 = vunpack.c.h.b16 %v380
      %v495 = vunpack.c.l.b16 %v381
      %v496 = vunpack.c.h.b16 %v381
      %v497 = vunpack.c.l.b16 %v382
      %v498 = vunpack.c.h.b16 %v382
      %v499 = vunpack.c.l.b16 %v383
      %v500 = vunpack.c.h.b16 %v383
      %v501 = vunpack.c.l.b16 %v384
      %v502 = vunpack.c.h.b16 %v384
      %v503 = vunpack.c.l.b16 %v385
      %v504 = vunpack.c.h.b16 %v385
      %v505 = vunpack.c.l.b16 %v386
      %v506 = vunpack.c.h.b16 %v386
      %v507 = vunpack.c.l.b16 %v387
      %v508 = vunpack.c.h.b16 %v387
      %v509 = vpack.c.b16 %v449, %v445
      %v510 = vpack.c.b16 %v450, %v446
      %v511 = vpack.c.b16 %v451, %v447
      %v512 = vpack.c.b16 %v452, %v448
      %v513 = vpack.c.b16 %v457, %v453
      %v514 = vpack.c.b16 %v458, %v454
      %v515 = vpack.c.b16 %v459, %v455
      %v516 = vpack.c.b16 %v460, %v456
      %v517 = vpack.c.b16 %v465, %v461
      %v518 = vpack.c.b16 %v466, %v462
      %v519 = vpack.c.b16 %v467, %v463
      %v520 = vpack.c.b16 %v468, %v464
      %v521 = vpack.c.b16 %v473, %v469
      %v522 = vpack.c.b16 %v474, %v470
      %v523 = vpack.c.b16 %v475, %v471
      %v524 = vpack.c.b16 %v476, %v472
      %v525 = vpack.c.b16 %v481, %v477
      %v526 = vpack.c.b16 %v482, %v478
      %v527 = vpack.c.b16 %v483, %v479
      %v528 = vpack.c.b16 %v484, %v480
      %v529 = vpack.c.b16 %v489, %v485
      %v530 = vpack.c.b16 %v490, %v486
      %v531 = vpack.c.b16 %v491, %v487
      %v532 = vpack.c.b16 %v492, %v488
      %v533 = vpack.c.b16 %v497, %v493
      %v534 = vpack.c.b16 %v498, %v494
      %v535 = vpack.c.b16 %v499, %v495
      %v536 = vpack.c.b16 %v500, %v496
      %v537 = vpack.c.b16 %v505, %v501
      %v538 = vpack.c.b16 %v506, %v502
      %v539 = vpack.c.b16 %v507, %v503
      %v540 = vpack.c.b16 %v508, %v504
      %573 = vmatprep.subr.bf16.mxu0 %v510
      %574 = vmatpush1.bf16.msra.mxu0 %v509
      %575 = vmatprep.subr.bf16.mxu0 %v514
      %576 = vmatpush1.bf16.msra.mxu0 %v513
      %577 = vmatprep.subr.bf16.mxu0 %v518
      %578 = vmatpush1.bf16.msra.mxu0 %v517
      %579 = vmatprep.subr.bf16.mxu0 %v522
      %580 = vmatpush1.bf16.msra.mxu0 %v521
      %581 = vmatprep.subr.bf16.mxu0 %v526
      %582 = vmatpush1.bf16.msra.mxu0 %v525
      %583 = vmatprep.subr.bf16.mxu0 %v530
      %584 = vmatpush1.bf16.msra.mxu0 %v529
      %585 = vmatprep.subr.bf16.mxu0 %v534
      %586 = vmatpush1.bf16.msra.mxu0 %v533
      %587 = vmatprep.subr.bf16.mxu0 %v538
      %588 = vmatpush1.bf16.msra.mxu0 %v537
      %589 = vmatprep.subr.bf16.mxu0 0
      %590 = vmatpush1.bf16.msra.mxu0 0
      %591 = vmatprep.subr.bf16.mxu0 0
      %592 = vmatpush1.bf16.msra.mxu0 0
      %593 = vmatprep.subr.bf16.mxu0 0
      %594 = vmatpush1.bf16.msra.mxu0 0
      %595 = vmatprep.subr.bf16.mxu0 0
      %596 = vmatpush1.bf16.msra.mxu0 0
      %597 = vmatprep.subr.bf16.mxu0 0
      %598 = vmatpush1.bf16.msra.mxu0 0
      %599 = vmatprep.subr.bf16.mxu0 0
      %600 = vmatpush1.bf16.msra.mxu0 0
      %601 = vmatprep.subr.bf16.mxu0 0
      %602 = vmatpush1.bf16.msra.mxu0 0
      %603 = vmatprep.subr.bf16.mxu0 0
      %604 = vmatpush1.bf16.msra.mxu0 0
      %605 = vmatprep.mubr.bf16.mxu0 0
      %606 = vmatmul.mubr.bf16.gmra.mrb[0].mxu0 %v412
      %v607 = vpop.f32.mrb[0].mxu0
      %v608 = vadd.f32 0.0, %v607
      %v609 = vpop.f32.mrb[0].mxu0
      %v610 = vadd.f32 0.0, %v609
      %v611 = vpop.f32.mrb[0].mxu0
      %v612 = vpop.f32.mrb[0].mxu0
      %613 = vdwg.mxu0
      %614 = vmatprep.subr.bf16.mxu0 %v512
      %615 = vmatpush1.bf16.msra.mxu0 %v511
      %616 = vmatprep.subr.bf16.mxu0 %v516
      %617 = vmatpush1.bf16.msra.mxu0 %v515
      %618 = vmatprep.subr.bf16.mxu0 %v520
      %619 = vmatpush1.bf16.msra.mxu0 %v519
      %620 = vmatprep.subr.bf16.mxu0 %v524
      %621 = vmatpush1.bf16.msra.mxu0 %v523
      %622 = vmatprep.subr.bf16.mxu0 %v528
      %623 = vmatpush1.bf16.msra.mxu0 %v527
      %624 = vmatprep.subr.bf16.mxu0 %v532
      %625 = vmatpush1.bf16.msra.mxu0 %v531
      %626 = vmatprep.subr.bf16.mxu0 %v536
      %627 = vmatpush1.bf16.msra.mxu0 %v535
      %628 = vmatprep.subr.bf16.mxu0 %v540
      %629 = vmatpush1.bf16.msra.mxu0 %v539
      %630 = vmatprep.subr.bf16.mxu0 0
      %631 = vmatpush1.bf16.msra.mxu0 0
      %632 = vmatprep.subr.bf16.mxu0 0
      %633 = vmatpush1.bf16.msra.mxu0 0
      %634 = vmatprep.subr.bf16.mxu0 0
      %635 = vmatpush1.bf16.msra.mxu0 0
      %636 = vmatprep.subr.bf16.mxu0 0
      %637 = vmatpush1.bf16.msra.mxu0 0
      %638 = vmatprep.subr.bf16.mxu0 0
      %639 = vmatpush1.bf16.msra.mxu0 0
      %640 = vmatprep.subr.bf16.mxu0 0
      %641 = vmatpush1.bf16.msra.mxu0 0
      %642 = vmatprep.subr.bf16.mxu0 0
      %643 = vmatpush1.bf16.msra.mxu0 0
      %644 = vmatprep.subr.bf16.mxu0 0
      %645 = vmatpush1.bf16.msra.mxu0 0
      %646 = vmatprep.mubr.bf16.mxu0 0
      %647 = vmatmul.mubr.bf16.gmra.mrb[0].mxu0 %v412
      %v648 = vpop.f32.mrb[0].mxu0
      %v649 = vadd.f32 0.0, %v648
      %v650 = vpop.f32.mrb[0].mxu0
      %v651 = vadd.f32 0.0, %v650
      %v652 = vpop.f32.mrb[0].mxu0
      %v653 = vpop.f32.mrb[0].mxu0
      %654 = vdwg.mxu0
      %v687 = vunpack.c.l.b16 %v324
      %v688 = vunpack.c.h.b16 %v324
      %v689 = vunpack.c.l.b16 %v325
      %v690 = vunpack.c.h.b16 %v325
      %v691 = vunpack.c.l.b16 %v326
      %v692 = vunpack.c.h.b16 %v326
      %v693 = vunpack.c.l.b16 %v327
      %v694 = vunpack.c.h.b16 %v327
      %v695 = vunpack.c.l.b16 %v328
      %v696 = vunpack.c.h.b16 %v328
      %v697 = vunpack.c.l.b16 %v329
      %v698 = vunpack.c.h.b16 %v329
      %v699 = vunpack.c.l.b16 %v330
      %v700 = vunpack.c.h.b16 %v330
      %v701 = vunpack.c.l.b16 %v331
      %v702 = vunpack.c.h.b16 %v331
      %v703 = vunpack.c.l.b16 %v332
      %v704 = vunpack.c.h.b16 %v332
      %v705 = vunpack.c.l.b16 %v333
      %v706 = vunpack.c.h.b16 %v333
      %v707 = vunpack.c.l.b16 %v334
      %v708 = vunpack.c.h.b16 %v334
      %v709 = vunpack.c.l.b16 %v335
      %v710 = vunpack.c.h.b16 %v335
      %v711 = vunpack.c.l.b16 %v336
      %v712 = vunpack.c.h.b16 %v336
      %v713 = vunpack.c.l.b16 %v337
      %v714 = vunpack.c.h.b16 %v337
      %v715 = vunpack.c.l.b16 %v338
      %v716 = vunpack.c.h.b16 %v338
      %v717 = vunpack.c.l.b16 %v339
      %v718 = vunpack.c.h.b16 %v339
      %v719 = vunpack.c.l.b16 %v340
      %v720 = vunpack.c.h.b16 %v340
      %v721 = vunpack.c.l.b16 %v341
      %v722 = vunpack.c.h.b16 %v341
      %v723 = vunpack.c.l.b16 %v342
      %v724 = vunpack.c.h.b16 %v342
      %v725 = vunpack.c.l.b16 %v343
      %v726 = vunpack.c.h.b16 %v343
      %v727 = vunpack.c.l.b16 %v344
      %v728 = vunpack.c.h.b16 %v344
      %v729 = vunpack.c.l.b16 %v345
      %v730 = vunpack.c.h.b16 %v345
      %v731 = vunpack.c.l.b16 %v346
      %v732 = vunpack.c.h.b16 %v346
      %v733 = vunpack.c.l.b16 %v347
      %v734 = vunpack.c.h.b16 %v347
      %v735 = vunpack.c.l.b16 %v348
      %v736 = vunpack.c.h.b16 %v348
      %v737 = vunpack.c.l.b16 %v349
      %v738 = vunpack.c.h.b16 %v349
      %v739 = vunpack.c.l.b16 %v350
      %v740 = vunpack.c.h.b16 %v350
      %v741 = vunpack.c.l.b16 %v351
      %v742 = vunpack.c.h.b16 %v351
      %v743 = vunpack.c.l.b16 %v352
      %v744 = vunpack.c.h.b16 %v352
      %v745 = vunpack.c.l.b16 %v353
      %v746 = vunpack.c.h.b16 %v353
      %v747 = vunpack.c.l.b16 %v354
      %v748 = vunpack.c.h.b16 %v354
      %v749 = vunpack.c.l.b16 %v355
      %v750 = vunpack.c.h.b16 %v355
      %v751 = vpack.c.b16 %v691, %v687
      %v752 = vpack.c.b16 %v692, %v688
      %v753 = vpack.c.b16 %v693, %v689
      %v754 = vpack.c.b16 %v694, %v690
      %v755 = vpack.c.b16 %v699, %v695
      %v756 = vpack.c.b16 %v700, %v696
      %v757 = vpack.c.b16 %v701, %v697
      %v758 = vpack.c.b16 %v702, %v698
      %v759 = vpack.c.b16 %v707, %v703
      %v760 = vpack.c.b16 %v708, %v704
      %v761 = vpack.c.b16 %v709, %v705
      %v762 = vpack.c.b16 %v710, %v706
      %v763 = vpack.c.b16 %v715, %v711
      %v764 = vpack.c.b16 %v716, %v712
      %v765 = vpack.c.b16 %v717, %v713
      %v766 = vpack.c.b16 %v718, %v714
      %v767 = vpack.c.b16 %v723, %v719
      %v768 = vpack.c.b16 %v724, %v720
      %v769 = vpack.c.b16 %v725, %v721
      %v770 = vpack.c.b16 %v726, %v722
      %v771 = vpack.c.b16 %v731, %v727
      %v772 = vpack.c.b16 %v732, %v728
      %v773 = vpack.c.b16 %v733, %v729
      %v774 = vpack.c.b16 %v734, %v730
      %v775 = vpack.c.b16 %v739, %v735
      %v776 = vpack.c.b16 %v740, %v736
      %v777 = vpack.c.b16 %v741, %v737
      %v778 = vpack.c.b16 %v742, %v738
      %v779 = vpack.c.b16 %v747, %v743
      %v780 = vpack.c.b16 %v748, %v744
      %v781 = vpack.c.b16 %v749, %v745
      %v782 = vpack.c.b16 %v750, %v746
      %815 = vmatprep.subr.bf16.mxu0 %v752
      %816 = vmatpush1.bf16.msra.mxu0 %v751
      %817 = vmatprep.subr.bf16.mxu0 %v756
      %818 = vmatpush1.bf16.msra.mxu0 %v755
      %819 = vmatprep.subr.bf16.mxu0 %v760
      %820 = vmatpush1.bf16.msra.mxu0 %v759
      %821 = vmatprep.subr.bf16.mxu0 %v764
      %822 = vmatpush1.bf16.msra.mxu0 %v763
      %823 = vmatprep.subr.bf16.mxu0 %v768
      %824 = vmatpush1.bf16.msra.mxu0 %v767
      %825 = vmatprep.subr.bf16.mxu0 %v772
      %826 = vmatpush1.bf16.msra.mxu0 %v771
      %827 = vmatprep.subr.bf16.mxu0 %v776
      %828 = vmatpush1.bf16.msra.mxu0 %v775
      %829 = vmatprep.subr.bf16.mxu0 %v780
      %830 = vmatpush1.bf16.msra.mxu0 %v779
      %831 = vmatprep.subr.bf16.mxu0 0
      %832 = vmatpush1.bf16.msra.mxu0 0
      %833 = vmatprep.subr.bf16.mxu0 0
      %834 = vmatpush1.bf16.msra.mxu0 0
      %835 = vmatprep.subr.bf16.mxu0 0
      %836 = vmatpush1.bf16.msra.mxu0 0
      %837 = vmatprep.subr.bf16.mxu0 0
      %838 = vmatpush1.bf16.msra.mxu0 0
      %839 = vmatprep.subr.bf16.mxu0 0
      %840 = vmatpush1.bf16.msra.mxu0 0
      %841 = vmatprep.subr.bf16.mxu0 0
      %842 = vmatpush1.bf16.msra.mxu0 0
      %843 = vmatprep.subr.bf16.mxu0 0
      %844 = vmatpush1.bf16.msra.mxu0 0
      %845 = vmatprep.subr.bf16.mxu0 0
      %846 = vmatpush1.bf16.msra.mxu0 0
      %847 = vmatprep.mubr.bf16.mxu0 0
      %848 = vmatmul.mubr.bf16.gmra.mrb[0].mxu0 %v410
      %v849 = vpop.f32.mrb[0].mxu0
      %v850 = vadd.f32 %v608, %v849
      %v851 = vpop.f32.mrb[0].mxu0
      %v852 = vadd.f32 %v610, %v851
      %v853 = vpop.f32.mrb[0].mxu0
      %v854 = vpop.f32.mrb[0].mxu0
      %855 = vdwg.mxu0
      %856 = vmatprep.subr.bf16.mxu0 %v754
      %857 = vmatpush1.bf16.msra.mxu0 %v753
      %858 = vmatprep.subr.bf16.mxu0 %v758
      %859 = vmatpush1.bf16.msra.mxu0 %v757
      %860 = vmatprep.subr.bf16.mxu0 %v762
      %861 = vmatpush1.bf16.msra.mxu0 %v761
      %862 = vmatprep.subr.bf16.mxu0 %v766
      %863 = vmatpush1.bf16.msra.mxu0 %v765
      %864 = vmatprep.subr.bf16.mxu0 %v770
      %865 = vmatpush1.bf16.msra.mxu0 %v769
      %866 = vmatprep.subr.bf16.mxu0 %v774
      %867 = vmatpush1.bf16.msra.mxu0 %v773
      %868 = vmatprep.subr.bf16.mxu0 %v778
      %869 = vmatpush1.bf16.msra.mxu0 %v777
      %870 = vmatprep.subr.bf16.mxu0 %v782
      %871 = vmatpush1.bf16.msra.mxu0 %v781
      %872 = vmatprep.subr.bf16.mxu0 0
      %873 = vmatpush1.bf16.msra.mxu0 0
      %874 = vmatprep.subr.bf16.mxu0 0
      %875 = vmatpush1.bf16.msra.mxu0 0
      %876 = vmatprep.subr.bf16.mxu0 0
      %877 = vmatpush1.bf16.msra.mxu0 0
      %878 = vmatprep.subr.bf16.mxu0 0
      %879 = vmatpush1.bf16.msra.mxu0 0
      %880 = vmatprep.subr.bf16.mxu0 0
      %881 = vmatpush1.bf16.msra.mxu0 0
      %882 = vmatprep.subr.bf16.mxu0 0
      %883 = vmatpush1.bf16.msra.mxu0 0
      %884 = vmatprep.subr.bf16.mxu0 0
      %885 = vmatpush1.bf16.msra.mxu0 0
      %886 = vmatprep.subr.bf16.mxu0 0
      %887 = vmatpush1.bf16.msra.mxu0 0
      %888 = vmatprep.mubr.bf16.mxu0 0
      %889 = vmatmul.mubr.bf16.gmra.mrb[0].mxu0 %v410
      %v890 = vpop.f32.mrb[0].mxu0
      %v891 = vadd.f32 %v649, %v890
      %v892 = vpop.f32.mrb[0].mxu0
      %v893 = vadd.f32 %v651, %v892
      %v894 = vpop.f32.mrb[0].mxu0
      %v895 = vpop.f32.mrb[0].mxu0
      %896 = vdwg.mxu0
      %v897 = vadd.f32 %v850, %v393
      %v898 = vadd.f32 %v852, %v397
      %v899 = vadd.f32 %v891, %v401
      %v900 = vadd.f32 %v893, %v405
      %v901 = vxor.u32 %v897, 2147483648
      %v902 = vmul.f32 %v901, 1.442695
      %v903 = vpow.pop %v902
      %v904 = vadd.f32 %v903, 1.0
      %v905 = vrcp.pop %v904
      %v906 = vmul.f32 1.0, %v905
      %v907 = vxor.u32 %v898, 2147483648
      %v908 = vmul.f32 %v907, 1.442695
      %v909 = vpow.pop %v908
      %v910 = vadd.f32 %v909, 1.0
      %v911 = vrcp.pop %v910
      %v912 = vmul.f32 1.0, %v911
      %v913 = vtanh.pop %v899
      %v914 = vxor.u32 %v900, 2147483648
      %v915 = vmul.f32 %v914, 1.442695
      %v916 = vpow.pop %v915
      %v917 = vadd.f32 %v916, 1.0
      %v918 = vrcp.pop %v917
      %v919 = vmul.f32 1.0, %v918
      %v920 = vld [vmem:[#allocation3] sm:$0x3]
      %v921 = vmul.f32 %v912, %v920
      %v922 = vmul.f32 %v906, %v913
      %v923 = vadd.f32 %v921, %v922
      %v924 = vtanh.pop %v923
      %v925 = vmul.f32 %v919, %v924
      %926 = vst [vmem:[#allocation3] sm:$0x3] %v923
      %927 = vst [vmem:[#allocation2] sm:$0x3] %v925
      %v928 = vpack.c.bf16 %v925, %v925
      %929 = vst [vmem:[%s313] sm:$0x1] %v928
      %s930 = scalar_lea.vmem %s297, 1
      %v931 = vld [vmem:[%s930] sm:$0x1]
      %v932 = vld [vmem:[#allocation2] sm:$0x3]
      %v933 = vpack.c.bf16 %v932, %v932
      %934 = vmatprep.subr.bf16.mxu0 %v510
      %935 = vmatpush1.bf16.msra.mxu0 %v509
      %936 = vmatprep.subr.bf16.mxu0 %v514
      %937 = vmatpush1.bf16.msra.mxu0 %v513
      %938 = vmatprep.subr.bf16.mxu0 %v518
      %939 = vmatpush1.bf16.msra.mxu0 %v517
      %940 = vmatprep.subr.bf16.mxu0 %v522
      %941 = vmatpush1.bf16.msra.mxu0 %v521
      %942 = vmatprep.subr.bf16.mxu0 %v526
      %943 = vmatpush1.bf16.msra.mxu0 %v525
      %944 = vmatprep.subr.bf16.mxu0 %v530
      %945 = vmatpush1.bf16.msra.mxu0 %v529
      %946 = vmatprep.subr.bf16.mxu0 %v534
      %947 = vmatpush1.bf16.msra.mxu0 %v533
      %948 = vmatprep.subr.bf16.mxu0 %v538
      %949 = vmatpush1.bf16.msra.mxu0 %v537
      %950 = vmatprep.subr.bf16.mxu0 0
      %951 = vmatpush1.bf16.msra.mxu0 0
      %952 = vmatprep.subr.bf16.mxu0 0
      %953 = vmatpush1.bf16.msra.mxu0 0
      %954 = vmatprep.subr.bf16.mxu0 0
      %955 = vmatpush1.bf16.msra.mxu0 0
      %956 = vmatprep.subr.bf16.mxu0 0
      %957 = vmatpush1.bf16.msra.mxu0 0
      %958 = vmatprep.subr.bf16.mxu0 0
      %959 = vmatpush1.bf16.msra.mxu0 0
      %960 = vmatprep.subr.bf16.mxu0 0
      %961 = vmatpush1.bf16.msra.mxu0 0
      %962 = vmatprep.subr.bf16.mxu0 0
      %963 = vmatpush1.bf16.msra.mxu0 0
      %964 = vmatprep.subr.bf16.mxu0 0
      %965 = vmatpush1.bf16.msra.mxu0 0
      %966 = vmatprep.mubr.bf16.mxu0 0
      %967 = vmatmul.mubr.bf16.gmra.mrb[0].mxu0 %v933
      %v968 = vpop.f32.mrb[0].mxu0
      %v969 = vadd.f32 0.0, %v968
      %v970 = vpop.f32.mrb[0].mxu0
      %v971 = vadd.f32 0.0, %v970
      %v972 = vpop.f32.mrb[0].mxu0
      %v973 = vpop.f32.mrb[0].mxu0
      %974 = vdwg.mxu0
      %975 = vmatprep.subr.bf16.mxu0 %v512
      %976 = vmatpush1.bf16.msra.mxu0 %v511
      %977 = vmatprep.subr.bf16.mxu0 %v516
      %978 = vmatpush1.bf16.msra.mxu0 %v515
      %979 = vmatprep.subr.bf16.mxu0 %v520
      %980 = vmatpush1.bf16.msra.mxu0 %v519
      %981 = vmatprep.subr.bf16.mxu0 %v524
      %982 = vmatpush1.bf16.msra.mxu0 %v523
      %983 = vmatprep.subr.bf16.mxu0 %v528
      %984 = vmatpush1.bf16.msra.mxu0 %v527
      %985 = vmatprep.subr.bf16.mxu0 %v532
      %986 = vmatpush1.bf16.msra.mxu0 %v531
      %987 = vmatprep.subr.bf16.mxu0 %v536
      %988 = vmatpush1.bf16.msra.mxu0 %v535
      %989 = vmatprep.subr.bf16.mxu0 %v540
      %990 = vmatpush1.bf16.msra.mxu0 %v539
      %991 = vmatprep.subr.bf16.mxu0 0
      %992 = vmatpush1.bf16.msra.mxu0 0
      %993 = vmatprep.subr.bf16.mxu0 0
      %994 = vmatpush1.bf16.msra.mxu0 0
      %995 = vmatprep.subr.bf16.mxu0 0
      %996 = vmatpush1.bf16.msra.mxu0 0
      %997 = vmatprep.subr.bf16.mxu0 0
      %998 = vmatpush1.bf16.msra.mxu0 0
      %999 = vmatprep.subr.bf16.mxu0 0
      %1000 = vmatpush1.bf16.msra.mxu0 0
      %1001 = vmatprep.subr.bf16.mxu0 0
      %1002 = vmatpush1.bf16.msra.mxu0 0
      %1003 = vmatprep.subr.bf16.mxu0 0
      %1004 = vmatpush1.bf16.msra.mxu0 0
      %1005 = vmatprep.subr.bf16.mxu0 0
      %1006 = vmatpush1.bf16.msra.mxu0 0
      %1007 = vmatprep.mubr.bf16.mxu0 0
      %1008 = vmatmul.mubr.bf16.gmra.mrb[0].mxu0 %v933
      %v1009 = vpop.f32.mrb[0].mxu0
      %v1010 = vadd.f32 0.0, %v1009
      %v1011 = vpop.f32.mrb[0].mxu0
      %v1012 = vadd.f32 0.0, %v1011
      %v1013 = vpop.f32.mrb[0].mxu0
      %v1014 = vpop.f32.mrb[0].mxu0
      %1015 = vdwg.mxu0
      %1016 = vmatprep.subr.bf16.mxu0 %v752
      %1017 = vmatpush1.bf16.msra.mxu0 %v751
      %1018 = vmatprep.subr.bf16.mxu0 %v756
      %1019 = vmatpush1.bf16.msra.mxu0 %v755
      %1020 = vmatprep.subr.bf16.mxu0 %v760
      %1021 = vmatpush1.bf16.msra.mxu0 %v759
      %1022 = vmatprep.subr.bf16.mxu0 %v764
      %1023 = vmatpush1.bf16.msra.mxu0 %v763
      %1024 = vmatprep.subr.bf16.mxu0 %v768
      %1025 = vmatpush1.bf16.msra.mxu0 %v767
      %1026 = vmatprep.subr.bf16.mxu0 %v772
      %1027 = vmatpush1.bf16.msra.mxu0 %v771
      %1028 = vmatprep.subr.bf16.mxu0 %v776
      %1029 = vmatpush1.bf16.msra.mxu0 %v775
      %1030 = vmatprep.subr.bf16.mxu0 %v780
      %1031 = vmatpush1.bf16.msra.mxu0 %v779
      %1032 = vmatprep.subr.bf16.mxu0 0
      %1033 = vmatpush1.bf16.msra.mxu0 0
      %1034 = vmatprep.subr.bf16.mxu0 0
      %1035 = vmatpush1.bf16.msra.mxu0 0
      %1036 = vmatprep.subr.bf16.mxu0 0
      %1037 = vmatpush1.bf16.msra.mxu0 0
      %1038 = vmatprep.subr.bf16.mxu0 0
      %1039 = vmatpush1.bf16.msra.mxu0 0
      %1040 = vmatprep.subr.bf16.mxu0 0
      %1041 = vmatpush1.bf16.msra.mxu0 0
      %1042 = vmatprep.subr.bf16.mxu0 0
      %1043 = vmatpush1.bf16.msra.mxu0 0
      %1044 = vmatprep.subr.bf16.mxu0 0
      %1045 = vmatpush1.bf16.msra.mxu0 0
      %1046 = vmatprep.subr.bf16.mxu0 0
      %1047 = vmatpush1.bf16.msra.mxu0 0
      %1048 = vmatprep.mubr.bf16.mxu0 0
      %1049 = vmatmul.mubr.bf16.gmra.mrb[0].mxu0 %v931
      %v1050 = vpop.f32.mrb[0].mxu0
      %v1051 = vadd.f32 %v969, %v1050
      %v1052 = vpop.f32.mrb[0].mxu0
      %v1053 = vadd.f32 %v971, %v1052
      %v1054 = vpop.f32.mrb[0].mxu0
      %v1055 = vpop.f32.mrb[0].mxu0
      %1056 = vdwg.mxu0
      %1057 = vmatprep.subr.bf16.mxu0 %v754
      %1058 = vmatpush1.bf16.msra.mxu0 %v753
      %1059 = vmatprep.subr.bf16.mxu0 %v758
      %1060 = vmatpush1.bf16.msra.mxu0 %v757
      %1061 = vmatprep.subr.bf16.mxu0 %v762
      %1062 = vmatpush1.bf16.msra.mxu0 %v761
      %1063 = vmatprep.subr.bf16.mxu0 %v766
      %1064 = vmatpush1.bf16.msra.mxu0 %v765
      %1065 = vmatprep.subr.bf16.mxu0 %v770
      %1066 = vmatpush1.bf16.msra.mxu0 %v769
      %1067 = vmatprep.subr.bf16.mxu0 %v774
      %1068 = vmatpush1.bf16.msra.mxu0 %v773
      %1069 = vmatprep.subr.bf16.mxu0 %v778
      %1070 = vmatpush1.bf16.msra.mxu0 %v777
      %1071 = vmatprep.subr.bf16.mxu0 %v782
      %1072 = vmatpush1.bf16.msra.mxu0 %v781
      %1073 = vmatprep.subr.bf16.mxu0 0
      %1074 = vmatpush1.bf16.msra.mxu0 0
      %1075 = vmatprep.subr.bf16.mxu0 0
      %1076 = vmatpush1.bf16.msra.mxu0 0
      %1077 = vmatprep.subr.bf16.mxu0 0
      %1078 = vmatpush1.bf16.msra.mxu0 0
      %1079 = vmatprep.subr.bf16.mxu0 0
      %1080 = vmatpush1.bf16.msra.mxu0 0
      %1081 = vmatprep.subr.bf16.mxu0 0
      %1082 = vmatpush1.bf16.msra.mxu0 0
      %1083 = vmatprep.subr.bf16.mxu0 0
      %1084 = vmatpush1.bf16.msra.mxu0 0
      %1085 = vmatprep.subr.bf16.mxu0 0
      %1086 = vmatpush1.bf16.msra.mxu0 0
      %1087 = vmatprep.subr.bf16.mxu0 0
      %1088 = vmatpush1.bf16.msra.mxu0 0
      %1089 = vmatprep.mubr.bf16.mxu0 0
      %1090 = vmatmul.mubr.bf16.gmra.mrb[0].mxu0 %v931
      %v1091 = vpop.f32.mrb[0].mxu0
      %v1092 = vadd.f32 %v1010, %v1091
      %v1093 = vpop.f32.mrb[0].mxu0
      %v1094 = vadd.f32 %v1012, %v1093
      %v1095 = vpop.f32.mrb[0].mxu0
      %v1096 = vpop.f32.mrb[0].mxu0
      %1097 = vdwg.mxu0
      %v1098 = vadd.f32 %v1051, %v393
      %v1099 = vadd.f32 %v1053, %v397
      %v1100 = vadd.f32 %v1092, %v401
      %v1101 = vadd.f32 %v1094, %v405
      %v1102 = vxor.u32 %v1098, 2147483648
      %v1103 = vmul.f32 %v1102, 1.442695
      %v1104 = vpow.pop %v1103
      %v1105 = vadd.f32 %v1104, 1.0
      %v1106 = vrcp.pop %v1105
      %v1107 = vmul.f32 1.0, %v1106
      %v1108 = vxor.u32 %v1099, 2147483648
      %v1109 = vmul.f32 %v1108, 1.442695
      %v1110 = vpow.pop %v1109
      %v1111 = vadd.f32 %v1110, 1.0
      %v1112 = vrcp.pop %v1111
      %v1113 = vmul.f32 1.0, %v1112
      %v1114 = vtanh.pop %v1100
      %v1115 = vxor.u32 %v1101, 2147483648
      %v1116 = vmul.f32 %v1115, 1.442695
      %v1117 = vpow.pop %v1116
      %v1118 = vadd.f32 %v1117, 1.0
      %v1119 = vrcp.pop %v1118
      %v1120 = vmul.f32 1.0, %v1119
      %v1121 = vld [vmem:[#allocation3] sm:$0x3]
      %v1122 = vmul.f32 %v1113, %v1121
      %v1123 = vmul.f32 %v1107, %v1114
      %v1124 = vadd.f32 %v1122, %v1123
      %v1125 = vtanh.pop %v1124
      %v1126 = vmul.f32 %v1120, %v1125
      %1127 = vst [vmem:[#allocation3] sm:$0x3] %v1124
      %1128 = vst [vmem:[#allocation2] sm:$0x3] %v1126
      %v1129 = vpack.c.bf16 %v1126, %v1126
      %s1130 = scalar_lea.vmem %s313, 1
      %1131 = vst [vmem:[%s1130] sm:$0x1] %v1129
      %s1132 = scalar_lea.vmem %s297, 2
      %v1133 = vld [vmem:[%s1132] sm:$0x1]
      %v1134 = vld [vmem:[#allocation2] sm:$0x3]
      %v1135 = vpack.c.bf16 %v1134, %v1134
      %1136 = vmatprep.subr.bf16.mxu0 %v510
      %1137 = vmatpush1.bf16.msra.mxu0 %v509
      %1138 = vmatprep.subr.bf16.mxu0 %v514
      %1139 = vmatpush1.bf16.msra.mxu0 %v513
      %1140 = vmatprep.subr.bf16.mxu0 %v518
      %1141 = vmatpush1.bf16.msra.mxu0 %v517
      %1142 = vmatprep.subr.bf16.mxu0 %v522
      %1143 = vmatpush1.bf16.msra.mxu0 %v521
      %1144 = vmatprep.subr.bf16.mxu0 %v526
      %1145 = vmatpush1.bf16.msra.mxu0 %v525
      %1146 = vmatprep.subr.bf16.mxu0 %v530
      %1147 = vmatpush1.bf16.msra.mxu0 %v529
      %1148 = vmatprep.subr.bf16.mxu0 %v534
      %1149 = vmatpush1.bf16.msra.mxu0 %v533
      %1150 = vmatprep.subr.bf16.mxu0 %v538
      %1151 = vmatpush1.bf16.msra.mxu0 %v537
      %1152 = vmatprep.subr.bf16.mxu0 0
      %1153 = vmatpush1.bf16.msra.mxu0 0
      %1154 = vmatprep.subr.bf16.mxu0 0
      %1155 = vmatpush1.bf16.msra.mxu0 0
      %1156 = vmatprep.subr.bf16.mxu0 0
      %1157 = vmatpush1.bf16.msra.mxu0 0
      %1158 = vmatprep.subr.bf16.mxu0 0
      %1159 = vmatpush1.bf16.msra.mxu0 0
      %1160 = vmatprep.subr.bf16.mxu0 0
      %1161 = vmatpush1.bf16.msra.mxu0 0
      %1162 = vmatprep.subr.bf16.mxu0 0
      %1163 = vmatpush1.bf16.msra.mxu0 0
      %1164 = vmatprep.subr.bf16.mxu0 0
      %1165 = vmatpush1.bf16.msra.mxu0 0
      %1166 = vmatprep.subr.bf16.mxu0 0
      %1167 = vmatpush1.bf16.msra.mxu0 0
      %1168 = vmatprep.mubr.bf16.mxu0 0
      %1169 = vmatmul.mubr.bf16.gmra.mrb[0].mxu0 %v1135
      %v1170 = vpop.f32.mrb[0].mxu0
      %v1171 = vadd.f32 0.0, %v1170
      %v1172 = vpop.f32.mrb[0].mxu0
      %v1173 = vadd.f32 0.0, %v1172
      %v1174 = vpop.f32.mrb[0].mxu0
      %v1175 = vpop.f32.mrb[0].mxu0
      %1176 = vdwg.mxu0
      %1177 = vmatprep.subr.bf16.mxu0 %v512
      %1178 = vmatpush1.bf16.msra.mxu0 %v511
      %1179 = vmatprep.subr.bf16.mxu0 %v516
      %1180 = vmatpush1.bf16.msra.mxu0 %v515
      %1181 = vmatprep.subr.bf16.mxu0 %v520
      %1182 = vmatpush1.bf16.msra.mxu0 %v519
      %1183 = vmatprep.subr.bf16.mxu0 %v524
      %1184 = vmatpush1.bf16.msra.mxu0 %v523
      %1185 = vmatprep.subr.bf16.mxu0 %v528
      %1186 = vmatpush1.bf16.msra.mxu0 %v527
      %1187 = vmatprep.subr.bf16.mxu0 %v532
      %1188 = vmatpush1.bf16.msra.mxu0 %v531
      %1189 = vmatprep.subr.bf16.mxu0 %v536
      %1190 = vmatpush1.bf16.msra.mxu0 %v535
      %1191 = vmatprep.subr.bf16.mxu0 %v540
      %1192 = vmatpush1.bf16.msra.mxu0 %v539
      %1193 = vmatprep.subr.bf16.mxu0 0
      %1194 = vmatpush1.bf16.msra.mxu0 0
      %1195 = vmatprep.subr.bf16.mxu0 0
      %1196 = vmatpush1.bf16.msra.mxu0 0
      %1197 = vmatprep.subr.bf16.mxu0 0
      %1198 = vmatpush1.bf16.msra.mxu0 0
      %1199 = vmatprep.subr.bf16.mxu0 0
      %1200 = vmatpush1.bf16.msra.mxu0 0
      %1201 = vmatprep.subr.bf16.mxu0 0
      %1202 = vmatpush1.bf16.msra.mxu0 0
      %1203 = vmatprep.subr.bf16.mxu0 0
      %1204 = vmatpush1.bf16.msra.mxu0 0
      %1205 = vmatprep.subr.bf16.mxu0 0
      %1206 = vmatpush1.bf16.msra.mxu0 0
      %1207 = vmatprep.subr.bf16.mxu0 0
      %1208 = vmatpush1.bf16.msra.mxu0 0
      %1209 = vmatprep.mubr.bf16.mxu0 0
      %1210 = vmatmul.mubr.bf16.gmra.mrb[0].mxu0 %v1135
      %v1211 = vpop.f32.mrb[0].mxu0
      %v1212 = vadd.f32 0.0, %v1211
      %v1213 = vpop.f32.mrb[0].mxu0
      %v1214 = vadd.f32 0.0, %v1213
      %v1215 = vpop.f32.mrb[0].mxu0
      %v1216 = vpop.f32.mrb[0].mxu0
      %1217 = vdwg.mxu0
      %1218 = vmatprep.subr.bf16.mxu0 %v752
      %1219 = vmatpush1.bf16.msra.mxu0 %v751
      %1220 = vmatprep.subr.bf16.mxu0 %v756
      %1221 = vmatpush1.bf16.msra.mxu0 %v755
      %1222 = vmatprep.subr.bf16.mxu0 %v760
      %1223 = vmatpush1.bf16.msra.mxu0 %v759
      %1224 = vmatprep.subr.bf16.mxu0 %v764
      %1225 = vmatpush1.bf16.msra.mxu0 %v763
      %1226 = vmatprep.subr.bf16.mxu0 %v768
      %1227 = vmatpush1.bf16.msra.mxu0 %v767
      %1228 = vmatprep.subr.bf16.mxu0 %v772
      %1229 = vmatpush1.bf16.msra.mxu0 %v771
      %1230 = vmatprep.subr.bf16.mxu0 %v776
      %1231 = vmatpush1.bf16.msra.mxu0 %v775
      %1232 = vmatprep.subr.bf16.mxu0 %v780
      %1233 = vmatpush1.bf16.msra.mxu0 %v779
      %1234 = vmatprep.subr.bf16.mxu0 0
      %1235 = vmatpush1.bf16.msra.mxu0 0
      %1236 = vmatprep.subr.bf16.mxu0 0
      %1237 = vmatpush1.bf16.msra.mxu0 0
      %1238 = vmatprep.subr.bf16.mxu0 0
      %1239 = vmatpush1.bf16.msra.mxu0 0
      %1240 = vmatprep.subr.bf16.mxu0 0
      %1241 = vmatpush1.bf16.msra.mxu0 0
      %1242 = vmatprep.subr.bf16.mxu0 0
      %1243 = vmatpush1.bf16.msra.mxu0 0
      %1244 = vmatprep.subr.bf16.mxu0 0
      %1245 = vmatpush1.bf16.msra.mxu0 0
      %1246 = vmatprep.subr.bf16.mxu0 0
      %1247 = vmatpush1.bf16.msra.mxu0 0
      %1248 = vmatprep.subr.bf16.mxu0 0
      %1249 = vmatpush1.bf16.msra.mxu0 0
      %1250 = vmatprep.mubr.bf16.mxu0 0
      %1251 = vmatmul.mubr.bf16.gmra.mrb[0].mxu0 %v1133
      %v1252 = vpop.f32.mrb[0].mxu0
      %v1253 = vadd.f32 %v1171, %v1252
      %v1254 = vpop.f32.mrb[0].mxu0
      %v1255 = vadd.f32 %v1173, %v1254
      %v1256 = vpop.f32.mrb[0].mxu0
      %v1257 = vpop.f32.mrb[0].mxu0
      %1258 = vdwg.mxu0
      %1259 = vmatprep.subr.bf16.mxu0 %v754
      %1260 = vmatpush1.bf16.msra.mxu0 %v753
      %1261 = vmatprep.subr.bf16.mxu0 %v758
      %1262 = vmatpush1.bf16.msra.mxu0 %v757
      %1263 = vmatprep.subr.bf16.mxu0 %v762
      %1264 = vmatpush1.bf16.msra.mxu0 %v761
      %1265 = vmatprep.subr.bf16.mxu0 %v766
      %1266 = vmatpush1.bf16.msra.mxu0 %v765
      %1267 = vmatprep.subr.bf16.mxu0 %v770
      %1268 = vmatpush1.bf16.msra.mxu0 %v769
      %1269 = vmatprep.subr.bf16.mxu0 %v774
      %1270 = vmatpush1.bf16.msra.mxu0 %v773
      %1271 = vmatprep.subr.bf16.mxu0 %v778
      %1272 = vmatpush1.bf16.msra.mxu0 %v777
      %1273 = vmatprep.subr.bf16.mxu0 %v782
      %1274 = vmatpush1.bf16.msra.mxu0 %v781
      %1275 = vmatprep.subr.bf16.mxu0 0
      %1276 = vmatpush1.bf16.msra.mxu0 0
      %1277 = vmatprep.subr.bf16.mxu0 0
      %1278 = vmatpush1.bf16.msra.mxu0 0
      %1279 = vmatprep.subr.bf16.mxu0 0
      %1280 = vmatpush1.bf16.msra.mxu0 0
      %1281 = vmatprep.subr.bf16.mxu0 0
      %1282 = vmatpush1.bf16.msra.mxu0 0
      %1283 = vmatprep.subr.bf16.mxu0 0
      %1284 = vmatpush1.bf16.msra.mxu0 0
      %1285 = vmatprep.subr.bf16.mxu0 0
      %1286 = vmatpush1.bf16.msra.mxu0 0
      %1287 = vmatprep.subr.bf16.mxu0 0
      %1288 = vmatpush1.bf16.msra.mxu0 0
      %1289 = vmatprep.subr.bf16.mxu0 0
      %1290 = vmatpush1.bf16.msra.mxu0 0
      %1291 = vmatprep.mubr.bf16.mxu0 0
      %1292 = vmatmul.mubr.bf16.gmra.mrb[0].mxu0 %v1133
      %v1293 = vpop.f32.mrb[0].mxu0
      %v1294 = vadd.f32 %v1212, %v1293
      %v1295 = vpop.f32.mrb[0].mxu0
      %v1296 = vadd.f32 %v1214, %v1295
      %v1297 = vpop.f32.mrb[0].mxu0
      %v1298 = vpop.f32.mrb[0].mxu0
      %1299 = vdwg.mxu0
      %v1300 = vadd.f32 %v1253, %v393
      %v1301 = vadd.f32 %v1255, %v397
      %v1302 = vadd.f32 %v1294, %v401
      %v1303 = vadd.f32 %v1296, %v405
      %v1304 = vxor.u32 %v1300, 2147483648
      %v1305 = vmul.f32 %v1304, 1.442695
      %v1306 = vpow.pop %v1305
      %v1307 = vadd.f32 %v1306, 1.0
      %v1308 = vrcp.pop %v1307
      %v1309 = vmul.f32 1.0, %v1308
      %v1310 = vxor.u32 %v1301, 2147483648
      %v1311 = vmul.f32 %v1310, 1.442695
      %v1312 = vpow.pop %v1311
      %v1313 = vadd.f32 %v1312, 1.0
      %v1314 = vrcp.pop %v1313
      %v1315 = vmul.f32 1.0, %v1314
      %v1316 = vtanh.pop %v1302
      %v1317 = vxor.u32 %v1303, 2147483648
      %v1318 = vmul.f32 %v1317, 1.442695
      %v1319 = vpow.pop %v1318
      %v1320 = vadd.f32 %v1319, 1.0
      %v1321 = vrcp.pop %v1320
      %v1322 = vmul.f32 1.0, %v1321
      %v1323 = vld [vmem:[#allocation3] sm:$0x3]
      %v1324 = vmul.f32 %v1315, %v1323
      %v1325 = vmul.f32 %v1309, %v1316
      %v1326 = vadd.f32 %v1324, %v1325
      %v1327 = vtanh.pop %v1326
      %v1328 = vmul.f32 %v1322, %v1327
      %1329 = vst [vmem:[#allocation3] sm:$0x3] %v1326
      %1330 = vst [vmem:[#allocation2] sm:$0x3] %v1328
      %v1331 = vpack.c.bf16 %v1328, %v1328
      %s1332 = scalar_lea.vmem %s313, 2
      %1333 = vst [vmem:[%s1332] sm:$0x1] %v1331
      %s1334 = smul.u32 3, %s22
      %p1335 = scmp.lt.s32.totalorder %s1334, 8
      %s1336 = scalar_select %p1335, %s1334, 8
      %p1337 = scmp.lt.s32.totalorder %s21, 0
      %s1338 = scalar_select %p1337, %s21, 0
      %s1339 = sadd.s32 %s1338, %s1336
      %s1340 = scalar_lea.vmem %s6, %s1339
      // Predicated region
      $region49: #{critic_forward.5} parent=43 // pred_check
        %p1341 = pneg %p192
      $region50: #{critic_forward.5} parent=43 // pred_check_branch
        %1343 = sbr.rel (%p1341) target = $region52
      $region51: #{critic_forward.5} parent=43 // pred_region
        %s1344 = smul.u32 3, %s22
      $region52: #{critic_forward.5} parent=43 // pred_fallthru
        _
    $region44: #{critic_forward.5} parent=5 // pred_fallthru
      _
    %p1345 = scmp.le.s32.totalorder 2, %s12
    // Predicated region
    $region53: #{critic_forward.5} parent=5 // pred_check
      %p1346 = pneg %p1345
    $region54: #{critic_forward.5} parent=5 // pred_check_branch
      %1348 = sbr.rel (%p1346) target = $region56
    $region55: #{critic_forward.5} parent=5 // pred_region
      %s1349 = ssub.s32 %s12, 2
      // Predicated region
      $region57: #{critic_forward.5} parent=55 // pred_check
        %p1350 = pneg %p198
      $region58: #{critic_forward.5} parent=55 // pred_check_branch
        %1352 = sbr.rel (%p1350) target = $region60
      $region59: #{critic_forward.5} parent=55 // pred_region
        %s1353 = smul.u32 3, %s24
        %p1354 = scmp.lt.s32.totalorder %s1353, 8
        %s1355 = scalar_select %p1354, %s1353, 8
        %p1356 = scmp.lt.s32.totalorder %s23, 0
        %s1357 = scalar_select %p1356, %s23, 0
        %s1358 = sadd.s32 %s1357, %s1355
        %s1359 = scalar_lea.vmem %s6, %s1358
      $region60: #{critic_forward.5} parent=55 // pred_fallthru
        _
    $region56: #{critic_forward.5} parent=5 // pred_fallthru
      _
  $region6: #{critic_forward.5} parent=0 // loop_footer
    %s16 = sadd.s32 1, %s12
  $region7: #{critic_forward.5} parent=0 // loop_footer_branch
    %11 = sbr.rel target = $region3
  $region8: #{critic_forward.5} parent=0 // loop_exit
    _

</llo_original>
